<compile_context>
chip_gen: v7x
topology: tpu7x:2x2x1
jax: 0.10.0
libtpu: 0.0.40
codegen_flags: <defaults>
</compile_context>

<pallas_src>
import functools
import math

import jax
import jax.numpy as jnp
from jax.experimental import pallas as pl
from jax.experimental.pallas import tpu as pltpu


# ----------------------------- model sizes ---------------------------------
VOCAB = 50
B = 2            # batch
S = 16           # sequence length
H = 32           # hidden size
F = 64           # FFN intermediate size
Q = 8            # args.num_generated_triples
L = 2            # args.num_decoder_layers
NUM_CLASSES = 3
C = NUM_CLASSES + 1      # compare/relation logits include the NA class

NPTR = 6                 # six pointer heads (sub/obj/aspect x start/end)
KV_W = 2 * L * H         # fused [k|v] width for all decoder layers   (=128)
PTR_W = NPTR * H         # fused pointer metric_1 / metric_2 width    (=192)
ENC_W = KV_W + PTR_W     # enc-side fused projection width            (=320)
QRY_W = PTR_W + C        # query-side fused projection width          (=196)
OUT_W = 128              # packed output lane width (6*S + C = 100, padded)


def _layernorm(x, gamma, beta, eps=1e-12):
    mu = jnp.mean(x, axis=-1, keepdims=True)
    var = jnp.mean((x - mu) ** 2, axis=-1, keepdims=True)
    return (x - mu) * jax.lax.rsqrt(var + eps) * gamma + beta


# ------------------------------ the kernel ---------------------------------
def setpred_kernel(
    emb_ref,      # (B, S, H)   token embeddings
    mask_ref,     # (B, S)      attention mask (float32, 1.0 = keep)
    qemb_ref,     # (Q, H)      query embeddings (shared across batch)
    wenc_ref,     # (H, H)      encoder-stub projection
    wq_ref,       # (L, H, H)   cross-attention query proj
    wo_ref,       # (L, H, H)   cross-attention output proj
    wi_ref,       # (L, H, F)   FFN in
    wo2_ref,      # (L, F, H)   FFN out
    ln1g_ref, ln1b_ref, ln2g_ref, ln2b_ref,   # (L, H) layer norms
    wencbig_ref,  # (H, ENC_W)  fused [k0|v0|k1|v1 | metric_2 x6]
    b2a_ref,      # (1, PTR_W)  fused metric_2 biases
    w1ext_ref,    # (H, QRY_W)  fused [metric_1 x6 | compare classifier]
    b1ext_ref,    # (1, QRY_W)  fused [metric_1 biases | compare bias]
    w3all_ref,    # (1, PTR_W)  fused metric_3 vectors
    out_ref,      # (B, Q, OUT_W) packed logits
):
    f32 = jnp.float32
    emb = emb_ref[...].astype(f32)            # (B, S, H)
    mask = mask_ref[...].astype(f32)          # (B, S)

    # ---- encoder stub: last_hidden_state ----
    emb2d = emb.reshape(B * S, H)
    enc2d = jnp.tanh(jnp.dot(emb2d, wenc_ref[...],
                             preferred_element_type=f32))          # (B*S, H)

    # ---- single wide enc-side projection (k/v for all layers + metric_2) ----
    encp = jnp.dot(enc2d, wencbig_ref[...],
                   preferred_element_type=f32)                      # (B*S, ENC_W)

    neg_bias = (1.0 - mask) * -10000.0        # additive attention-mask bias (B, S)
    scale = 1.0 / math.sqrt(H)

    # ---- SetDecoder: Q learned queries cross-attend over encoder states ----
    h = jnp.broadcast_to(qemb_ref[...].astype(f32)[None, :, :], (B, Q, H))
    for l in range(L):
        h2d = h.reshape(B * Q, H)
        q = jnp.dot(h2d, wq_ref[l], preferred_element_type=f32).reshape(B, Q, H)
        k = encp[:, l * 2 * H: l * 2 * H + H].reshape(B, S, H)
        v = encp[:, l * 2 * H + H: (l + 1) * 2 * H].reshape(B, S, H)
        scores = jnp.einsum("bqh,bsh->bqs", q, k,
                            preferred_element_type=f32) * scale
        scores = scores + neg_bias[:, None, :]
        scores = scores - jnp.max(scores, axis=-1, keepdims=True)
        p = jnp.exp(scores)
        p = p * pl.reciprocal(jnp.sum(p, axis=-1, keepdims=True), approx=True)
        ctx = jnp.einsum("bqs,bsh->bqh", p, v, preferred_element_type=f32)
        attn_out = jnp.dot(ctx.reshape(B * Q, H), wo_ref[l],
                           preferred_element_type=f32).reshape(B, Q, H)
        h = _layernorm(h + attn_out, ln1g_ref[l], ln1b_ref[l])
        h2d = h.reshape(B * Q, H)
        ffn = jnp.dot(jax.nn.gelu(jnp.dot(h2d, wi_ref[l],
                                          preferred_element_type=f32)),
                      wo2_ref[l], preferred_element_type=f32).reshape(B, Q, H)
        h = _layernorm(h + ffn, ln2g_ref[l], ln2b_ref[l])

    # ---- fused query-side projection: 6x metric_1 + compare classifier ----
    h2d = h.reshape(B * Q, H)
    a_ext = jnp.dot(h2d, w1ext_ref[...],
                    preferred_element_type=f32) + b1ext_ref[...]    # (B*Q, QRY_W)
    a_all = a_ext[:, :PTR_W].reshape(B, Q, PTR_W)                   # metric_1(h)
    cmp = a_ext[:, PTR_W:].reshape(B, Q, C)                         # compare logits

    bm_all = (encp[:, KV_W:] + b2a_ref[...]).reshape(B, S, PTR_W)   # metric_2(enc)

    # ---- pointer heads: w3 . tanh(W1 h + W2 s), then masked_fill(-10000) ----
    t = jnp.tanh(a_all[:, :, None, :] + bm_all[:, None, :, :])      # (B, Q, S, PTR_W)
    u = t * w3all_ref[...]                                          # broadcast (1, PTR_W)

    keep = mask[:, None, :] > 0.5                                   # (B, 1, S)
    pieces = []
    for i in range(NPTR):
        logit = jnp.sum(u[..., i * H:(i + 1) * H], axis=-1)         # (B, Q, S)
        pieces.append(jnp.where(keep, logit, -10000.0))             # exact masked_fill

    pad = jnp.zeros((B, Q, OUT_W - NPTR * S - C), f32)
    packed = jnp.concatenate(pieces + [cmp, pad], axis=-1)          # (B, Q, OUT_W)
    out_ref[...] = packed.astype(out_ref.dtype)                     # single wide store


# ------------------------------ wrapper -------------------------------------
def make_params(key):
    ks = jax.random.split(key, 16)
    sc = 0.05
    return {
        "tok_emb": jax.random.normal(ks[0], (VOCAB, H), jnp.float32) * sc,
        "q_emb":   jax.random.normal(ks[1], (Q, H), jnp.float32) * sc,
        "w_enc":   jax.random.normal(ks[2], (H, H), jnp.float32) * sc,
        "wq": jax.random.normal(ks[3], (L, H, H), jnp.float32) * sc,
        "wk": jax.random.normal(ks[4], (L, H, H), jnp.float32) * sc,
        "wv": jax.random.normal(ks[5], (L, H, H), jnp.float32) * sc,
        "wo": jax.random.normal(ks[6], (L, H, H), jnp.float32) * sc,
        "wi": jax.random.normal(ks[7], (L, H, F), jnp.float32) * sc,
        "wo2": jax.random.normal(ks[8], (L, F, H), jnp.float32) * sc,
        "ln1g": jnp.ones((L, H), jnp.float32),
        "ln1b": jnp.zeros((L, H), jnp.float32),
        "ln2g": jnp.ones((L, H), jnp.float32),
        "ln2b": jnp.zeros((L, H), jnp.float32),
        "w1": jax.random.normal(ks[9], (NPTR, H, H), jnp.float32) * sc,
        "b1": jax.random.normal(ks[10], (NPTR, H), jnp.float32) * sc,
        "w2": jax.random.normal(ks[11], (NPTR, H, H), jnp.float32) * sc,
        "b2": jax.random.normal(ks[12], (NPTR, H), jnp.float32) * sc,
        "w3": jax.random.normal(ks[13], (NPTR, H), jnp.float32) * sc,
        "wc": jax.random.normal(ks[14], (H, C), jnp.float32) * sc,
        "bc": jax.random.normal(ks[15], (C,), jnp.float32) * sc,
    }


def _zero_map(i, n):
    return (0,) * n


@jax.jit
def setpred4re_sub_absa_forward(params, input_ids, attention_mask):
    # glue: embedding lookup (encoder stub front-end)
    emb = params["tok_emb"][input_ids]                       # (B, S, H)
    mask = attention_mask.astype(jnp.float32)                # (B, S)

    # ---- build the fused weight slabs (free at trace time, folded by XLA) ----
    wkv = jnp.concatenate([params["wk"], params["wv"]], axis=2)        # (L, H, 2H)
    wkv_all = jnp.transpose(wkv, (1, 0, 2)).reshape(H, KV_W)           # (H, 2LH)
    w2a = jnp.transpose(params["w2"], (1, 0, 2)).reshape(H, PTR_W)     # (H, 6H)
    wenc_big = jnp.concatenate([wkv_all, w2a], axis=1)                 # (H, ENC_W)
    b2a = params["b2"].reshape(PTR_W)[None, :]                         # (1, 6H)

    w1a = jnp.transpose(params["w1"], (1, 0, 2)).reshape(H, PTR_W)     # (H, 6H)
    w1ext = jnp.concatenate([w1a, params["wc"]], axis=1)               # (H, 6H+C)
    b1ext = jnp.concatenate([params["b1"].reshape(PTR_W),
                             params["bc"]])[None, :]                   # (1, 6H+C)
    w3all = params["w3"].reshape(PTR_W)[None, :]                       # (1, 6H)

    args = (emb, mask, params["q_emb"], params["w_enc"],
            params["wq"], params["wo"], params["wi"], params["wo2"],
            params["ln1g"], params["ln1b"], params["ln2g"], params["ln2b"],
            wenc_big, b2a, w1ext, b1ext, w3all)

    in_specs = [pl.BlockSpec(a.shape, functools.partial(_zero_map, n=a.ndim))
                for a in args]
    out_specs = pl.BlockSpec((B, Q, OUT_W), lambda i: (0, 0, 0))

    packed = pl.pallas_call(
        setpred_kernel,
        out_shape=jax.ShapeDtypeStruct((B, Q, OUT_W), jnp.float32),
        grid_spec=pltpu.PrefetchScalarGridSpec(
            num_scalar_prefetch=0,
            grid=(1,),                       # single step: overhead-bound kernel
            in_specs=in_specs,
            out_specs=out_specs,
        ),
        compiler_params=pltpu.CompilerParams(
            dimension_semantics=("arbitrary",)),
    )(*args)

    # ---- unpack the lane-dense slab back into the 7 named outputs ----
    ptr = [packed[:, :, i * S:(i + 1) * S] for i in range(NPTR)]
    cmp = packed[:, :, NPTR * S:NPTR * S + C]
    return {
        "pred_rel_logits": cmp,
        "sub_start_logits": ptr[0],
        "sub_end_logits": ptr[1],
        "obj_start_logits": ptr[2],
        "obj_end_logits": ptr[3],
        "aspect_start_logits": ptr[4],
        "aspect_end_logits": ptr[5],
    }


if __name__ == "__main__":
    key = jax.random.PRNGKey(0)
    pkey, ikey = jax.random.split(key)
    params = make_params(pkey)

    input_ids = jax.random.randint(ikey, (B, S), 0, VOCAB, dtype=jnp.int32)
    # first example fully valid, second example padded on the last 5 tokens
    attention_mask = jnp.concatenate(
        [jnp.ones((1, S), jnp.int32),
         jnp.concatenate([jnp.ones((1, S - 5), jnp.int32),
                          jnp.zeros((1, 5), jnp.int32)], axis=1)], axis=0)

    outputs = setpred4re_sub_absa_forward(params, input_ids, attention_mask)
    outputs = jax.block_until_ready(outputs)

    # light sanity checks
    assert outputs["pred_rel_logits"].shape == (B, Q, C)
    for k in ("sub_start_logits", "sub_end_logits", "obj_start_logits",
              "obj_end_logits", "aspect_start_logits", "aspect_end_logits"):
        v = outputs[k]
        assert v.shape == (B, Q, S)
        assert bool(jnp.all(jnp.isfinite(v)))
        # padded positions of batch 1 must be exactly -10000.0 (masked_fill)
        assert bool(jnp.all(v[1, :, S - 5:] == -10000.0))

    print("KERNEL_OK")
</pallas_src>

<mosaic_0001>
module attributes {stable_mosaic.version = 11 : i64} {
  func.func @setpred_kernel(%arg0: i32, %arg1: memref<2x16x32xf32, #tpu.memory_space<vmem>>, %arg2: memref<2x16xf32, #tpu.memory_space<vmem>>, %arg3: memref<8x32xf32, #tpu.memory_space<vmem>>, %arg4: memref<32x32xf32, #tpu.memory_space<vmem>>, %arg5: memref<2x32x32xf32, #tpu.memory_space<vmem>>, %arg6: memref<2x32x32xf32, #tpu.memory_space<vmem>>, %arg7: memref<2x32x64xf32, #tpu.memory_space<vmem>>, %arg8: memref<2x64x32xf32, #tpu.memory_space<vmem>>, %arg9: memref<2x32xf32, #tpu.memory_space<vmem>>, %arg10: memref<2x32xf32, #tpu.memory_space<vmem>>, %arg11: memref<2x32xf32, #tpu.memory_space<vmem>>, %arg12: memref<2x32xf32, #tpu.memory_space<vmem>>, %arg13: memref<32x320xf32, #tpu.memory_space<vmem>>, %arg14: memref<1x192xf32, #tpu.memory_space<vmem>>, %arg15: memref<32x196xf32, #tpu.memory_space<vmem>>, %arg16: memref<1x196xf32, #tpu.memory_space<vmem>>, %arg17: memref<1x192xf32, #tpu.memory_space<vmem>>, %arg18: memref<2x8x128xf32, #tpu.memory_space<vmem>>) attributes {dimension_semantics = [#tpu.dimension_semantics<arbitrary>], iteration_bounds = array<i64: 1>, scalar_prefetch = 0 : i64, scratch_operands = 0 : i64, tpu.core_type = #tpu.core_type<tc>, window_params = [{pipeline_mode = #tpu.pipeline_mode<synchronous>, transform_indices = @transform_0, window_bounds = array<i64: 2, 16, 32>}, {pipeline_mode = #tpu.pipeline_mode<synchronous>, transform_indices = @transform_1, window_bounds = array<i64: 2, 16>}, {pipeline_mode = #tpu.pipeline_mode<synchronous>, transform_indices = @transform_2, window_bounds = array<i64: 8, 32>}, {pipeline_mode = #tpu.pipeline_mode<synchronous>, transform_indices = @transform_3, window_bounds = array<i64: 32, 32>}, {pipeline_mode = #tpu.pipeline_mode<synchronous>, transform_indices = @transform_4, window_bounds = array<i64: 2, 32, 32>}, {pipeline_mode = #tpu.pipeline_mode<synchronous>, transform_indices = @transform_5, window_bounds = array<i64: 2, 32, 32>}, {pipeline_mode = #tpu.pipeline_mode<synchronous>, transform_indices = @transform_6, window_bounds = array<i64: 2, 32, 64>}, {pipeline_mode = #tpu.pipeline_mode<synchronous>, transform_indices = @transform_7, window_bounds = array<i64: 2, 64, 32>}, {pipeline_mode = #tpu.pipeline_mode<synchronous>, transform_indices = @transform_8, window_bounds = array<i64: 2, 32>}, {pipeline_mode = #tpu.pipeline_mode<synchronous>, transform_indices = @transform_9, window_bounds = array<i64: 2, 32>}, {pipeline_mode = #tpu.pipeline_mode<synchronous>, transform_indices = @transform_10, window_bounds = array<i64: 2, 32>}, {pipeline_mode = #tpu.pipeline_mode<synchronous>, transform_indices = @transform_11, window_bounds = array<i64: 2, 32>}, {pipeline_mode = #tpu.pipeline_mode<synchronous>, transform_indices = @transform_12, window_bounds = array<i64: 32, 320>}, {pipeline_mode = #tpu.pipeline_mode<synchronous>, transform_indices = @transform_13, window_bounds = array<i64: 1, 192>}, {pipeline_mode = #tpu.pipeline_mode<synchronous>, transform_indices = @transform_14, window_bounds = array<i64: 32, 196>}, {pipeline_mode = #tpu.pipeline_mode<synchronous>, transform_indices = @transform_15, window_bounds = array<i64: 1, 196>}, {pipeline_mode = #tpu.pipeline_mode<synchronous>, transform_indices = @transform_16, window_bounds = array<i64: 1, 192>}, {pipeline_mode = #tpu.pipeline_mode<synchronous>, transform_indices = @transform_17, window_bounds = array<i64: 2, 8, 128>}]} {
    %c0 = arith.constant 0 : index
    %c0_0 = arith.constant 0 : index
    %c0_1 = arith.constant 0 : index
    %0 = vector.load %arg1[%c0, %c0_0, %c0_1] : memref<2x16x32xf32, #tpu.memory_space<vmem>>, vector<2x16x32xf32>
    %c0_2 = arith.constant 0 : index
    %c0_3 = arith.constant 0 : index
    %1 = vector.load %arg2[%c0_2, %c0_3] : memref<2x16xf32, #tpu.memory_space<vmem>>, vector<2x16xf32>
    %2 = vector.shape_cast %0 : vector<2x16x32xf32> to vector<32x32xf32>
    %c0_4 = arith.constant 0 : index
    %c0_5 = arith.constant 0 : index
    %3 = vector.load %arg4[%c0_4, %c0_5] : memref<32x32xf32, #tpu.memory_space<vmem>>, vector<32x32xf32>
    %cst = arith.constant dense<0.000000e+00> : vector<32x32xf32>
    %4 = tpu.matmul %2, %3, %cst {dimension_numbers = #tpu.dot_dimension_numbers<[1], [0], [0], [1], [0, 0, 1, 1], [], []>} : vector<32x32xf32>, vector<32x32xf32>, vector<32x32xf32> -> vector<32x32xf32>
    %5 = math.tanh %4 : vector<32x32xf32>
    %c0_6 = arith.constant 0 : index
    %c0_7 = arith.constant 0 : index
    %6 = vector.load %arg13[%c0_6, %c0_7] : memref<32x320xf32, #tpu.memory_space<vmem>>, vector<32x320xf32>
    %cst_8 = arith.constant dense<0.000000e+00> : vector<32x320xf32>
    %7 = tpu.matmul %5, %6, %cst_8 {dimension_numbers = #tpu.dot_dimension_numbers<[1], [0], [0], [1], [0, 0, 1, 1], [], []>} : vector<32x32xf32>, vector<32x320xf32>, vector<32x320xf32> -> vector<32x320xf32>
    %cst_9 = arith.constant 1.000000e+00 : f32
    %8 = vector.broadcast %cst_9 : f32 to vector<2x16xf32>
    %9 = arith.subf %8, %1 : vector<2x16xf32>
    %cst_10 = arith.constant -1.000000e+04 : f32
    %10 = vector.broadcast %cst_10 : f32 to vector<2x16xf32>
    %11 = arith.mulf %9, %10 : vector<2x16xf32>
    %c0_11 = arith.constant 0 : index
    %c0_12 = arith.constant 0 : index
    %12 = vector.load %arg3[%c0_11, %c0_12] : memref<8x32xf32, #tpu.memory_space<vmem>>, vector<8x32xf32>
    %13 = vector.shape_cast %12 : vector<8x32xf32> to vector<1x8x32xf32>
    %14 = vector.shape_cast %13 : vector<1x8x32xf32> to vector<1x8x32xf32>
    %15 = vector.broadcast %14 : vector<1x8x32xf32> to vector<2x8x32xf32>
    %16 = vector.shape_cast %15 : vector<2x8x32xf32> to vector<16x32xf32>
    %c0_13 = arith.constant 0 : index
    %c0_14 = arith.constant 0 : index
    %c0_15 = arith.constant 0 : index
    %17 = vector.load %arg5[%c0_13, %c0_14, %c0_15] : memref<2x32x32xf32, #tpu.memory_space<vmem>>, vector<1x32x32xf32>
    %18 = vector.shape_cast %17 : vector<1x32x32xf32> to vector<32x32xf32>
    %cst_16 = arith.constant dense<0.000000e+00> : vector<16x32xf32>
    %19 = tpu.matmul %16, %18, %cst_16 {dimension_numbers = #tpu.dot_dimension_numbers<[1], [0], [0], [1], [0, 0, 1, 1], [], []>} : vector<16x32xf32>, vector<32x32xf32>, vector<16x32xf32> -> vector<16x32xf32>
    %20 = vector.shape_cast %19 : vector<16x32xf32> to vector<2x8x32xf32>
    %21 = vector.extract_strided_slice %7 {offsets = [0, 0], sizes = [32, 32], strides = [1, 1]} : vector<32x320xf32> to vector<32x32xf32>
    %22 = vector.shape_cast %21 : vector<32x32xf32> to vector<2x16x32xf32>
    %23 = vector.extract_strided_slice %7 {offsets = [0, 32], sizes = [32, 32], strides = [1, 1]} : vector<32x320xf32> to vector<32x32xf32>
    %24 = vector.shape_cast %23 : vector<32x32xf32> to vector<2x16x32xf32>
    "tpu.trace_start"() <{level = 10 : i32, message = "bqh,bsh->bqs"}> : () -> ()
    %cst_17 = arith.constant dense<0.000000e+00> : vector<2x8x16xf32>
    %25 = tpu.matmul %20, %22, %cst_17 {dimension_numbers = #tpu.dot_dimension_numbers<[2], [2], [1], [1], [0, 0, 0, 1, 1, 1], [0], [0]>} : vector<2x8x32xf32>, vector<2x16x32xf32>, vector<2x8x16xf32> -> vector<2x8x16xf32>
    "tpu.trace_stop"() : () -> ()
    %cst_18 = arith.constant 0.176776692 : f32
    %26 = vector.broadcast %cst_18 : f32 to vector<2x8x16xf32>
    %27 = arith.mulf %25, %26 : vector<2x8x16xf32>
    %28 = vector.shape_cast %11 : vector<2x16xf32> to vector<2x1x16xf32>
    %29 = vector.broadcast %28 : vector<2x1x16xf32> to vector<2x8x16xf32>
    %30 = arith.addf %27, %29 : vector<2x8x16xf32>
    %cst_19 = arith.constant dense<0xFF800000> : vector<2x8xf32>
    %31 = vector.multi_reduction <maximumf>, %30, %cst_19 [2] : vector<2x8x16xf32> to vector<2x8xf32>
    %32 = vector.shape_cast %31 : vector<2x8xf32> to vector<2x8x1xf32>
    %33 = vector.broadcast %32 : vector<2x8x1xf32> to vector<2x8x16xf32>
    %34 = arith.subf %30, %33 : vector<2x8x16xf32>
    %35 = math.exp %34 : vector<2x8x16xf32>
    %cst_20 = arith.constant dense<0.000000e+00> : vector<2x8xf32>
    %36 = vector.multi_reduction <add>, %35, %cst_20 [2] : vector<2x8x16xf32> to vector<2x8xf32>
    %37 = vector.shape_cast %36 : vector<2x8xf32> to vector<2x8x1xf32>
    %38 = tpu.reciprocal %37 {approx = true} : vector<2x8x1xf32> -> vector<2x8x1xf32>
    %39 = vector.broadcast %38 : vector<2x8x1xf32> to vector<2x8x16xf32>
    %40 = arith.mulf %35, %39 : vector<2x8x16xf32>
    "tpu.trace_start"() <{level = 10 : i32, message = "bqs,bsh->bqh"}> : () -> ()
    %cst_21 = arith.constant dense<0.000000e+00> : vector<2x8x32xf32>
    %41 = tpu.matmul %40, %24, %cst_21 {dimension_numbers = #tpu.dot_dimension_numbers<[2], [1], [1], [2], [0, 0, 0, 1, 1, 2], [0], [0]>} : vector<2x8x16xf32>, vector<2x16x32xf32>, vector<2x8x32xf32> -> vector<2x8x32xf32>
    "tpu.trace_stop"() : () -> ()
    %42 = vector.shape_cast %41 : vector<2x8x32xf32> to vector<16x32xf32>
    %c0_22 = arith.constant 0 : index
    %c0_23 = arith.constant 0 : index
    %c0_24 = arith.constant 0 : index
    %43 = vector.load %arg6[%c0_22, %c0_23, %c0_24] : memref<2x32x32xf32, #tpu.memory_space<vmem>>, vector<1x32x32xf32>
    %44 = vector.shape_cast %43 : vector<1x32x32xf32> to vector<32x32xf32>
    %cst_25 = arith.constant dense<0.000000e+00> : vector<16x32xf32>
    %45 = tpu.matmul %42, %44, %cst_25 {dimension_numbers = #tpu.dot_dimension_numbers<[1], [0], [0], [1], [0, 0, 1, 1], [], []>} : vector<16x32xf32>, vector<32x32xf32>, vector<16x32xf32> -> vector<16x32xf32>
    %46 = vector.shape_cast %45 : vector<16x32xf32> to vector<2x8x32xf32>
    %47 = arith.addf %15, %46 : vector<2x8x32xf32>
    %c0_26 = arith.constant 0 : index
    %c0_27 = arith.constant 0 : index
    %48 = vector.load %arg9[%c0_26, %c0_27] : memref<2x32xf32, #tpu.memory_space<vmem>>, vector<1x32xf32>
    %49 = vector.shape_cast %48 : vector<1x32xf32> to vector<32xf32>
    %c0_28 = arith.constant 0 : index
    %c0_29 = arith.constant 0 : index
    %50 = vector.load %arg10[%c0_28, %c0_29] : memref<2x32xf32, #tpu.memory_space<vmem>>, vector<1x32xf32>
    %51 = vector.shape_cast %50 : vector<1x32xf32> to vector<32xf32>
    %cst_30 = arith.constant dense<0.000000e+00> : vector<2x8xf32>
    %52 = vector.multi_reduction <add>, %47, %cst_30 [2] : vector<2x8x32xf32> to vector<2x8xf32>
    %53 = vector.shape_cast %52 : vector<2x8xf32> to vector<2x8x1xf32>
    %cst_31 = arith.constant 3.200000e+01 : f32
    %54 = vector.broadcast %cst_31 : f32 to vector<2x8x1xf32>
    %55 = arith.divf %53, %54 : vector<2x8x1xf32>
    %56 = vector.broadcast %55 : vector<2x8x1xf32> to vector<2x8x32xf32>
    %57 = arith.subf %47, %56 : vector<2x8x32xf32>
    %58 = arith.mulf %57, %57 : vector<2x8x32xf32>
    %cst_32 = arith.constant dense<0.000000e+00> : vector<2x8xf32>
    %59 = vector.multi_reduction <add>, %58, %cst_32 [2] : vector<2x8x32xf32> to vector<2x8xf32>
    %60 = vector.shape_cast %59 : vector<2x8xf32> to vector<2x8x1xf32>
    %cst_33 = arith.constant 3.200000e+01 : f32
    %61 = vector.broadcast %cst_33 : f32 to vector<2x8x1xf32>
    %62 = arith.divf %60, %61 : vector<2x8x1xf32>
    %63 = vector.broadcast %55 : vector<2x8x1xf32> to vector<2x8x32xf32>
    %64 = arith.subf %47, %63 : vector<2x8x32xf32>
    %cst_34 = arith.constant 9.99999996E-13 : f32
    %65 = vector.broadcast %cst_34 : f32 to vector<2x8x1xf32>
    %66 = arith.addf %62, %65 : vector<2x8x1xf32>
    %67 = math.rsqrt %66 : vector<2x8x1xf32>
    %68 = vector.broadcast %67 : vector<2x8x1xf32> to vector<2x8x32xf32>
    %69 = arith.mulf %64, %68 : vector<2x8x32xf32>
    %70 = vector.shape_cast %49 : vector<32xf32> to vector<1x1x32xf32>
    %71 = vector.broadcast %70 : vector<1x1x32xf32> to vector<2x8x32xf32>
    %72 = arith.mulf %69, %71 : vector<2x8x32xf32>
    %73 = vector.shape_cast %51 : vector<32xf32> to vector<1x1x32xf32>
    %74 = vector.broadcast %73 : vector<1x1x32xf32> to vector<2x8x32xf32>
    %75 = arith.addf %72, %74 : vector<2x8x32xf32>
    %76 = vector.shape_cast %75 : vector<2x8x32xf32> to vector<16x32xf32>
    %c0_35 = arith.constant 0 : index
    %c0_36 = arith.constant 0 : index
    %c0_37 = arith.constant 0 : index
    %77 = vector.load %arg7[%c0_35, %c0_36, %c0_37] : memref<2x32x64xf32, #tpu.memory_space<vmem>>, vector<1x32x64xf32>
    %78 = vector.shape_cast %77 : vector<1x32x64xf32> to vector<32x64xf32>
    %cst_38 = arith.constant dense<0.000000e+00> : vector<16x64xf32>
    %79 = tpu.matmul %76, %78, %cst_38 {dimension_numbers = #tpu.dot_dimension_numbers<[1], [0], [0], [1], [0, 0, 1, 1], [], []>} : vector<16x32xf32>, vector<32x64xf32>, vector<16x64xf32> -> vector<16x64xf32>
    %80 = arith.mulf %79, %79 : vector<16x64xf32>
    %81 = arith.mulf %79, %80 : vector<16x64xf32>
    %cst_39 = arith.constant 4.471500e-02 : f32
    %82 = vector.broadcast %cst_39 : f32 to vector<16x64xf32>
    %83 = arith.mulf %82, %81 : vector<16x64xf32>
    %84 = arith.addf %79, %83 : vector<16x64xf32>
    %cst_40 = arith.constant 0.797884583 : f32
    %85 = vector.broadcast %cst_40 : f32 to vector<16x64xf32>
    %86 = arith.mulf %85, %84 : vector<16x64xf32>
    %87 = math.tanh %86 : vector<16x64xf32>
    %cst_41 = arith.constant 1.000000e+00 : f32
    %88 = vector.broadcast %cst_41 : f32 to vector<16x64xf32>
    %89 = arith.addf %88, %87 : vector<16x64xf32>
    %cst_42 = arith.constant 5.000000e-01 : f32
    %90 = vector.broadcast %cst_42 : f32 to vector<16x64xf32>
    %91 = arith.mulf %90, %89 : vector<16x64xf32>
    %92 = arith.mulf %79, %91 : vector<16x64xf32>
    %c0_43 = arith.constant 0 : index
    %c0_44 = arith.constant 0 : index
    %c0_45 = arith.constant 0 : index
    %93 = vector.load %arg8[%c0_43, %c0_44, %c0_45] : memref<2x64x32xf32, #tpu.memory_space<vmem>>, vector<1x64x32xf32>
    %94 = vector.shape_cast %93 : vector<1x64x32xf32> to vector<64x32xf32>
    %cst_46 = arith.constant dense<0.000000e+00> : vector<16x32xf32>
    %95 = tpu.matmul %92, %94, %cst_46 {dimension_numbers = #tpu.dot_dimension_numbers<[1], [0], [0], [1], [0, 0, 1, 1], [], []>} : vector<16x64xf32>, vector<64x32xf32>, vector<16x32xf32> -> vector<16x32xf32>
    %96 = vector.shape_cast %95 : vector<16x32xf32> to vector<2x8x32xf32>
    %97 = arith.addf %75, %96 : vector<2x8x32xf32>
    %c0_47 = arith.constant 0 : index
    %c0_48 = arith.constant 0 : index
    %98 = vector.load %arg11[%c0_47, %c0_48] : memref<2x32xf32, #tpu.memory_space<vmem>>, vector<1x32xf32>
    %99 = vector.shape_cast %98 : vector<1x32xf32> to vector<32xf32>
    %c0_49 = arith.constant 0 : index
    %c0_50 = arith.constant 0 : index
    %100 = vector.load %arg12[%c0_49, %c0_50] : memref<2x32xf32, #tpu.memory_space<vmem>>, vector<1x32xf32>
    %101 = vector.shape_cast %100 : vector<1x32xf32> to vector<32xf32>
    %cst_51 = arith.constant dense<0.000000e+00> : vector<2x8xf32>
    %102 = vector.multi_reduction <add>, %97, %cst_51 [2] : vector<2x8x32xf32> to vector<2x8xf32>
    %103 = vector.shape_cast %102 : vector<2x8xf32> to vector<2x8x1xf32>
    %cst_52 = arith.constant 3.200000e+01 : f32
    %104 = vector.broadcast %cst_52 : f32 to vector<2x8x1xf32>
    %105 = arith.divf %103, %104 : vector<2x8x1xf32>
    %106 = vector.broadcast %105 : vector<2x8x1xf32> to vector<2x8x32xf32>
    %107 = arith.subf %97, %106 : vector<2x8x32xf32>
    %108 = arith.mulf %107, %107 : vector<2x8x32xf32>
    %cst_53 = arith.constant dense<0.000000e+00> : vector<2x8xf32>
    %109 = vector.multi_reduction <add>, %108, %cst_53 [2] : vector<2x8x32xf32> to vector<2x8xf32>
    %110 = vector.shape_cast %109 : vector<2x8xf32> to vector<2x8x1xf32>
    %cst_54 = arith.constant 3.200000e+01 : f32
    %111 = vector.broadcast %cst_54 : f32 to vector<2x8x1xf32>
    %112 = arith.divf %110, %111 : vector<2x8x1xf32>
    %113 = vector.broadcast %105 : vector<2x8x1xf32> to vector<2x8x32xf32>
    %114 = arith.subf %97, %113 : vector<2x8x32xf32>
    %cst_55 = arith.constant 9.99999996E-13 : f32
    %115 = vector.broadcast %cst_55 : f32 to vector<2x8x1xf32>
    %116 = arith.addf %112, %115 : vector<2x8x1xf32>
    %117 = math.rsqrt %116 : vector<2x8x1xf32>
    %118 = vector.broadcast %117 : vector<2x8x1xf32> to vector<2x8x32xf32>
    %119 = arith.mulf %114, %118 : vector<2x8x32xf32>
    %120 = vector.shape_cast %99 : vector<32xf32> to vector<1x1x32xf32>
    %121 = vector.broadcast %120 : vector<1x1x32xf32> to vector<2x8x32xf32>
    %122 = arith.mulf %119, %121 : vector<2x8x32xf32>
    %123 = vector.shape_cast %101 : vector<32xf32> to vector<1x1x32xf32>
    %124 = vector.broadcast %123 : vector<1x1x32xf32> to vector<2x8x32xf32>
    %125 = arith.addf %122, %124 : vector<2x8x32xf32>
    %126 = vector.shape_cast %125 : vector<2x8x32xf32> to vector<16x32xf32>
    %c1 = arith.constant 1 : index
    %c0_56 = arith.constant 0 : index
    %c0_57 = arith.constant 0 : index
    %127 = vector.load %arg5[%c1, %c0_56, %c0_57] : memref<2x32x32xf32, #tpu.memory_space<vmem>>, vector<1x32x32xf32>
    %128 = vector.shape_cast %127 : vector<1x32x32xf32> to vector<32x32xf32>
    %cst_58 = arith.constant dense<0.000000e+00> : vector<16x32xf32>
    %129 = tpu.matmul %126, %128, %cst_58 {dimension_numbers = #tpu.dot_dimension_numbers<[1], [0], [0], [1], [0, 0, 1, 1], [], []>} : vector<16x32xf32>, vector<32x32xf32>, vector<16x32xf32> -> vector<16x32xf32>
    %130 = vector.shape_cast %129 : vector<16x32xf32> to vector<2x8x32xf32>
    %131 = vector.extract_strided_slice %7 {offsets = [0, 64], sizes = [32, 32], strides = [1, 1]} : vector<32x320xf32> to vector<32x32xf32>
    %132 = vector.shape_cast %131 : vector<32x32xf32> to vector<2x16x32xf32>
    %133 = vector.extract_strided_slice %7 {offsets = [0, 96], sizes = [32, 32], strides = [1, 1]} : vector<32x320xf32> to vector<32x32xf32>
    %134 = vector.shape_cast %133 : vector<32x32xf32> to vector<2x16x32xf32>
    "tpu.trace_start"() <{level = 10 : i32, message = "bqh,bsh->bqs"}> : () -> ()
    %cst_59 = arith.constant dense<0.000000e+00> : vector<2x8x16xf32>
    %135 = tpu.matmul %130, %132, %cst_59 {dimension_numbers = #tpu.dot_dimension_numbers<[2], [2], [1], [1], [0, 0, 0, 1, 1, 1], [0], [0]>} : vector<2x8x32xf32>, vector<2x16x32xf32>, vector<2x8x16xf32> -> vector<2x8x16xf32>
    "tpu.trace_stop"() : () -> ()
    %cst_60 = arith.constant 0.176776692 : f32
    %136 = vector.broadcast %cst_60 : f32 to vector<2x8x16xf32>
    %137 = arith.mulf %135, %136 : vector<2x8x16xf32>
    %138 = vector.shape_cast %11 : vector<2x16xf32> to vector<2x1x16xf32>
    %139 = vector.broadcast %138 : vector<2x1x16xf32> to vector<2x8x16xf32>
    %140 = arith.addf %137, %139 : vector<2x8x16xf32>
    %cst_61 = arith.constant dense<0xFF800000> : vector<2x8xf32>
    %141 = vector.multi_reduction <maximumf>, %140, %cst_61 [2] : vector<2x8x16xf32> to vector<2x8xf32>
    %142 = vector.shape_cast %141 : vector<2x8xf32> to vector<2x8x1xf32>
    %143 = vector.broadcast %142 : vector<2x8x1xf32> to vector<2x8x16xf32>
    %144 = arith.subf %140, %143 : vector<2x8x16xf32>
    %145 = math.exp %144 : vector<2x8x16xf32>
    %cst_62 = arith.constant dense<0.000000e+00> : vector<2x8xf32>
    %146 = vector.multi_reduction <add>, %145, %cst_62 [2] : vector<2x8x16xf32> to vector<2x8xf32>
    %147 = vector.shape_cast %146 : vector<2x8xf32> to vector<2x8x1xf32>
    %148 = tpu.reciprocal %147 {approx = true} : vector<2x8x1xf32> -> vector<2x8x1xf32>
    %149 = vector.broadcast %148 : vector<2x8x1xf32> to vector<2x8x16xf32>
    %150 = arith.mulf %145, %149 : vector<2x8x16xf32>
    "tpu.trace_start"() <{level = 10 : i32, message = "bqs,bsh->bqh"}> : () -> ()
    %cst_63 = arith.constant dense<0.000000e+00> : vector<2x8x32xf32>
    %151 = tpu.matmul %150, %134, %cst_63 {dimension_numbers = #tpu.dot_dimension_numbers<[2], [1], [1], [2], [0, 0, 0, 1, 1, 2], [0], [0]>} : vector<2x8x16xf32>, vector<2x16x32xf32>, vector<2x8x32xf32> -> vector<2x8x32xf32>
    "tpu.trace_stop"() : () -> ()
    %152 = vector.shape_cast %151 : vector<2x8x32xf32> to vector<16x32xf32>
    %c1_64 = arith.constant 1 : index
    %c0_65 = arith.constant 0 : index
    %c0_66 = arith.constant 0 : index
    %153 = vector.load %arg6[%c1_64, %c0_65, %c0_66] : memref<2x32x32xf32, #tpu.memory_space<vmem>>, vector<1x32x32xf32>
    %154 = vector.shape_cast %153 : vector<1x32x32xf32> to vector<32x32xf32>
    %cst_67 = arith.constant dense<0.000000e+00> : vector<16x32xf32>
    %155 = tpu.matmul %152, %154, %cst_67 {dimension_numbers = #tpu.dot_dimension_numbers<[1], [0], [0], [1], [0, 0, 1, 1], [], []>} : vector<16x32xf32>, vector<32x32xf32>, vector<16x32xf32> -> vector<16x32xf32>
    %156 = vector.shape_cast %155 : vector<16x32xf32> to vector<2x8x32xf32>
    %157 = arith.addf %125, %156 : vector<2x8x32xf32>
    %c1_68 = arith.constant 1 : index
    %c0_69 = arith.constant 0 : index
    %158 = vector.load %arg9[%c1_68, %c0_69] : memref<2x32xf32, #tpu.memory_space<vmem>>, vector<1x32xf32>
    %159 = vector.shape_cast %158 : vector<1x32xf32> to vector<32xf32>
    %c1_70 = arith.constant 1 : index
    %c0_71 = arith.constant 0 : index
    %160 = vector.load %arg10[%c1_70, %c0_71] : memref<2x32xf32, #tpu.memory_space<vmem>>, vector<1x32xf32>
    %161 = vector.shape_cast %160 : vector<1x32xf32> to vector<32xf32>
    %cst_72 = arith.constant dense<0.000000e+00> : vector<2x8xf32>
    %162 = vector.multi_reduction <add>, %157, %cst_72 [2] : vector<2x8x32xf32> to vector<2x8xf32>
    %163 = vector.shape_cast %162 : vector<2x8xf32> to vector<2x8x1xf32>
    %cst_73 = arith.constant 3.200000e+01 : f32
    %164 = vector.broadcast %cst_73 : f32 to vector<2x8x1xf32>
    %165 = arith.divf %163, %164 : vector<2x8x1xf32>
    %166 = vector.broadcast %165 : vector<2x8x1xf32> to vector<2x8x32xf32>
    %167 = arith.subf %157, %166 : vector<2x8x32xf32>
    %168 = arith.mulf %167, %167 : vector<2x8x32xf32>
    %cst_74 = arith.constant dense<0.000000e+00> : vector<2x8xf32>
    %169 = vector.multi_reduction <add>, %168, %cst_74 [2] : vector<2x8x32xf32> to vector<2x8xf32>
    %170 = vector.shape_cast %169 : vector<2x8xf32> to vector<2x8x1xf32>
    %cst_75 = arith.constant 3.200000e+01 : f32
    %171 = vector.broadcast %cst_75 : f32 to vector<2x8x1xf32>
    %172 = arith.divf %170, %171 : vector<2x8x1xf32>
    %173 = vector.broadcast %165 : vector<2x8x1xf32> to vector<2x8x32xf32>
    %174 = arith.subf %157, %173 : vector<2x8x32xf32>
    %cst_76 = arith.constant 9.99999996E-13 : f32
    %175 = vector.broadcast %cst_76 : f32 to vector<2x8x1xf32>
    %176 = arith.addf %172, %175 : vector<2x8x1xf32>
    %177 = math.rsqrt %176 : vector<2x8x1xf32>
    %178 = vector.broadcast %177 : vector<2x8x1xf32> to vector<2x8x32xf32>
    %179 = arith.mulf %174, %178 : vector<2x8x32xf32>
    %180 = vector.shape_cast %159 : vector<32xf32> to vector<1x1x32xf32>
    %181 = vector.broadcast %180 : vector<1x1x32xf32> to vector<2x8x32xf32>
    %182 = arith.mulf %179, %181 : vector<2x8x32xf32>
    %183 = vector.shape_cast %161 : vector<32xf32> to vector<1x1x32xf32>
    %184 = vector.broadcast %183 : vector<1x1x32xf32> to vector<2x8x32xf32>
    %185 = arith.addf %182, %184 : vector<2x8x32xf32>
    %186 = vector.shape_cast %185 : vector<2x8x32xf32> to vector<16x32xf32>
    %c1_77 = arith.constant 1 : index
    %c0_78 = arith.constant 0 : index
    %c0_79 = arith.constant 0 : index
    %187 = vector.load %arg7[%c1_77, %c0_78, %c0_79] : memref<2x32x64xf32, #tpu.memory_space<vmem>>, vector<1x32x64xf32>
    %188 = vector.shape_cast %187 : vector<1x32x64xf32> to vector<32x64xf32>
    %cst_80 = arith.constant dense<0.000000e+00> : vector<16x64xf32>
    %189 = tpu.matmul %186, %188, %cst_80 {dimension_numbers = #tpu.dot_dimension_numbers<[1], [0], [0], [1], [0, 0, 1, 1], [], []>} : vector<16x32xf32>, vector<32x64xf32>, vector<16x64xf32> -> vector<16x64xf32>
    %190 = arith.mulf %189, %189 : vector<16x64xf32>
    %191 = arith.mulf %189, %190 : vector<16x64xf32>
    %cst_81 = arith.constant 4.471500e-02 : f32
    %192 = vector.broadcast %cst_81 : f32 to vector<16x64xf32>
    %193 = arith.mulf %192, %191 : vector<16x64xf32>
    %194 = arith.addf %189, %193 : vector<16x64xf32>
    %cst_82 = arith.constant 0.797884583 : f32
    %195 = vector.broadcast %cst_82 : f32 to vector<16x64xf32>
    %196 = arith.mulf %195, %194 : vector<16x64xf32>
    %197 = math.tanh %196 : vector<16x64xf32>
    %cst_83 = arith.constant 1.000000e+00 : f32
    %198 = vector.broadcast %cst_83 : f32 to vector<16x64xf32>
    %199 = arith.addf %198, %197 : vector<16x64xf32>
    %cst_84 = arith.constant 5.000000e-01 : f32
    %200 = vector.broadcast %cst_84 : f32 to vector<16x64xf32>
    %201 = arith.mulf %200, %199 : vector<16x64xf32>
    %202 = arith.mulf %189, %201 : vector<16x64xf32>
    %c1_85 = arith.constant 1 : index
    %c0_86 = arith.constant 0 : index
    %c0_87 = arith.constant 0 : index
    %203 = vector.load %arg8[%c1_85, %c0_86, %c0_87] : memref<2x64x32xf32, #tpu.memory_space<vmem>>, vector<1x64x32xf32>
    %204 = vector.shape_cast %203 : vector<1x64x32xf32> to vector<64x32xf32>
    %cst_88 = arith.constant dense<0.000000e+00> : vector<16x32xf32>
    %205 = tpu.matmul %202, %204, %cst_88 {dimension_numbers = #tpu.dot_dimension_numbers<[1], [0], [0], [1], [0, 0, 1, 1], [], []>} : vector<16x64xf32>, vector<64x32xf32>, vector<16x32xf32> -> vector<16x32xf32>
    %206 = vector.shape_cast %205 : vector<16x32xf32> to vector<2x8x32xf32>
    %207 = arith.addf %185, %206 : vector<2x8x32xf32>
    %c1_89 = arith.constant 1 : index
    %c0_90 = arith.constant 0 : index
    %208 = vector.load %arg11[%c1_89, %c0_90] : memref<2x32xf32, #tpu.memory_space<vmem>>, vector<1x32xf32>
    %209 = vector.shape_cast %208 : vector<1x32xf32> to vector<32xf32>
    %c1_91 = arith.constant 1 : index
    %c0_92 = arith.constant 0 : index
    %210 = vector.load %arg12[%c1_91, %c0_92] : memref<2x32xf32, #tpu.memory_space<vmem>>, vector<1x32xf32>
    %211 = vector.shape_cast %210 : vector<1x32xf32> to vector<32xf32>
    %cst_93 = arith.constant dense<0.000000e+00> : vector<2x8xf32>
    %212 = vector.multi_reduction <add>, %207, %cst_93 [2] : vector<2x8x32xf32> to vector<2x8xf32>
    %213 = vector.shape_cast %212 : vector<2x8xf32> to vector<2x8x1xf32>
    %cst_94 = arith.constant 3.200000e+01 : f32
    %214 = vector.broadcast %cst_94 : f32 to vector<2x8x1xf32>
    %215 = arith.divf %213, %214 : vector<2x8x1xf32>
    %216 = vector.broadcast %215 : vector<2x8x1xf32> to vector<2x8x32xf32>
    %217 = arith.subf %207, %216 : vector<2x8x32xf32>
    %218 = arith.mulf %217, %217 : vector<2x8x32xf32>
    %cst_95 = arith.constant dense<0.000000e+00> : vector<2x8xf32>
    %219 = vector.multi_reduction <add>, %218, %cst_95 [2] : vector<2x8x32xf32> to vector<2x8xf32>
    %220 = vector.shape_cast %219 : vector<2x8xf32> to vector<2x8x1xf32>
    %cst_96 = arith.constant 3.200000e+01 : f32
    %221 = vector.broadcast %cst_96 : f32 to vector<2x8x1xf32>
    %222 = arith.divf %220, %221 : vector<2x8x1xf32>
    %223 = vector.broadcast %215 : vector<2x8x1xf32> to vector<2x8x32xf32>
    %224 = arith.subf %207, %223 : vector<2x8x32xf32>
    %cst_97 = arith.constant 9.99999996E-13 : f32
    %225 = vector.broadcast %cst_97 : f32 to vector<2x8x1xf32>
    %226 = arith.addf %222, %225 : vector<2x8x1xf32>
    %227 = math.rsqrt %226 : vector<2x8x1xf32>
    %228 = vector.broadcast %227 : vector<2x8x1xf32> to vector<2x8x32xf32>
    %229 = arith.mulf %224, %228 : vector<2x8x32xf32>
    %230 = vector.shape_cast %209 : vector<32xf32> to vector<1x1x32xf32>
    %231 = vector.broadcast %230 : vector<1x1x32xf32> to vector<2x8x32xf32>
    %232 = arith.mulf %229, %231 : vector<2x8x32xf32>
    %233 = vector.shape_cast %211 : vector<32xf32> to vector<1x1x32xf32>
    %234 = vector.broadcast %233 : vector<1x1x32xf32> to vector<2x8x32xf32>
    %235 = arith.addf %232, %234 : vector<2x8x32xf32>
    %236 = vector.shape_cast %235 : vector<2x8x32xf32> to vector<16x32xf32>
    %c0_98 = arith.constant 0 : index
    %c0_99 = arith.constant 0 : index
    %237 = vector.load %arg15[%c0_98, %c0_99] : memref<32x196xf32, #tpu.memory_space<vmem>>, vector<32x196xf32>
    %cst_100 = arith.constant dense<0.000000e+00> : vector<16x196xf32>
    %238 = tpu.matmul %236, %237, %cst_100 {dimension_numbers = #tpu.dot_dimension_numbers<[1], [0], [0], [1], [0, 0, 1, 1], [], []>} : vector<16x32xf32>, vector<32x196xf32>, vector<16x196xf32> -> vector<16x196xf32>
    %c0_101 = arith.constant 0 : index
    %c0_102 = arith.constant 0 : index
    %239 = vector.load %arg16[%c0_101, %c0_102] : memref<1x196xf32, #tpu.memory_space<vmem>>, vector<1x196xf32>
    %240 = vector.broadcast %239 : vector<1x196xf32> to vector<16x196xf32>
    %241 = arith.addf %238, %240 : vector<16x196xf32>
    %242 = vector.extract_strided_slice %241 {offsets = [0, 0], sizes = [16, 192], strides = [1, 1]} : vector<16x196xf32> to vector<16x192xf32>
    %243 = vector.shape_cast %242 : vector<16x192xf32> to vector<2x8x192xf32>
    %244 = vector.extract_strided_slice %241 {offsets = [0, 192], sizes = [16, 4], strides = [1, 1]} : vector<16x196xf32> to vector<16x4xf32>
    %245 = vector.shape_cast %244 : vector<16x4xf32> to vector<2x8x4xf32>
    %246 = vector.extract_strided_slice %7 {offsets = [0, 128], sizes = [32, 192], strides = [1, 1]} : vector<32x320xf32> to vector<32x192xf32>
    %c0_103 = arith.constant 0 : index
    %c0_104 = arith.constant 0 : index
    %247 = vector.load %arg14[%c0_103, %c0_104] : memref<1x192xf32, #tpu.memory_space<vmem>>, vector<1x192xf32>
    %248 = vector.broadcast %247 : vector<1x192xf32> to vector<32x192xf32>
    %249 = arith.addf %246, %248 : vector<32x192xf32>
    %250 = vector.shape_cast %249 : vector<32x192xf32> to vector<2x16x192xf32>
    %251 = vector.shape_cast %243 : vector<2x8x192xf32> to vector<2x8x1x192xf32>
    %252 = vector.shape_cast %250 : vector<2x16x192xf32> to vector<2x1x16x192xf32>
    %253 = vector.broadcast %251 : vector<2x8x1x192xf32> to vector<2x8x16x192xf32>
    %254 = vector.broadcast %252 : vector<2x1x16x192xf32> to vector<2x8x16x192xf32>
    %255 = arith.addf %253, %254 : vector<2x8x16x192xf32>
    %256 = math.tanh %255 : vector<2x8x16x192xf32>
    %c0_105 = arith.constant 0 : index
    %c0_106 = arith.constant 0 : index
    %257 = vector.load %arg17[%c0_105, %c0_106] : memref<1x192xf32, #tpu.memory_space<vmem>>, vector<1x192xf32>
    %258 = vector.shape_cast %257 : vector<1x192xf32> to vector<1x1x1x192xf32>
    %259 = vector.broadcast %258 : vector<1x1x1x192xf32> to vector<2x8x16x192xf32>
    %260 = arith.mulf %256, %259 : vector<2x8x16x192xf32>
    %261 = vector.shape_cast %1 : vector<2x16xf32> to vector<2x1x16xf32>
    %cst_107 = arith.constant 5.000000e-01 : f32
    %262 = vector.broadcast %cst_107 : f32 to vector<2x1x16xf32>
    %263 = arith.cmpf ogt, %261, %262 : vector<2x1x16xf32>
    %264 = vector.extract_strided_slice %260 {offsets = [0, 0, 0, 0], sizes = [2, 8, 16, 32], strides = [1, 1, 1, 1]} : vector<2x8x16x192xf32> to vector<2x8x16x32xf32>
    %cst_108 = arith.constant dense<0.000000e+00> : vector<2x8x16xf32>
    %265 = vector.multi_reduction <add>, %264, %cst_108 [3] : vector<2x8x16x32xf32> to vector<2x8x16xf32>
    %cst_109 = arith.constant -1.000000e+04 : f32
    %266 = vector.shape_cast %263 : vector<2x1x16xi1> to vector<2x1x16xi1>
    %267 = vector.broadcast %266 : vector<2x1x16xi1> to vector<2x8x16xi1>
    %268 = vector.broadcast %cst_109 : f32 to vector<2x8x16xf32>
    %269 = arith.select %267, %265, %268 : vector<2x8x16xi1>, vector<2x8x16xf32>
    %270 = vector.extract_strided_slice %260 {offsets = [0, 0, 0, 32], sizes = [2, 8, 16, 32], strides = [1, 1, 1, 1]} : vector<2x8x16x192xf32> to vector<2x8x16x32xf32>
    %cst_110 = arith.constant dense<0.000000e+00> : vector<2x8x16xf32>
    %271 = vector.multi_reduction <add>, %270, %cst_110 [3] : vector<2x8x16x32xf32> to vector<2x8x16xf32>
    %cst_111 = arith.constant -1.000000e+04 : f32
    %272 = vector.shape_cast %263 : vector<2x1x16xi1> to vector<2x1x16xi1>
    %273 = vector.broadcast %272 : vector<2x1x16xi1> to vector<2x8x16xi1>
    %274 = vector.broadcast %cst_111 : f32 to vector<2x8x16xf32>
    %275 = arith.select %273, %271, %274 : vector<2x8x16xi1>, vector<2x8x16xf32>
    %276 = vector.extract_strided_slice %260 {offsets = [0, 0, 0, 64], sizes = [2, 8, 16, 32], strides = [1, 1, 1, 1]} : vector<2x8x16x192xf32> to vector<2x8x16x32xf32>
    %cst_112 = arith.constant dense<0.000000e+00> : vector<2x8x16xf32>
    %277 = vector.multi_reduction <add>, %276, %cst_112 [3] : vector<2x8x16x32xf32> to vector<2x8x16xf32>
    %cst_113 = arith.constant -1.000000e+04 : f32
    %278 = vector.shape_cast %263 : vector<2x1x16xi1> to vector<2x1x16xi1>
    %279 = vector.broadcast %278 : vector<2x1x16xi1> to vector<2x8x16xi1>
    %280 = vector.broadcast %cst_113 : f32 to vector<2x8x16xf32>
    %281 = arith.select %279, %277, %280 : vector<2x8x16xi1>, vector<2x8x16xf32>
    %282 = vector.extract_strided_slice %260 {offsets = [0, 0, 0, 96], sizes = [2, 8, 16, 32], strides = [1, 1, 1, 1]} : vector<2x8x16x192xf32> to vector<2x8x16x32xf32>
    %cst_114 = arith.constant dense<0.000000e+00> : vector<2x8x16xf32>
    %283 = vector.multi_reduction <add>, %282, %cst_114 [3] : vector<2x8x16x32xf32> to vector<2x8x16xf32>
    %cst_115 = arith.constant -1.000000e+04 : f32
    %284 = vector.shape_cast %263 : vector<2x1x16xi1> to vector<2x1x16xi1>
    %285 = vector.broadcast %284 : vector<2x1x16xi1> to vector<2x8x16xi1>
    %286 = vector.broadcast %cst_115 : f32 to vector<2x8x16xf32>
    %287 = arith.select %285, %283, %286 : vector<2x8x16xi1>, vector<2x8x16xf32>
    %288 = vector.extract_strided_slice %260 {offsets = [0, 0, 0, 128], sizes = [2, 8, 16, 32], strides = [1, 1, 1, 1]} : vector<2x8x16x192xf32> to vector<2x8x16x32xf32>
    %cst_116 = arith.constant dense<0.000000e+00> : vector<2x8x16xf32>
    %289 = vector.multi_reduction <add>, %288, %cst_116 [3] : vector<2x8x16x32xf32> to vector<2x8x16xf32>
    %cst_117 = arith.constant -1.000000e+04 : f32
    %290 = vector.shape_cast %263 : vector<2x1x16xi1> to vector<2x1x16xi1>
    %291 = vector.broadcast %290 : vector<2x1x16xi1> to vector<2x8x16xi1>
    %292 = vector.broadcast %cst_117 : f32 to vector<2x8x16xf32>
    %293 = arith.select %291, %289, %292 : vector<2x8x16xi1>, vector<2x8x16xf32>
    %294 = vector.extract_strided_slice %260 {offsets = [0, 0, 0, 160], sizes = [2, 8, 16, 32], strides = [1, 1, 1, 1]} : vector<2x8x16x192xf32> to vector<2x8x16x32xf32>
    %cst_118 = arith.constant dense<0.000000e+00> : vector<2x8x16xf32>
    %295 = vector.multi_reduction <add>, %294, %cst_118 [3] : vector<2x8x16x32xf32> to vector<2x8x16xf32>
    %cst_119 = arith.constant -1.000000e+04 : f32
    %296 = vector.shape_cast %263 : vector<2x1x16xi1> to vector<2x1x16xi1>
    %297 = vector.broadcast %296 : vector<2x1x16xi1> to vector<2x8x16xi1>
    %298 = vector.broadcast %cst_119 : f32 to vector<2x8x16xf32>
    %299 = arith.select %297, %295, %298 : vector<2x8x16xi1>, vector<2x8x16xf32>
    %cst_120 = arith.constant 0.000000e+00 : f32
    %300 = vector.broadcast %cst_120 : f32 to vector<2x8x28xf32>
    %301 = tpu.concatenate %269, %275, %281, %287, %293, %299, %245, %300 in 2 : vector<2x8x16xf32>, vector<2x8x16xf32>, vector<2x8x16xf32>, vector<2x8x16xf32>, vector<2x8x16xf32>, vector<2x8x16xf32>, vector<2x8x4xf32>, vector<2x8x28xf32> -> vector<2x8x128xf32>
    %c0_121 = arith.constant 0 : index
    %c0_122 = arith.constant 0 : index
    %c0_123 = arith.constant 0 : index
    %302 = vector.load %arg18[%c0_121, %c0_122, %c0_123] : memref<2x8x128xf32, #tpu.memory_space<vmem>>, vector<2x8x128xf32>
    tpu.vector_store %arg18[%c0_121, %c0_122, %c0_123], %301 {strides = array<i32>} : memref<2x8x128xf32, #tpu.memory_space<vmem>>, vector<2x8x128xf32>,
    return
  }
  func.func @transform_0(%arg0: i32) -> (i32, i32, i32) {
    %c0_i32 = arith.constant 0 : i32
    %c0_i32_0 = arith.constant 0 : i32
    %c0_i32_1 = arith.constant 0 : i32
    %c0_i32_2 = arith.constant 0 : i32
    return %c0_i32, %c0_i32_0, %c0_i32_1 : i32, i32, i32
  }
  func.func @transform_1(%arg0: i32) -> (i32, i32) {
    %c0_i32 = arith.constant 0 : i32
    %c0_i32_0 = arith.constant 0 : i32
    %c0_i32_1 = arith.constant 0 : i32
    return %c0_i32, %c0_i32_0 : i32, i32
  }
  func.func @transform_2(%arg0: i32) -> (i32, i32) {
    %c0_i32 = arith.constant 0 : i32
    %c0_i32_0 = arith.constant 0 : i32
    %c0_i32_1 = arith.constant 0 : i32
    return %c0_i32, %c0_i32_0 : i32, i32
  }
  func.func @transform_3(%arg0: i32) -> (i32, i32) {
    %c0_i32 = arith.constant 0 : i32
    %c0_i32_0 = arith.constant 0 : i32
    %c0_i32_1 = arith.constant 0 : i32
    return %c0_i32, %c0_i32_0 : i32, i32
  }
  func.func @transform_4(%arg0: i32) -> (i32, i32, i32) {
    %c0_i32 = arith.constant 0 : i32
    %c0_i32_0 = arith.constant 0 : i32
    %c0_i32_1 = arith.constant 0 : i32
    %c0_i32_2 = arith.constant 0 : i32
    return %c0_i32, %c0_i32_0, %c0_i32_1 : i32, i32, i32
  }
  func.func @transform_5(%arg0: i32) -> (i32, i32, i32) {
    %c0_i32 = arith.constant 0 : i32
    %c0_i32_0 = arith.constant 0 : i32
    %c0_i32_1 = arith.constant 0 : i32
    %c0_i32_2 = arith.constant 0 : i32
    return %c0_i32, %c0_i32_0, %c0_i32_1 : i32, i32, i32
  }
  func.func @transform_6(%arg0: i32) -> (i32, i32, i32) {
    %c0_i32 = arith.constant 0 : i32
    %c0_i32_0 = arith.constant 0 : i32
    %c0_i32_1 = arith.constant 0 : i32
    %c0_i32_2 = arith.constant 0 : i32
    return %c0_i32, %c0_i32_0, %c0_i32_1 : i32, i32, i32
  }
  func.func @transform_7(%arg0: i32) -> (i32, i32, i32) {
    %c0_i32 = arith.constant 0 : i32
    %c0_i32_0 = arith.constant 0 : i32
    %c0_i32_1 = arith.constant 0 : i32
    %c0_i32_2 = arith.constant 0 : i32
    return %c0_i32, %c0_i32_0, %c0_i32_1 : i32, i32, i32
  }
  func.func @transform_8(%arg0: i32) -> (i32, i32) {
    %c0_i32 = arith.constant 0 : i32
    %c0_i32_0 = arith.constant 0 : i32
    %c0_i32_1 = arith.constant 0 : i32
    return %c0_i32, %c0_i32_0 : i32, i32
  }
  func.func @transform_9(%arg0: i32) -> (i32, i32) {
    %c0_i32 = arith.constant 0 : i32
    %c0_i32_0 = arith.constant 0 : i32
    %c0_i32_1 = arith.constant 0 : i32
    return %c0_i32, %c0_i32_0 : i32, i32
  }
  func.func @transform_10(%arg0: i32) -> (i32, i32) {
    %c0_i32 = arith.constant 0 : i32
    %c0_i32_0 = arith.constant 0 : i32
    %c0_i32_1 = arith.constant 0 : i32
    return %c0_i32, %c0_i32_0 : i32, i32
  }
  func.func @transform_11(%arg0: i32) -> (i32, i32) {
    %c0_i32 = arith.constant 0 : i32
    %c0_i32_0 = arith.constant 0 : i32
    %c0_i32_1 = arith.constant 0 : i32
    return %c0_i32, %c0_i32_0 : i32, i32
  }
  func.func @transform_12(%arg0: i32) -> (i32, i32) {
    %c0_i32 = arith.constant 0 : i32
    %c0_i32_0 = arith.constant 0 : i32
    %c0_i32_1 = arith.constant 0 : i32
    return %c0_i32, %c0_i32_0 : i32, i32
  }
  func.func @transform_13(%arg0: i32) -> (i32, i32) {
    %c0_i32 = arith.constant 0 : i32
    %c0_i32_0 = arith.constant 0 : i32
    %c0_i32_1 = arith.constant 0 : i32
    return %c0_i32, %c0_i32_0 : i32, i32
  }
  func.func @transform_14(%arg0: i32) -> (i32, i32) {
    %c0_i32 = arith.constant 0 : i32
    %c0_i32_0 = arith.constant 0 : i32
    %c0_i32_1 = arith.constant 0 : i32
    return %c0_i32, %c0_i32_0 : i32, i32
  }
  func.func @transform_15(%arg0: i32) -> (i32, i32) {
    %c0_i32 = arith.constant 0 : i32
    %c0_i32_0 = arith.constant 0 : i32
    %c0_i32_1 = arith.constant 0 : i32
    return %c0_i32, %c0_i32_0 : i32, i32
  }
  func.func @transform_16(%arg0: i32) -> (i32, i32) {
    %c0_i32 = arith.constant 0 : i32
    %c0_i32_0 = arith.constant 0 : i32
    %c0_i32_1 = arith.constant 0 : i32
    return %c0_i32, %c0_i32_0 : i32, i32
  }
  func.func @transform_17(%arg0: i32) -> (i32, i32, i32) {
    %c0_i32 = arith.constant 0 : i32
    %c0_i32_0 = arith.constant 0 : i32
    %c0_i32_1 = arith.constant 0 : i32
    %c0_i32_2 = arith.constant 0 : i32
    return %c0_i32, %c0_i32_0, %c0_i32_1 : i32, i32, i32
  }
}

</mosaic_0001>

<llo_original>
// kernel: setpred4re_sub_absa_forward.1
$region0: #{setpred4re_sub_absa_forward.1}
  #allocation0 [shape = 'u32[]', space=smem, size = 0x4, offset = 0x4, fixed_abs, tag = 'smem constant byte address 0x4 - core index']
  #allocation1 [shape = 'u32[144,128]{1,0:T(1,128)}', space=vmem, size = 0x12000, scoped, tag = 'internal scratch']
  %s0 = inlined_call_operand.vmem [shape: f32[2,16,32], index: 0, kind: input, shape index: {}]
  %s1 = inlined_call_operand.vmem [shape: f32[2,16], index: 1, kind: input, shape index: {}]
  %s2 = inlined_call_operand.vmem [shape: f32[8,32], index: 2, kind: input, shape index: {}]
  %s3 = inlined_call_operand.vmem [shape: f32[32,32], index: 3, kind: input, shape index: {}]
  %s4 = inlined_call_operand.vmem [shape: f32[2,32,32], index: 4, kind: input, shape index: {}]
  %s5 = inlined_call_operand.vmem [shape: f32[2,32,32], index: 5, kind: input, shape index: {}]
  %s6 = inlined_call_operand.vmem [shape: f32[2,32,64], index: 6, kind: input, shape index: {}]
  %s7 = inlined_call_operand.vmem [shape: f32[2,64,32], index: 7, kind: input, shape index: {}]
  %s8 = inlined_call_operand.vmem [shape: f32[2,32], index: 8, kind: input, shape index: {}]
  %s9 = inlined_call_operand.vmem [shape: f32[2,32], index: 9, kind: input, shape index: {}]
  %s10 = inlined_call_operand.vmem [shape: f32[2,32], index: 10, kind: input, shape index: {}]
  %s11 = inlined_call_operand.vmem [shape: f32[2,32], index: 11, kind: input, shape index: {}]
  %s12 = inlined_call_operand.vmem [shape: f32[32,320], index: 12, kind: input, shape index: {}]
  %s13 = inlined_call_operand.vmem [shape: f32[1,192], index: 13, kind: input, shape index: {}]
  %s14 = inlined_call_operand.vmem [shape: f32[32,196], index: 14, kind: input, shape index: {}]
  %s15 = inlined_call_operand.vmem [shape: f32[1,196], index: 15, kind: input, shape index: {}]
  %s16 = inlined_call_operand.vmem [shape: f32[1,192], index: 16, kind: input, shape index: {}]
  %s17 = inlined_call_operand.vmem [shape: f32[2,8,128], index: 17, kind: output, shape index: {}]
  %s18 = sld [smem:[#allocation0]]
  $region78: #{setpred4re_sub_absa_forward.1} parent=0
    _
  %s20 = ssub.s32 1, %s18
  %s21 = scalar_select 0, %s20, %s18
  // Predicated region
  $region2: #{setpred4re_sub_absa_forward.1} parent=0 // pred_check
    _
  $region3: #{setpred4re_sub_absa_forward.1} parent=0 // pred_check_branch
    %23 = sbr.rel (0) target = $region5
  $region4: #{setpred4re_sub_absa_forward.1} parent=0 // pred_region
    _
  $region5: #{setpred4re_sub_absa_forward.1} parent=0 // pred_fallthru
    _
  // Predicated region
  $region6: #{setpred4re_sub_absa_forward.1} parent=0 // pred_check
    _
  $region7: #{setpred4re_sub_absa_forward.1} parent=0 // pred_check_branch
    %25 = sbr.rel (0) target = $region9
  $region8: #{setpred4re_sub_absa_forward.1} parent=0 // pred_region
    _
  $region9: #{setpred4re_sub_absa_forward.1} parent=0 // pred_fallthru
    _
  // Predicated region
  $region10: #{setpred4re_sub_absa_forward.1} parent=0 // pred_check
    _
  $region11: #{setpred4re_sub_absa_forward.1} parent=0 // pred_check_branch
    %27 = sbr.rel (0) target = $region13
  $region12: #{setpred4re_sub_absa_forward.1} parent=0 // pred_region
    _
  $region13: #{setpred4re_sub_absa_forward.1} parent=0 // pred_fallthru
    _
  // Predicated region
  $region14: #{setpred4re_sub_absa_forward.1} parent=0 // pred_check
    _
  $region15: #{setpred4re_sub_absa_forward.1} parent=0 // pred_check_branch
    %29 = sbr.rel (0) target = $region17
  $region16: #{setpred4re_sub_absa_forward.1} parent=0 // pred_region
    _
  $region17: #{setpred4re_sub_absa_forward.1} parent=0 // pred_fallthru
    _
  // Predicated region
  $region18: #{setpred4re_sub_absa_forward.1} parent=0 // pred_check
    _
  $region19: #{setpred4re_sub_absa_forward.1} parent=0 // pred_check_branch
    %31 = sbr.rel (0) target = $region21
  $region20: #{setpred4re_sub_absa_forward.1} parent=0 // pred_region
    _
  $region21: #{setpred4re_sub_absa_forward.1} parent=0 // pred_fallthru
    _
  // Predicated region
  $region22: #{setpred4re_sub_absa_forward.1} parent=0 // pred_check
    _
  $region23: #{setpred4re_sub_absa_forward.1} parent=0 // pred_check_branch
    %33 = sbr.rel (0) target = $region25
  $region24: #{setpred4re_sub_absa_forward.1} parent=0 // pred_region
    _
  $region25: #{setpred4re_sub_absa_forward.1} parent=0 // pred_fallthru
    _
  // Predicated region
  $region26: #{setpred4re_sub_absa_forward.1} parent=0 // pred_check
    _
  $region27: #{setpred4re_sub_absa_forward.1} parent=0 // pred_check_branch
    %35 = sbr.rel (0) target = $region29
  $region28: #{setpred4re_sub_absa_forward.1} parent=0 // pred_region
    _
  $region29: #{setpred4re_sub_absa_forward.1} parent=0 // pred_fallthru
    _
  // Predicated region
  $region30: #{setpred4re_sub_absa_forward.1} parent=0 // pred_check
    _
  $region31: #{setpred4re_sub_absa_forward.1} parent=0 // pred_check_branch
    %37 = sbr.rel (0) target = $region33
  $region32: #{setpred4re_sub_absa_forward.1} parent=0 // pred_region
    _
  $region33: #{setpred4re_sub_absa_forward.1} parent=0 // pred_fallthru
    _
  // Predicated region
  $region34: #{setpred4re_sub_absa_forward.1} parent=0 // pred_check
    _
  $region35: #{setpred4re_sub_absa_forward.1} parent=0 // pred_check_branch
    %39 = sbr.rel (0) target = $region37
  $region36: #{setpred4re_sub_absa_forward.1} parent=0 // pred_region
    _
  $region37: #{setpred4re_sub_absa_forward.1} parent=0 // pred_fallthru
    _
  // Predicated region
  $region38: #{setpred4re_sub_absa_forward.1} parent=0 // pred_check
    _
  $region39: #{setpred4re_sub_absa_forward.1} parent=0 // pred_check_branch
    %41 = sbr.rel (0) target = $region41
  $region40: #{setpred4re_sub_absa_forward.1} parent=0 // pred_region
    _
  $region41: #{setpred4re_sub_absa_forward.1} parent=0 // pred_fallthru
    _
  // Predicated region
  $region42: #{setpred4re_sub_absa_forward.1} parent=0 // pred_check
    _
  $region43: #{setpred4re_sub_absa_forward.1} parent=0 // pred_check_branch
    %43 = sbr.rel (0) target = $region45
  $region44: #{setpred4re_sub_absa_forward.1} parent=0 // pred_region
    _
  $region45: #{setpred4re_sub_absa_forward.1} parent=0 // pred_fallthru
    _
  // Predicated region
  $region46: #{setpred4re_sub_absa_forward.1} parent=0 // pred_check
    _
  $region47: #{setpred4re_sub_absa_forward.1} parent=0 // pred_check_branch
    %45 = sbr.rel (0) target = $region49
  $region48: #{setpred4re_sub_absa_forward.1} parent=0 // pred_region
    _
  $region49: #{setpred4re_sub_absa_forward.1} parent=0 // pred_fallthru
    _
  // Predicated region
  $region50: #{setpred4re_sub_absa_forward.1} parent=0 // pred_check
    _
  $region51: #{setpred4re_sub_absa_forward.1} parent=0 // pred_check_branch
    %47 = sbr.rel (0) target = $region53
  $region52: #{setpred4re_sub_absa_forward.1} parent=0 // pred_region
    _
  $region53: #{setpred4re_sub_absa_forward.1} parent=0 // pred_fallthru
    _
  // Predicated region
  $region54: #{setpred4re_sub_absa_forward.1} parent=0 // pred_check
    _
  $region55: #{setpred4re_sub_absa_forward.1} parent=0 // pred_check_branch
    %49 = sbr.rel (0) target = $region57
  $region56: #{setpred4re_sub_absa_forward.1} parent=0 // pred_region
    _
  $region57: #{setpred4re_sub_absa_forward.1} parent=0 // pred_fallthru
    _
  // Predicated region
  $region58: #{setpred4re_sub_absa_forward.1} parent=0 // pred_check
    _
  $region59: #{setpred4re_sub_absa_forward.1} parent=0 // pred_check_branch
    %51 = sbr.rel (0) target = $region61
  $region60: #{setpred4re_sub_absa_forward.1} parent=0 // pred_region
    _
  $region61: #{setpred4re_sub_absa_forward.1} parent=0 // pred_fallthru
    _
  // Predicated region
  $region62: #{setpred4re_sub_absa_forward.1} parent=0 // pred_check
    _
  $region63: #{setpred4re_sub_absa_forward.1} parent=0 // pred_check_branch
    %53 = sbr.rel (0) target = $region65
  $region64: #{setpred4re_sub_absa_forward.1} parent=0 // pred_region
    _
  $region65: #{setpred4re_sub_absa_forward.1} parent=0 // pred_fallthru
    _
  // Predicated region
  $region66: #{setpred4re_sub_absa_forward.1} parent=0 // pred_check
    _
  $region67: #{setpred4re_sub_absa_forward.1} parent=0 // pred_check_branch
    %55 = sbr.rel (0) target = $region69
  $region68: #{setpred4re_sub_absa_forward.1} parent=0 // pred_region
    _
  $region69: #{setpred4re_sub_absa_forward.1} parent=0 // pred_fallthru
    _
  %v56 = vld [vmem:[%s0] sm:$0xff]
  %v57 = vld [vmem:[%s0 + $0x8] sm:$0xff]
  %v58 = vld [vmem:[%s0 + $0x10] sm:$0xff]
  %v59 = vld [vmem:[%s0 + $0x18] sm:$0xff]
  %v60 = vld [vmem:[%s1] sm:$0x3]
  %v61 = vld [vmem:[%s3] sm:$0xff]
  %v62 = vld [vmem:[%s3 + $0x8] sm:$0xff]
  %v63 = vld [vmem:[%s3 + $0x10] sm:$0xff]
  %v64 = vld [vmem:[%s3 + $0x18] sm:$0xff]
  %vm65 = vcmask 261120
  %v67 = vsel %vm65, %v56, 0
  %v70 = vsel %vm65, %v57, 0
  %v73 = vsel %vm65, %v58, 0
  %v76 = vsel %vm65, %v59, 0
  %78 = vmatprep.subr.mxu0 0.0
  %79 = vmatpush1.msra.mxu0 %v61
  %80 = vmatprep.subr.mxu0 0.0
  %81 = vmatpush1.msra.mxu0 %v62
  %82 = vmatprep.subr.mxu0 0.0
  %83 = vmatpush1.msra.mxu0 %v63
  %84 = vmatprep.subr.mxu0 0.0
  %85 = vmatpush1.msra.mxu0 %v64
  %86 = vmatprep.subr.mxu0 0.0
  %87 = vmatpush1.msra.mxu0 0.0
  %88 = vmatprep.subr.mxu0 0.0
  %89 = vmatpush1.msra.mxu0 0.0
  %90 = vmatprep.subr.mxu0 0.0
  %91 = vmatpush1.msra.mxu0 0.0
  %92 = vmatprep.subr.mxu0 0.0
  %93 = vmatpush1.msra.mxu0 0.0
  %94 = vmatprep.subr.mxu0 0.0
  %95 = vmatpush1.msra.mxu0 0.0
  %96 = vmatprep.subr.mxu0 0.0
  %97 = vmatpush1.msra.mxu0 0.0
  %98 = vmatprep.subr.mxu0 0.0
  %99 = vmatpush1.msra.mxu0 0.0
  %100 = vmatprep.subr.mxu0 0.0
  %101 = vmatpush1.msra.mxu0 0.0
  %102 = vmatprep.subr.mxu0 0.0
  %103 = vmatpush1.msra.mxu0 0.0
  %104 = vmatprep.subr.mxu0 0.0
  %105 = vmatpush1.msra.mxu0 0.0
  %106 = vmatprep.subr.mxu0 0.0
  %107 = vmatpush1.msra.mxu0 0.0
  %108 = vmatprep.subr.mxu0 0.0
  %109 = vmatpush1.msra.mxu0 0.0
  %110 = vmatprep.subr.mxu0 0.0
  %111 = vmatpush1.msra.mxu0 0.0
  %112 = vmatprep.subr.mxu0 0.0
  %113 = vmatpush1.msra.mxu0 0.0
  %114 = vmatprep.subr.mxu0 0.0
  %115 = vmatpush1.msra.mxu0 0.0
  %116 = vmatprep.subr.mxu0 0.0
  %117 = vmatpush1.msra.mxu0 0.0
  %118 = vmatprep.subr.mxu0 0.0
  %119 = vmatpush1.msra.mxu0 0.0
  %120 = vmatprep.subr.mxu0 0.0
  %121 = vmatpush1.msra.mxu0 0.0
  %122 = vmatprep.subr.mxu0 0.0
  %123 = vmatpush1.msra.mxu0 0.0
  %124 = vmatprep.subr.mxu0 0.0
  %125 = vmatpush1.msra.mxu0 0.0
  %126 = vmatprep.subr.mxu0 0.0
  %127 = vmatpush1.msra.mxu0 0.0
  %128 = vmatprep.subr.mxu0 0.0
  %129 = vmatpush1.msra.mxu0 0.0
  %130 = vmatprep.subr.mxu0 0.0
  %131 = vmatpush1.msra.mxu0 0.0
  %132 = vmatprep.subr.mxu0 0.0
  %133 = vmatpush1.msra.mxu0 0.0
  %134 = vmatprep.subr.mxu0 0.0
  %135 = vmatpush1.msra.mxu0 0.0
  %136 = vmatprep.subr.mxu0 0.0
  %137 = vmatpush1.msra.mxu0 0.0
  %138 = vmatprep.subr.mxu0 0.0
  %139 = vmatpush1.msra.mxu0 0.0
  %140 = vmatprep.subr.mxu0 0.0
  %141 = vmatpush1.msra.mxu0 0.0
  %142 = vmatprep.mubr.f32.mxu0 0.0
  %143 = vmatmul.mubr.f32.gmra.mrb[0].mxu0 %v67
  %v144 = vpop.f32.mrb[0].mxu0
  %v145 = vadd.f32 0.0, %v144
  %v146 = vpop.f32.mrb[0].mxu0
  %147 = vmatprep.mubr.f32.mxu0 0.0
  %148 = vmatmul.mubr.f32.gmra.mrb[0].mxu0 %v70
  %v149 = vpop.f32.mrb[0].mxu0
  %v150 = vadd.f32 0.0, %v149
  %v151 = vpop.f32.mrb[0].mxu0
  %152 = vmatprep.mubr.f32.mxu0 0.0
  %153 = vmatmul.mubr.f32.gmra.mrb[0].mxu0 %v73
  %v154 = vpop.f32.mrb[0].mxu0
  %v155 = vadd.f32 0.0, %v154
  %v156 = vpop.f32.mrb[0].mxu0
  %157 = vmatprep.mubr.f32.mxu0 0.0
  %158 = vmatmul.mubr.f32.gmra.mrb[0].mxu0 %v76
  %v159 = vpop.f32.mrb[0].mxu0
  %v160 = vadd.f32 0.0, %v159
  %v161 = vpop.f32.mrb[0].mxu0
  %162 = vdwg.mxu0
  %v163 = vtanh.pop %v145
  %v164 = vtanh.pop %v150
  %v165 = vtanh.pop %v155
  %v166 = vtanh.pop %v160
  %v167 = vld [vmem:[%s12] sm:$0xff]
  %v168 = vld [vmem:[%s12 + $0x8] sm:$0xff]
  %v169 = vld [vmem:[%s12 + $0x10] sm:$0xff]
  %v170 = vld [vmem:[%s12 + $0x18] sm:$0xff]
  %v171 = vld [vmem:[%s12 + $0x20] sm:$0xff]
  %v172 = vld [vmem:[%s12 + $0x28] sm:$0xff]
  %v173 = vld [vmem:[%s12 + $0x30] sm:$0xff]
  %v174 = vld [vmem:[%s12 + $0x38] sm:$0xff]
  %v175 = vld [vmem:[%s12 + $0x40] sm:$0xff]
  %v176 = vld [vmem:[%s12 + $0x48] sm:$0xff]
  %v177 = vld [vmem:[%s12 + $0x50] sm:$0xff]
  %v178 = vld [vmem:[%s12 + $0x58] sm:$0xff]
  %v180 = vsel %vm65, %v163, 0
  %v183 = vsel %vm65, %v164, 0
  %v186 = vsel %vm65, %v165, 0
  %v189 = vsel %vm65, %v166, 0
  %191 = vmatprep.subr.mxu0 %v168
  %192 = vmatpush1.msra.mxu0 %v167
  %193 = vmatprep.subr.mxu0 %v171
  %194 = vmatpush1.msra.mxu0 %v170
  %195 = vmatprep.subr.mxu0 %v174
  %196 = vmatpush1.msra.mxu0 %v173
  %197 = vmatprep.subr.mxu0 %v177
  %198 = vmatpush1.msra.mxu0 %v176
  %199 = vmatprep.subr.mxu0 0.0
  %200 = vmatpush1.msra.mxu0 0.0
  %201 = vmatprep.subr.mxu0 0.0
  %202 = vmatpush1.msra.mxu0 0.0
  %203 = vmatprep.subr.mxu0 0.0
  %204 = vmatpush1.msra.mxu0 0.0
  %205 = vmatprep.subr.mxu0 0.0
  %206 = vmatpush1.msra.mxu0 0.0
  %207 = vmatprep.subr.mxu0 0.0
  %208 = vmatpush1.msra.mxu0 0.0
  %209 = vmatprep.subr.mxu0 0.0
  %210 = vmatpush1.msra.mxu0 0.0
  %211 = vmatprep.subr.mxu0 0.0
  %212 = vmatpush1.msra.mxu0 0.0
  %213 = vmatprep.subr.mxu0 0.0
  %214 = vmatpush1.msra.mxu0 0.0
  %215 = vmatprep.subr.mxu0 0.0
  %216 = vmatpush1.msra.mxu0 0.0
  %217 = vmatprep.subr.mxu0 0.0
  %218 = vmatpush1.msra.mxu0 0.0
  %219 = vmatprep.subr.mxu0 0.0
  %220 = vmatpush1.msra.mxu0 0.0
  %221 = vmatprep.subr.mxu0 0.0
  %222 = vmatpush1.msra.mxu0 0.0
  %223 = vmatprep.subr.mxu0 0.0
  %224 = vmatpush1.msra.mxu0 0.0
  %225 = vmatprep.subr.mxu0 0.0
  %226 = vmatpush1.msra.mxu0 0.0
  %227 = vmatprep.subr.mxu0 0.0
  %228 = vmatpush1.msra.mxu0 0.0
  %229 = vmatprep.subr.mxu0 0.0
  %230 = vmatpush1.msra.mxu0 0.0
  %231 = vmatprep.subr.mxu0 0.0
  %232 = vmatpush1.msra.mxu0 0.0
  %233 = vmatprep.subr.mxu0 0.0
  %234 = vmatpush1.msra.mxu0 0.0
  %235 = vmatprep.subr.mxu0 0.0
  %236 = vmatpush1.msra.mxu0 0.0
  %237 = vmatprep.subr.mxu0 0.0
  %238 = vmatpush1.msra.mxu0 0.0
  %239 = vmatprep.subr.mxu0 0.0
  %240 = vmatpush1.msra.mxu0 0.0
  %241 = vmatprep.subr.mxu0 0.0
  %242 = vmatpush1.msra.mxu0 0.0
  %243 = vmatprep.subr.mxu0 0.0
  %244 = vmatpush1.msra.mxu0 0.0
  %245 = vmatprep.subr.mxu0 0.0
  %246 = vmatpush1.msra.mxu0 0.0
  %247 = vmatprep.subr.mxu0 0.0
  %248 = vmatpush1.msra.mxu0 0.0
  %249 = vmatprep.subr.mxu0 0.0
  %250 = vmatpush1.msra.mxu0 0.0
  %251 = vmatprep.subr.mxu0 0.0
  %252 = vmatpush1.msra.mxu0 0.0
  %253 = vmatprep.subr.mxu0 0.0
  %254 = vmatpush1.msra.mxu0 0.0
  %255 = vmatprep.mubr.f32.mxu0 0.0
  %256 = vmatmul.mubr.f32.gmra.mrb[0].mxu0 %v180
  %v257 = vpop.f32.mrb[0].mxu0
  %v258 = vadd.f32 0.0, %v257
  %v259 = vpop.f32.mrb[0].mxu0
  %v260 = vadd.f32 0.0, %v259
  %261 = vmatprep.mubr.f32.mxu0 0.0
  %262 = vmatmul.mubr.f32.gmra.mrb[0].mxu0 %v183
  %v263 = vpop.f32.mrb[0].mxu0
  %v264 = vadd.f32 0.0, %v263
  %v265 = vpop.f32.mrb[0].mxu0
  %v266 = vadd.f32 0.0, %v265
  %267 = vmatprep.mubr.f32.mxu0 0.0
  %268 = vmatmul.mubr.f32.gmra.mrb[0].mxu0 %v186
  %v269 = vpop.f32.mrb[0].mxu0
  %v270 = vadd.f32 0.0, %v269
  %v271 = vpop.f32.mrb[0].mxu0
  %v272 = vadd.f32 0.0, %v271
  %273 = vmatprep.mubr.f32.mxu0 0.0
  %274 = vmatmul.mubr.f32.gmra.mrb[0].mxu0 %v189
  %v275 = vpop.f32.mrb[0].mxu0
  %v276 = vadd.f32 0.0, %v275
  %v277 = vpop.f32.mrb[0].mxu0
  %v278 = vadd.f32 0.0, %v277
  %279 = vdwg.mxu0
  %280 = vmatprep.subr.mxu0 0.0
  %281 = vmatpush1.msra.mxu0 %v169
  %282 = vmatprep.subr.mxu0 0.0
  %283 = vmatpush1.msra.mxu0 %v172
  %284 = vmatprep.subr.mxu0 0.0
  %285 = vmatpush1.msra.mxu0 %v175
  %286 = vmatprep.subr.mxu0 0.0
  %287 = vmatpush1.msra.mxu0 %v178
  %288 = vmatprep.subr.mxu0 0.0
  %289 = vmatpush1.msra.mxu0 0.0
  %290 = vmatprep.subr.mxu0 0.0
  %291 = vmatpush1.msra.mxu0 0.0
  %292 = vmatprep.subr.mxu0 0.0
  %293 = vmatpush1.msra.mxu0 0.0
  %294 = vmatprep.subr.mxu0 0.0
  %295 = vmatpush1.msra.mxu0 0.0
  %296 = vmatprep.subr.mxu0 0.0
  %297 = vmatpush1.msra.mxu0 0.0
  %298 = vmatprep.subr.mxu0 0.0
  %299 = vmatpush1.msra.mxu0 0.0
  %300 = vmatprep.subr.mxu0 0.0
  %301 = vmatpush1.msra.mxu0 0.0
  %302 = vmatprep.subr.mxu0 0.0
  %303 = vmatpush1.msra.mxu0 0.0
  %304 = vmatprep.subr.mxu0 0.0
  %305 = vmatpush1.msra.mxu0 0.0
  %306 = vmatprep.subr.mxu0 0.0
  %307 = vmatpush1.msra.mxu0 0.0
  %308 = vmatprep.subr.mxu0 0.0
  %309 = vmatpush1.msra.mxu0 0.0
  %310 = vmatprep.subr.mxu0 0.0
  %311 = vmatpush1.msra.mxu0 0.0
  %312 = vmatprep.subr.mxu0 0.0
  %313 = vmatpush1.msra.mxu0 0.0
  %314 = vmatprep.subr.mxu0 0.0
  %315 = vmatpush1.msra.mxu0 0.0
  %316 = vmatprep.subr.mxu0 0.0
  %317 = vmatpush1.msra.mxu0 0.0
  %318 = vmatprep.subr.mxu0 0.0
  %319 = vmatpush1.msra.mxu0 0.0
  %320 = vmatprep.subr.mxu0 0.0
  %321 = vmatpush1.msra.mxu0 0.0
  %322 = vmatprep.subr.mxu0 0.0
  %323 = vmatpush1.msra.mxu0 0.0
  %324 = vmatprep.subr.mxu0 0.0
  %325 = vmatpush1.msra.mxu0 0.0
  %326 = vmatprep.subr.mxu0 0.0
  %327 = vmatpush1.msra.mxu0 0.0
  %328 = vmatprep.subr.mxu0 0.0
  %329 = vmatpush1.msra.mxu0 0.0
  %330 = vmatprep.subr.mxu0 0.0
  %331 = vmatpush1.msra.mxu0 0.0
  %332 = vmatprep.subr.mxu0 0.0
  %333 = vmatpush1.msra.mxu0 0.0
  %334 = vmatprep.subr.mxu0 0.0
  %335 = vmatpush1.msra.mxu0 0.0
  %336 = vmatprep.subr.mxu0 0.0
  %337 = vmatpush1.msra.mxu0 0.0
  %338 = vmatprep.subr.mxu0 0.0
  %339 = vmatpush1.msra.mxu0 0.0
  %340 = vmatprep.subr.mxu0 0.0
  %341 = vmatpush1.msra.mxu0 0.0
  %342 = vmatprep.subr.mxu0 0.0
  %343 = vmatpush1.msra.mxu0 0.0
  %344 = vmatprep.mubr.f32.mxu0 0.0
  %345 = vmatmul.mubr.f32.gmra.mrb[0].mxu0 %v180
  %v346 = vpop.f32.mrb[0].mxu0
  %v347 = vadd.f32 0.0, %v346
  %v348 = vpop.f32.mrb[0].mxu0
  %349 = vmatprep.mubr.f32.mxu0 0.0
  %350 = vmatmul.mubr.f32.gmra.mrb[0].mxu0 %v183
  %v351 = vpop.f32.mrb[0].mxu0
  %v352 = vadd.f32 0.0, %v351
  %v353 = vpop.f32.mrb[0].mxu0
  %354 = vmatprep.mubr.f32.mxu0 0.0
  %355 = vmatmul.mubr.f32.gmra.mrb[0].mxu0 %v186
  %v356 = vpop.f32.mrb[0].mxu0
  %v357 = vadd.f32 0.0, %v356
  %v358 = vpop.f32.mrb[0].mxu0
  %359 = vmatprep.mubr.f32.mxu0 0.0
  %360 = vmatmul.mubr.f32.gmra.mrb[0].mxu0 %v189
  %v361 = vpop.f32.mrb[0].mxu0
  %v362 = vadd.f32 0.0, %v361
  %v363 = vpop.f32.mrb[0].mxu0
  %364 = vdwg.mxu0
  %v365 = vsub.f32 1.0, %v60
  %v366 = vmul.f32 %v365, -10000.0
  %v367 = vld [vmem:[%s2] sm:$0xff]
  %v368 = vld [vmem:[%s4] sm:$0xff]
  %v369 = vld [vmem:[%s4 + $0x8] sm:$0xff]
  %v370 = vld [vmem:[%s4 + $0x10] sm:$0xff]
  %v371 = vld [vmem:[%s4 + $0x18] sm:$0xff]
  %v373 = vsel %vm65, %v367, 0
  %375 = vmatprep.subr.mxu0 0.0
  %376 = vmatpush1.msra.mxu0 %v368
  %377 = vmatprep.subr.mxu0 0.0
  %378 = vmatpush1.msra.mxu0 %v369
  %379 = vmatprep.subr.mxu0 0.0
  %380 = vmatpush1.msra.mxu0 %v370
  %381 = vmatprep.subr.mxu0 0.0
  %382 = vmatpush1.msra.mxu0 %v371
  %383 = vmatprep.subr.mxu0 0.0
  %384 = vmatpush1.msra.mxu0 0.0
  %385 = vmatprep.subr.mxu0 0.0
  %386 = vmatpush1.msra.mxu0 0.0
  %387 = vmatprep.subr.mxu0 0.0
  %388 = vmatpush1.msra.mxu0 0.0
  %389 = vmatprep.subr.mxu0 0.0
  %390 = vmatpush1.msra.mxu0 0.0
  %391 = vmatprep.subr.mxu0 0.0
  %392 = vmatpush1.msra.mxu0 0.0
  %393 = vmatprep.subr.mxu0 0.0
  %394 = vmatpush1.msra.mxu0 0.0
  %395 = vmatprep.subr.mxu0 0.0
  %396 = vmatpush1.msra.mxu0 0.0
  %397 = vmatprep.subr.mxu0 0.0
  %398 = vmatpush1.msra.mxu0 0.0
  %399 = vmatprep.subr.mxu0 0.0
  %400 = vmatpush1.msra.mxu0 0.0
  %401 = vmatprep.subr.mxu0 0.0
  %402 = vmatpush1.msra.mxu0 0.0
  %403 = vmatprep.subr.mxu0 0.0
  %404 = vmatpush1.msra.mxu0 0.0
  %405 = vmatprep.subr.mxu0 0.0
  %406 = vmatpush1.msra.mxu0 0.0
  %407 = vmatprep.subr.mxu0 0.0
  %408 = vmatpush1.msra.mxu0 0.0
  %409 = vmatprep.subr.mxu0 0.0
  %410 = vmatpush1.msra.mxu0 0.0
  %411 = vmatprep.subr.mxu0 0.0
  %412 = vmatpush1.msra.mxu0 0.0
  %413 = vmatprep.subr.mxu0 0.0
  %414 = vmatpush1.msra.mxu0 0.0
  %415 = vmatprep.subr.mxu0 0.0
  %416 = vmatpush1.msra.mxu0 0.0
  %417 = vmatprep.subr.mxu0 0.0
  %418 = vmatpush1.msra.mxu0 0.0
  %419 = vmatprep.subr.mxu0 0.0
  %420 = vmatpush1.msra.mxu0 0.0
  %421 = vmatprep.subr.mxu0 0.0
  %422 = vmatpush1.msra.mxu0 0.0
  %423 = vmatprep.subr.mxu0 0.0
  %424 = vmatpush1.msra.mxu0 0.0
  %425 = vmatprep.subr.mxu0 0.0
  %426 = vmatpush1.msra.mxu0 0.0
  %427 = vmatprep.subr.mxu0 0.0
  %428 = vmatpush1.msra.mxu0 0.0
  %429 = vmatprep.subr.mxu0 0.0
  %430 = vmatpush1.msra.mxu0 0.0
  %431 = vmatprep.subr.mxu0 0.0
  %432 = vmatpush1.msra.mxu0 0.0
  %433 = vmatprep.subr.mxu0 0.0
  %434 = vmatpush1.msra.mxu0 0.0
  %435 = vmatprep.subr.mxu0 0.0
  %436 = vmatpush1.msra.mxu0 0.0
  %437 = vmatprep.subr.mxu0 0.0
  %438 = vmatpush1.msra.mxu0 0.0
  %439 = vmatprep.mubr.f32.mxu0 0.0
  %440 = vmatmul.mubr.f32.gmra.mrb[0].mxu0 %v373
  %v441 = vpop.f32.mrb[0].mxu0
  %v442 = vadd.f32 0.0, %v441
  %v443 = vpop.f32.mrb[0].mxu0
  %444 = vmatprep.mubr.f32.mxu0 0.0
  %445 = vmatmul.mubr.f32.gmra.mrb[0].mxu0 %v373
  %v446 = vpop.f32.mrb[0].mxu0
  %v447 = vadd.f32 0.0, %v446
  %v448 = vpop.f32.mrb[0].mxu0
  %449 = vdwg.mxu0
  %v451 = vsel %vm65, %v442, 0
  %v454 = vsel %vm65, %v258, 0
  %v457 = vsel %vm65, %v264, 0
  %459 = vmatprep.subr.mxu0 0.0
  %460 = vmatpush1.xpose.msra.mxu0 %v454
  %461 = vmatprep.subr.mxu0 0.0
  %462 = vmatpush1.xpose.msra.mxu0 %v457
  %463 = vmatprep.subr.mxu0 0.0
  %464 = vmatpush1.xpose.msra.mxu0 0.0
  %465 = vmatprep.subr.mxu0 0.0
  %466 = vmatpush1.xpose.msra.mxu0 0.0
  %467 = vmatprep.subr.mxu0 0.0
  %468 = vmatpush1.xpose.msra.mxu0 0.0
  %469 = vmatprep.subr.mxu0 0.0
  %470 = vmatpush1.xpose.msra.mxu0 0.0
  %471 = vmatprep.subr.mxu0 0.0
  %472 = vmatpush1.xpose.msra.mxu0 0.0
  %473 = vmatprep.subr.mxu0 0.0
  %474 = vmatpush1.xpose.msra.mxu0 0.0
  %475 = vmatprep.subr.mxu0 0.0
  %476 = vmatpush1.xpose.msra.mxu0 0.0
  %477 = vmatprep.subr.mxu0 0.0
  %478 = vmatpush1.xpose.msra.mxu0 0.0
  %479 = vmatprep.subr.mxu0 0.0
  %480 = vmatpush1.xpose.msra.mxu0 0.0
  %481 = vmatprep.subr.mxu0 0.0
  %482 = vmatpush1.xpose.msra.mxu0 0.0
  %483 = vmatprep.subr.mxu0 0.0
  %484 = vmatpush1.xpose.msra.mxu0 0.0
  %485 = vmatprep.subr.mxu0 0.0
  %486 = vmatpush1.xpose.msra.mxu0 0.0
  %487 = vmatprep.subr.mxu0 0.0
  %488 = vmatpush1.xpose.msra.mxu0 0.0
  %489 = vmatprep.subr.mxu0 0.0
  %490 = vmatpush1.xpose.msra.mxu0 0.0
  %491 = vmatprep.subr.mxu0 0.0
  %492 = vmatpush1.xpose.msra.mxu0 0.0
  %493 = vmatprep.subr.mxu0 0.0
  %494 = vmatpush1.xpose.msra.mxu0 0.0
  %495 = vmatprep.subr.mxu0 0.0
  %496 = vmatpush1.xpose.msra.mxu0 0.0
  %497 = vmatprep.subr.mxu0 0.0
  %498 = vmatpush1.xpose.msra.mxu0 0.0
  %499 = vmatprep.subr.mxu0 0.0
  %500 = vmatpush1.xpose.msra.mxu0 0.0
  %501 = vmatprep.subr.mxu0 0.0
  %502 = vmatpush1.xpose.msra.mxu0 0.0
  %503 = vmatprep.subr.mxu0 0.0
  %504 = vmatpush1.xpose.msra.mxu0 0.0
  %505 = vmatprep.subr.mxu0 0.0
  %506 = vmatpush1.xpose.msra.mxu0 0.0
  %507 = vmatprep.subr.mxu0 0.0
  %508 = vmatpush1.xpose.msra.mxu0 0.0
  %509 = vmatprep.subr.mxu0 0.0
  %510 = vmatpush1.xpose.msra.mxu0 0.0
  %511 = vmatprep.subr.mxu0 0.0
  %512 = vmatpush1.xpose.msra.mxu0 0.0
  %513 = vmatprep.subr.mxu0 0.0
  %514 = vmatpush1.xpose.msra.mxu0 0.0
  %515 = vmatprep.subr.mxu0 0.0
  %516 = vmatpush1.xpose.msra.mxu0 0.0
  %517 = vmatprep.subr.mxu0 0.0
  %518 = vmatpush1.xpose.msra.mxu0 0.0
  %519 = vmatprep.subr.mxu0 0.0
  %520 = vmatpush1.xpose.msra.mxu0 0.0
  %521 = vmatprep.subr.mxu0 0.0
  %522 = vmatpush1.xpose.msra.mxu0 0.0
  %523 = vmatprep.mubr.f32.mxu0 0.0
  %524 = vmatmul.mubr.f32.gmra.mrb[0].mxu0 %v451
  %v525 = vpop.f32.mrb[0].mxu0
  %v526 = vadd.f32 0.0, %v525
  %v527 = vpop.f32.mrb[0].mxu0
  %528 = vdwg.mxu0
  %v530 = vsel %vm65, %v447, 0
  %v533 = vsel %vm65, %v270, 0
  %v536 = vsel %vm65, %v276, 0
  %538 = vmatprep.subr.mxu0 0.0
  %539 = vmatpush1.xpose.msra.mxu0 %v533
  %540 = vmatprep.subr.mxu0 0.0
  %541 = vmatpush1.xpose.msra.mxu0 %v536
  %542 = vmatprep.subr.mxu0 0.0
  %543 = vmatpush1.xpose.msra.mxu0 0.0
  %544 = vmatprep.subr.mxu0 0.0
  %545 = vmatpush1.xpose.msra.mxu0 0.0
  %546 = vmatprep.subr.mxu0 0.0
  %547 = vmatpush1.xpose.msra.mxu0 0.0
  %548 = vmatprep.subr.mxu0 0.0
  %549 = vmatpush1.xpose.msra.mxu0 0.0
  %550 = vmatprep.subr.mxu0 0.0
  %551 = vmatpush1.xpose.msra.mxu0 0.0
  %552 = vmatprep.subr.mxu0 0.0
  %553 = vmatpush1.xpose.msra.mxu0 0.0
  %554 = vmatprep.subr.mxu0 0.0
  %555 = vmatpush1.xpose.msra.mxu0 0.0
  %556 = vmatprep.subr.mxu0 0.0
  %557 = vmatpush1.xpose.msra.mxu0 0.0
  %558 = vmatprep.subr.mxu0 0.0
  %559 = vmatpush1.xpose.msra.mxu0 0.0
  %560 = vmatprep.subr.mxu0 0.0
  %561 = vmatpush1.xpose.msra.mxu0 0.0
  %562 = vmatprep.subr.mxu0 0.0
  %563 = vmatpush1.xpose.msra.mxu0 0.0
  %564 = vmatprep.subr.mxu0 0.0
  %565 = vmatpush1.xpose.msra.mxu0 0.0
  %566 = vmatprep.subr.mxu0 0.0
  %567 = vmatpush1.xpose.msra.mxu0 0.0
  %568 = vmatprep.subr.mxu0 0.0
  %569 = vmatpush1.xpose.msra.mxu0 0.0
  %570 = vmatprep.subr.mxu0 0.0
  %571 = vmatpush1.xpose.msra.mxu0 0.0
  %572 = vmatprep.subr.mxu0 0.0
  %573 = vmatpush1.xpose.msra.mxu0 0.0
  %574 = vmatprep.subr.mxu0 0.0
  %575 = vmatpush1.xpose.msra.mxu0 0.0
  %576 = vmatprep.subr.mxu0 0.0
  %577 = vmatpush1.xpose.msra.mxu0 0.0
  %578 = vmatprep.subr.mxu0 0.0
  %579 = vmatpush1.xpose.msra.mxu0 0.0
  %580 = vmatprep.subr.mxu0 0.0
  %581 = vmatpush1.xpose.msra.mxu0 0.0
  %582 = vmatprep.subr.mxu0 0.0
  %583 = vmatpush1.xpose.msra.mxu0 0.0
  %584 = vmatprep.subr.mxu0 0.0
  %585 = vmatpush1.xpose.msra.mxu0 0.0
  %586 = vmatprep.subr.mxu0 0.0
  %587 = vmatpush1.xpose.msra.mxu0 0.0
  %588 = vmatprep.subr.mxu0 0.0
  %589 = vmatpush1.xpose.msra.mxu0 0.0
  %590 = vmatprep.subr.mxu0 0.0
  %591 = vmatpush1.xpose.msra.mxu0 0.0
  %592 = vmatprep.subr.mxu0 0.0
  %593 = vmatpush1.xpose.msra.mxu0 0.0
  %594 = vmatprep.subr.mxu0 0.0
  %595 = vmatpush1.xpose.msra.mxu0 0.0
  %596 = vmatprep.subr.mxu0 0.0
  %597 = vmatpush1.xpose.msra.mxu0 0.0
  %598 = vmatprep.subr.mxu0 0.0
  %599 = vmatpush1.xpose.msra.mxu0 0.0
  %600 = vmatprep.subr.mxu0 0.0
  %601 = vmatpush1.xpose.msra.mxu0 0.0
  %602 = vmatprep.mubr.f32.mxu0 0.0
  %603 = vmatmul.mubr.f32.gmra.mrb[0].mxu0 %v530
  %v604 = vpop.f32.mrb[0].mxu0
  %v605 = vadd.f32 0.0, %v604
  %v606 = vpop.f32.mrb[0].mxu0
  %607 = vdwg.mxu0
  %v608 = vmul.f32 %v526, 0.17677669
  %v609 = vmul.f32 %v605, 0.17677669
  %v612 = vunpack.c.l.s4 1966171168
  %v613 = vunpack.c.0.s8 %v612
  %v614 = vlaneseq
  %v615 = vshrl.u32 %v614, 7
  %v616 = vsub.s32 %v613, %v615
  %v617 = vrot.slane %v366, %v616
  %v618 = vcombine.high %v617, %v617
  %v620 = vunpack.c.l.s4 1966171168
  %v621 = vunpack.c.0.s8 %v620
  %v622 = vlaneseq
  %v623 = vshrl.u32 %v622, 7
  %v624 = vsub.s32 %v621, %v623
  %v625 = vrot.slane %v617, %v624
  %v627 = vunpack.c.l.s4 1966171168
  %v628 = vunpack.c.0.s8 %v627
  %v629 = vlaneseq
  %v630 = vshrl.u32 %v629, 7
  %v631 = vsub.s32 %v628, %v630
  %v632 = vrot.slane %v618, %v631
  %v633 = vlaneseq
  %v634 = vshrl.u32 %v633, 7
  %v635 = vsub.s32 0, %v634
  %v636 = vrot.slane %v625, %v635
  %v637 = vlaneseq
  %v638 = vshrl.u32 %v637, 7
  %v639 = vsub.s32 0, %v638
  %v640 = vrot.slane %v632, %v639
  %v643 = vadd.f32 %v608, %v636
  %v644 = vadd.f32 %v609, %v640
  %vm645 = vcmask 130048
  %v646 = vsel %vm645, %v643, -inf
  %647 = vmax.xlane.f32.xlu0 %v646
  %v648 = vpop.xlane.xlu0 %647
  %v649 = vsel %vm645, %v644, -inf
  %650 = vmax.xlane.f32.xlu0 %v649
  %v651 = vpop.xlane.xlu0 %650
  %v652 = vsub.f32 %v643, %v648
  %v653 = vsub.f32 %v644, %v651
  %v654 = vmul.f32 %v652, 1.442695
  %v655 = vpow.pop %v654
  %v656 = vmul.f32 %v653, 1.442695
  %v657 = vpow.pop %v656
  %v658 = vsel %vm645, %v655, 0.0
  %659 = vadd.xlane.f32.xlu0 %v658
  %v660 = vpop.xlane.xlu0 %659
  %v661 = vsel %vm645, %v657, 0.0
  %662 = vadd.xlane.f32.xlu0 %v661
  %v663 = vpop.xlane.xlu0 %662
  %v664 = vrcp.pop %v660
  %v665 = vrcp.pop %v663
  %v666 = vmul.f32 %v655, %v664
  %v667 = vmul.f32 %v657, %v665
  %668 = vrot.lane.b32.xlu0 %v258, 96
  %v669 = vpop.permute.xlu0 %668
  %670 = vrot.lane.b32.xlu0 %v264, 96
  %v671 = vpop.permute.xlu0 %670
  %v675 = vsel %vm645, %v666, 0
  %677 = vmatprep.subr.mxu0 0.0
  %678 = vmatpush1.msra.mxu0 %v669
  %679 = vmatprep.subr.mxu0 0.0
  %680 = vmatpush1.msra.mxu0 %v671
  %681 = vmatprep.subr.mxu0 0.0
  %682 = vmatpush1.msra.mxu0 0.0
  %683 = vmatprep.subr.mxu0 0.0
  %684 = vmatpush1.msra.mxu0 0.0
  %685 = vmatprep.subr.mxu0 0.0
  %686 = vmatpush1.msra.mxu0 0.0
  %687 = vmatprep.subr.mxu0 0.0
  %688 = vmatpush1.msra.mxu0 0.0
  %689 = vmatprep.subr.mxu0 0.0
  %690 = vmatpush1.msra.mxu0 0.0
  %691 = vmatprep.subr.mxu0 0.0
  %692 = vmatpush1.msra.mxu0 0.0
  %693 = vmatprep.subr.mxu0 0.0
  %694 = vmatpush1.msra.mxu0 0.0
  %695 = vmatprep.subr.mxu0 0.0
  %696 = vmatpush1.msra.mxu0 0.0
  %697 = vmatprep.subr.mxu0 0.0
  %698 = vmatpush1.msra.mxu0 0.0
  %699 = vmatprep.subr.mxu0 0.0
  %700 = vmatpush1.msra.mxu0 0.0
  %701 = vmatprep.subr.mxu0 0.0
  %702 = vmatpush1.msra.mxu0 0.0
  %703 = vmatprep.subr.mxu0 0.0
  %704 = vmatpush1.msra.mxu0 0.0
  %705 = vmatprep.subr.mxu0 0.0
  %706 = vmatpush1.msra.mxu0 0.0
  %707 = vmatprep.subr.mxu0 0.0
  %708 = vmatpush1.msra.mxu0 0.0
  %709 = vmatprep.subr.mxu0 0.0
  %710 = vmatpush1.msra.mxu0 0.0
  %711 = vmatprep.subr.mxu0 0.0
  %712 = vmatpush1.msra.mxu0 0.0
  %713 = vmatprep.subr.mxu0 0.0
  %714 = vmatpush1.msra.mxu0 0.0
  %715 = vmatprep.subr.mxu0 0.0
  %716 = vmatpush1.msra.mxu0 0.0
  %717 = vmatprep.subr.mxu0 0.0
  %718 = vmatpush1.msra.mxu0 0.0
  %719 = vmatprep.subr.mxu0 0.0
  %720 = vmatpush1.msra.mxu0 0.0
  %721 = vmatprep.subr.mxu0 0.0
  %722 = vmatpush1.msra.mxu0 0.0
  %723 = vmatprep.subr.mxu0 0.0
  %724 = vmatpush1.msra.mxu0 0.0
  %725 = vmatprep.subr.mxu0 0.0
  %726 = vmatpush1.msra.mxu0 0.0
  %727 = vmatprep.subr.mxu0 0.0
  %728 = vmatpush1.msra.mxu0 0.0
  %729 = vmatprep.subr.mxu0 0.0
  %730 = vmatpush1.msra.mxu0 0.0
  %731 = vmatprep.subr.mxu0 0.0
  %732 = vmatpush1.msra.mxu0 0.0
  %733 = vmatprep.subr.mxu0 0.0
  %734 = vmatpush1.msra.mxu0 0.0
  %735 = vmatprep.subr.mxu0 0.0
  %736 = vmatpush1.msra.mxu0 0.0
  %737 = vmatprep.subr.mxu0 0.0
  %738 = vmatpush1.msra.mxu0 0.0
  %739 = vmatprep.subr.mxu0 0.0
  %740 = vmatpush1.msra.mxu0 0.0
  %741 = vmatprep.mubr.f32.mxu0 0.0
  %742 = vmatmul.mubr.f32.gmra.mrb[0].mxu0 %v675
  %v743 = vpop.f32.mrb[0].mxu0
  %v744 = vadd.f32 0.0, %v743
  %v745 = vpop.f32.mrb[0].mxu0
  %746 = vdwg.mxu0
  %747 = vrot.lane.b32.xlu0 %v270, 96
  %v748 = vpop.permute.xlu0 %747
  %749 = vrot.lane.b32.xlu0 %v276, 96
  %v750 = vpop.permute.xlu0 %749
  %v754 = vsel %vm645, %v667, 0
  %756 = vmatprep.subr.mxu0 0.0
  %757 = vmatpush1.msra.mxu0 %v748
  %758 = vmatprep.subr.mxu0 0.0
  %759 = vmatpush1.msra.mxu0 %v750
  %760 = vmatprep.subr.mxu0 0.0
  %761 = vmatpush1.msra.mxu0 0.0
  %762 = vmatprep.subr.mxu0 0.0
  %763 = vmatpush1.msra.mxu0 0.0
  %764 = vmatprep.subr.mxu0 0.0
  %765 = vmatpush1.msra.mxu0 0.0
  %766 = vmatprep.subr.mxu0 0.0
  %767 = vmatpush1.msra.mxu0 0.0
  %768 = vmatprep.subr.mxu0 0.0
  %769 = vmatpush1.msra.mxu0 0.0
  %770 = vmatprep.subr.mxu0 0.0
  %771 = vmatpush1.msra.mxu0 0.0
  %772 = vmatprep.subr.mxu0 0.0
  %773 = vmatpush1.msra.mxu0 0.0
  %774 = vmatprep.subr.mxu0 0.0
  %775 = vmatpush1.msra.mxu0 0.0
  %776 = vmatprep.subr.mxu0 0.0
  %777 = vmatpush1.msra.mxu0 0.0
  %778 = vmatprep.subr.mxu0 0.0
  %779 = vmatpush1.msra.mxu0 0.0
  %780 = vmatprep.subr.mxu0 0.0
  %781 = vmatpush1.msra.mxu0 0.0
  %782 = vmatprep.subr.mxu0 0.0
  %783 = vmatpush1.msra.mxu0 0.0
  %784 = vmatprep.subr.mxu0 0.0
  %785 = vmatpush1.msra.mxu0 0.0
  %786 = vmatprep.subr.mxu0 0.0
  %787 = vmatpush1.msra.mxu0 0.0
  %788 = vmatprep.subr.mxu0 0.0
  %789 = vmatpush1.msra.mxu0 0.0
  %790 = vmatprep.subr.mxu0 0.0
  %791 = vmatpush1.msra.mxu0 0.0
  %792 = vmatprep.subr.mxu0 0.0
  %793 = vmatpush1.msra.mxu0 0.0
  %794 = vmatprep.subr.mxu0 0.0
  %795 = vmatpush1.msra.mxu0 0.0
  %796 = vmatprep.subr.mxu0 0.0
  %797 = vmatpush1.msra.mxu0 0.0
  %798 = vmatprep.subr.mxu0 0.0
  %799 = vmatpush1.msra.mxu0 0.0
  %800 = vmatprep.subr.mxu0 0.0
  %801 = vmatpush1.msra.mxu0 0.0
  %802 = vmatprep.subr.mxu0 0.0
  %803 = vmatpush1.msra.mxu0 0.0
  %804 = vmatprep.subr.mxu0 0.0
  %805 = vmatpush1.msra.mxu0 0.0
  %806 = vmatprep.subr.mxu0 0.0
  %807 = vmatpush1.msra.mxu0 0.0
  %808 = vmatprep.subr.mxu0 0.0
  %809 = vmatpush1.msra.mxu0 0.0
  %810 = vmatprep.subr.mxu0 0.0
  %811 = vmatpush1.msra.mxu0 0.0
  %812 = vmatprep.subr.mxu0 0.0
  %813 = vmatpush1.msra.mxu0 0.0
  %814 = vmatprep.subr.mxu0 0.0
  %815 = vmatpush1.msra.mxu0 0.0
  %816 = vmatprep.subr.mxu0 0.0
  %817 = vmatpush1.msra.mxu0 0.0
  %818 = vmatprep.subr.mxu0 0.0
  %819 = vmatpush1.msra.mxu0 0.0
  %820 = vmatprep.mubr.f32.mxu0 0.0
  %821 = vmatmul.mubr.f32.gmra.mrb[0].mxu0 %v754
  %v822 = vpop.f32.mrb[0].mxu0
  %v823 = vadd.f32 0.0, %v822
  %v824 = vpop.f32.mrb[0].mxu0
  %825 = vdwg.mxu0
  %v826 = vld [vmem:[%s5] sm:$0xff]
  %v827 = vld [vmem:[%s5 + $0x8] sm:$0xff]
  %v828 = vld [vmem:[%s5 + $0x10] sm:$0xff]
  %v829 = vld [vmem:[%s5 + $0x18] sm:$0xff]
  %v831 = vsel %vm65, %v744, 0
  %v834 = vsel %vm65, %v823, 0
  %836 = vmatprep.subr.mxu0 0.0
  %837 = vmatpush1.msra.mxu0 %v826
  %838 = vmatprep.subr.mxu0 0.0
  %839 = vmatpush1.msra.mxu0 %v827
  %840 = vmatprep.subr.mxu0 0.0
  %841 = vmatpush1.msra.mxu0 %v828
  %842 = vmatprep.subr.mxu0 0.0
  %843 = vmatpush1.msra.mxu0 %v829
  %844 = vmatprep.subr.mxu0 0.0
  %845 = vmatpush1.msra.mxu0 0.0
  %846 = vmatprep.subr.mxu0 0.0
  %847 = vmatpush1.msra.mxu0 0.0
  %848 = vmatprep.subr.mxu0 0.0
  %849 = vmatpush1.msra.mxu0 0.0
  %850 = vmatprep.subr.mxu0 0.0
  %851 = vmatpush1.msra.mxu0 0.0
  %852 = vmatprep.subr.mxu0 0.0
  %853 = vmatpush1.msra.mxu0 0.0
  %854 = vmatprep.subr.mxu0 0.0
  %855 = vmatpush1.msra.mxu0 0.0
  %856 = vmatprep.subr.mxu0 0.0
  %857 = vmatpush1.msra.mxu0 0.0
  %858 = vmatprep.subr.mxu0 0.0
  %859 = vmatpush1.msra.mxu0 0.0
  %860 = vmatprep.subr.mxu0 0.0
  %861 = vmatpush1.msra.mxu0 0.0
  %862 = vmatprep.subr.mxu0 0.0
  %863 = vmatpush1.msra.mxu0 0.0
  %864 = vmatprep.subr.mxu0 0.0
  %865 = vmatpush1.msra.mxu0 0.0
  %866 = vmatprep.subr.mxu0 0.0
  %867 = vmatpush1.msra.mxu0 0.0
  %868 = vmatprep.subr.mxu0 0.0
  %869 = vmatpush1.msra.mxu0 0.0
  %870 = vmatprep.subr.mxu0 0.0
  %871 = vmatpush1.msra.mxu0 0.0
  %872 = vmatprep.subr.mxu0 0.0
  %873 = vmatpush1.msra.mxu0 0.0
  %874 = vmatprep.subr.mxu0 0.0
  %875 = vmatpush1.msra.mxu0 0.0
  %876 = vmatprep.subr.mxu0 0.0
  %877 = vmatpush1.msra.mxu0 0.0
  %878 = vmatprep.subr.mxu0 0.0
  %879 = vmatpush1.msra.mxu0 0.0
  %880 = vmatprep.subr.mxu0 0.0
  %881 = vmatpush1.msra.mxu0 0.0
  %882 = vmatprep.subr.mxu0 0.0
  %883 = vmatpush1.msra.mxu0 0.0
  %884 = vmatprep.subr.mxu0 0.0
  %885 = vmatpush1.msra.mxu0 0.0
  %886 = vmatprep.subr.mxu0 0.0
  %887 = vmatpush1.msra.mxu0 0.0
  %888 = vmatprep.subr.mxu0 0.0
  %889 = vmatpush1.msra.mxu0 0.0
  %890 = vmatprep.subr.mxu0 0.0
  %891 = vmatpush1.msra.mxu0 0.0
  %892 = vmatprep.subr.mxu0 0.0
  %893 = vmatpush1.msra.mxu0 0.0
  %894 = vmatprep.subr.mxu0 0.0
  %895 = vmatpush1.msra.mxu0 0.0
  %896 = vmatprep.subr.mxu0 0.0
  %897 = vmatpush1.msra.mxu0 0.0
  %898 = vmatprep.subr.mxu0 0.0
  %899 = vmatpush1.msra.mxu0 0.0
  %900 = vmatprep.mubr.f32.mxu0 0.0
  %901 = vmatmul.mubr.f32.gmra.mrb[0].mxu0 %v831
  %v902 = vpop.f32.mrb[0].mxu0
  %v903 = vadd.f32 0.0, %v902
  %v904 = vpop.f32.mrb[0].mxu0
  %905 = vmatprep.mubr.f32.mxu0 0.0
  %906 = vmatmul.mubr.f32.gmra.mrb[0].mxu0 %v834
  %v907 = vpop.f32.mrb[0].mxu0
  %v908 = vadd.f32 0.0, %v907
  %v909 = vpop.f32.mrb[0].mxu0
  %910 = vdwg.mxu0
  %v911 = vadd.f32 %v367, %v903
  %v912 = vadd.f32 %v367, %v908
  %v913 = vld [vmem:[%s8] sm:$0x1]
  %v914 = vld [vmem:[%s9] sm:$0x1]
  %v915 = vsel %vm65, %v911, 0.0
  %916 = vadd.xlane.f32.xlu0 %v915
  %v917 = vpop.xlane.xlu0 %916
  %v918 = vsel %vm65, %v912, 0.0
  %919 = vadd.xlane.f32.xlu0 %v918
  %v920 = vpop.xlane.xlu0 %919
  %v921 = vrcp.pop 32.0
  %v922 = vmul.f32 %v917, %v921
  %v923 = vmul.f32 %v920, %v921
  %v924 = vsub.f32 %v911, %v922
  %v925 = vsub.f32 %v912, %v923
  %v926 = vmul.f32 %v924, %v924
  %v927 = vmul.f32 %v925, %v925
  %v928 = vsel %vm65, %v926, 0.0
  %929 = vadd.xlane.f32.xlu0 %v928
  %v930 = vpop.xlane.xlu0 %929
  %v931 = vsel %vm65, %v927, 0.0
  %932 = vadd.xlane.f32.xlu0 %v931
  %v933 = vpop.xlane.xlu0 %932
  %v934 = vmul.f32 %v930, %v921
  %v935 = vmul.f32 %v933, %v921
  %v936 = vadd.f32 %v934, 1e-12
  %v937 = vadd.f32 %v935, 1e-12
  %v938 = vrsqrt.pop %v936
  %v939 = vrsqrt.pop %v937
  %v940 = vmul.f32 %v924, %v938
  %v941 = vmul.f32 %v925, %v939
  %v942 = vlaneseq
  %v943 = vshrl.u32 %v942, 7
  %v944 = vsub.s32 0, %v943
  %v945 = vrot.slane %v913, %v944
  %v946 = vmul.f32 %v940, %v945
  %v947 = vmul.f32 %v941, %v945
  %v948 = vlaneseq
  %v949 = vshrl.u32 %v948, 7
  %v950 = vsub.s32 0, %v949
  %v951 = vrot.slane %v914, %v950
  %v952 = vadd.f32 %v946, %v951
  %v953 = vadd.f32 %v947, %v951
  %v954 = vld [vmem:[%s6] sm:$0xff]
  %v955 = vld [vmem:[%s6 + $0x8] sm:$0xff]
  %v956 = vld [vmem:[%s6 + $0x10] sm:$0xff]
  %v957 = vld [vmem:[%s6 + $0x18] sm:$0xff]
  %v959 = vsel %vm65, %v952, 0
  %v962 = vsel %vm65, %v953, 0
  %964 = vmatprep.subr.mxu0 0.0
  %965 = vmatpush1.msra.mxu0 %v954
  %966 = vmatprep.subr.mxu0 0.0
  %967 = vmatpush1.msra.mxu0 %v955
  %968 = vmatprep.subr.mxu0 0.0
  %969 = vmatpush1.msra.mxu0 %v956
  %970 = vmatprep.subr.mxu0 0.0
  %971 = vmatpush1.msra.mxu0 %v957
  %972 = vmatprep.subr.mxu0 0.0
  %973 = vmatpush1.msra.mxu0 0.0
  %974 = vmatprep.subr.mxu0 0.0
  %975 = vmatpush1.msra.mxu0 0.0
  %976 = vmatprep.subr.mxu0 0.0
  %977 = vmatpush1.msra.mxu0 0.0
  %978 = vmatprep.subr.mxu0 0.0
  %979 = vmatpush1.msra.mxu0 0.0
  %980 = vmatprep.subr.mxu0 0.0
  %981 = vmatpush1.msra.mxu0 0.0
  %982 = vmatprep.subr.mxu0 0.0
  %983 = vmatpush1.msra.mxu0 0.0
  %984 = vmatprep.subr.mxu0 0.0
  %985 = vmatpush1.msra.mxu0 0.0
  %986 = vmatprep.subr.mxu0 0.0
  %987 = vmatpush1.msra.mxu0 0.0
  %988 = vmatprep.subr.mxu0 0.0
  %989 = vmatpush1.msra.mxu0 0.0
  %990 = vmatprep.subr.mxu0 0.0
  %991 = vmatpush1.msra.mxu0 0.0
  %992 = vmatprep.subr.mxu0 0.0
  %993 = vmatpush1.msra.mxu0 0.0
  %994 = vmatprep.subr.mxu0 0.0
  %995 = vmatpush1.msra.mxu0 0.0
  %996 = vmatprep.subr.mxu0 0.0
  %997 = vmatpush1.msra.mxu0 0.0
  %998 = vmatprep.subr.mxu0 0.0
  %999 = vmatpush1.msra.mxu0 0.0
  %1000 = vmatprep.subr.mxu0 0.0
  %1001 = vmatpush1.msra.mxu0 0.0
  %1002 = vmatprep.subr.mxu0 0.0
  %1003 = vmatpush1.msra.mxu0 0.0
  %1004 = vmatprep.subr.mxu0 0.0
  %1005 = vmatpush1.msra.mxu0 0.0
  %1006 = vmatprep.subr.mxu0 0.0
  %1007 = vmatpush1.msra.mxu0 0.0
  %1008 = vmatprep.subr.mxu0 0.0
  %1009 = vmatpush1.msra.mxu0 0.0
  %1010 = vmatprep.subr.mxu0 0.0
  %1011 = vmatpush1.msra.mxu0 0.0
  %1012 = vmatprep.subr.mxu0 0.0
  %1013 = vmatpush1.msra.mxu0 0.0
  %1014 = vmatprep.subr.mxu0 0.0
  %1015 = vmatpush1.msra.mxu0 0.0
  %1016 = vmatprep.subr.mxu0 0.0
  %1017 = vmatpush1.msra.mxu0 0.0
  %1018 = vmatprep.subr.mxu0 0.0
  %1019 = vmatpush1.msra.mxu0 0.0
  %1020 = vmatprep.subr.mxu0 0.0
  %1021 = vmatpush1.msra.mxu0 0.0
  %1022 = vmatprep.subr.mxu0 0.0
  %1023 = vmatpush1.msra.mxu0 0.0
  %1024 = vmatprep.subr.mxu0 0.0
  %1025 = vmatpush1.msra.mxu0 0.0
  %1026 = vmatprep.subr.mxu0 0.0
  %1027 = vmatpush1.msra.mxu0 0.0
  %1028 = vmatprep.mubr.f32.mxu0 0.0
  %1029 = vmatmul.mubr.f32.gmra.mrb[0].mxu0 %v959
  %v1030 = vpop.f32.mrb[0].mxu0
  %v1031 = vadd.f32 0.0, %v1030
  %v1032 = vpop.f32.mrb[0].mxu0
  %1033 = vmatprep.mubr.f32.mxu0 0.0
  %1034 = vmatmul.mubr.f32.gmra.mrb[0].mxu0 %v962
  %v1035 = vpop.f32.mrb[0].mxu0
  %v1036 = vadd.f32 0.0, %v1035
  %v1037 = vpop.f32.mrb[0].mxu0
  %1038 = vdwg.mxu0
  %v1039 = vmul.f32 %v1031, %v1031
  %v1040 = vmul.f32 %v1036, %v1036
  %v1041 = vmul.f32 %v1031, %v1039
  %v1042 = vmul.f32 %v1036, %v1040
  %v1043 = vmul.f32 %v1041, 0.044715
  %v1044 = vmul.f32 %v1042, 0.044715
  %v1045 = vadd.f32 %v1031, %v1043
  %v1046 = vadd.f32 %v1036, %v1044
  %v1047 = vmul.f32 %v1045, 0.7978846
  %v1048 = vmul.f32 %v1046, 0.7978846
  %v1049 = vtanh.pop %v1047
  %v1050 = vtanh.pop %v1048
  %v1051 = vadd.f32 %v1049, 1.0
  %v1052 = vadd.f32 %v1050, 1.0
  %v1053 = vmul.f32 %v1051, 0.5
  %v1054 = vmul.f32 %v1052, 0.5
  %v1055 = vmul.f32 %v1031, %v1053
  %v1056 = vmul.f32 %v1036, %v1054
  %v1057 = vld [vmem:[%s7] sm:$0xff]
  %v1058 = vld [vmem:[%s7 + $0x8] sm:$0xff]
  %v1059 = vld [vmem:[%s7 + $0x10] sm:$0xff]
  %v1060 = vld [vmem:[%s7 + $0x18] sm:$0xff]
  %v1061 = vld [vmem:[%s7 + $0x20] sm:$0xff]
  %v1062 = vld [vmem:[%s7 + $0x28] sm:$0xff]
  %v1063 = vld [vmem:[%s7 + $0x30] sm:$0xff]
  %v1064 = vld [vmem:[%s7 + $0x38] sm:$0xff]
  %vm1065 = vcmask 523264
  %v1067 = vsel %vm1065, %v1055, 0
  %v1070 = vsel %vm1065, %v1056, 0
  %1072 = vmatprep.subr.mxu0 0.0
  %1073 = vmatpush1.msra.mxu0 %v1057
  %1074 = vmatprep.subr.mxu0 0.0
  %1075 = vmatpush1.msra.mxu0 %v1058
  %1076 = vmatprep.subr.mxu0 0.0
  %1077 = vmatpush1.msra.mxu0 %v1059
  %1078 = vmatprep.subr.mxu0 0.0
  %1079 = vmatpush1.msra.mxu0 %v1060
  %1080 = vmatprep.subr.mxu0 0.0
  %1081 = vmatpush1.msra.mxu0 %v1061
  %1082 = vmatprep.subr.mxu0 0.0
  %1083 = vmatpush1.msra.mxu0 %v1062
  %1084 = vmatprep.subr.mxu0 0.0
  %1085 = vmatpush1.msra.mxu0 %v1063
  %1086 = vmatprep.subr.mxu0 0.0
  %1087 = vmatpush1.msra.mxu0 %v1064
  %1088 = vmatprep.subr.mxu0 0.0
  %1089 = vmatpush1.msra.mxu0 0.0
  %1090 = vmatprep.subr.mxu0 0.0
  %1091 = vmatpush1.msra.mxu0 0.0
  %1092 = vmatprep.subr.mxu0 0.0
  %1093 = vmatpush1.msra.mxu0 0.0
  %1094 = vmatprep.subr.mxu0 0.0
  %1095 = vmatpush1.msra.mxu0 0.0
  %1096 = vmatprep.subr.mxu0 0.0
  %1097 = vmatpush1.msra.mxu0 0.0
  %1098 = vmatprep.subr.mxu0 0.0
  %1099 = vmatpush1.msra.mxu0 0.0
  %1100 = vmatprep.subr.mxu0 0.0
  %1101 = vmatpush1.msra.mxu0 0.0
  %1102 = vmatprep.subr.mxu0 0.0
  %1103 = vmatpush1.msra.mxu0 0.0
  %1104 = vmatprep.subr.mxu0 0.0
  %1105 = vmatpush1.msra.mxu0 0.0
  %1106 = vmatprep.subr.mxu0 0.0
  %1107 = vmatpush1.msra.mxu0 0.0
  %1108 = vmatprep.subr.mxu0 0.0
  %1109 = vmatpush1.msra.mxu0 0.0
  %1110 = vmatprep.subr.mxu0 0.0
  %1111 = vmatpush1.msra.mxu0 0.0
  %1112 = vmatprep.subr.mxu0 0.0
  %1113 = vmatpush1.msra.mxu0 0.0
  %1114 = vmatprep.subr.mxu0 0.0
  %1115 = vmatpush1.msra.mxu0 0.0
  %1116 = vmatprep.subr.mxu0 0.0
  %1117 = vmatpush1.msra.mxu0 0.0
  %1118 = vmatprep.subr.mxu0 0.0
  %1119 = vmatpush1.msra.mxu0 0.0
  %1120 = vmatprep.subr.mxu0 0.0
  %1121 = vmatpush1.msra.mxu0 0.0
  %1122 = vmatprep.subr.mxu0 0.0
  %1123 = vmatpush1.msra.mxu0 0.0
  %1124 = vmatprep.subr.mxu0 0.0
  %1125 = vmatpush1.msra.mxu0 0.0
  %1126 = vmatprep.subr.mxu0 0.0
  %1127 = vmatpush1.msra.mxu0 0.0
  %1128 = vmatprep.subr.mxu0 0.0
  %1129 = vmatpush1.msra.mxu0 0.0
  %1130 = vmatprep.subr.mxu0 0.0
  %1131 = vmatpush1.msra.mxu0 0.0
  %1132 = vmatprep.subr.mxu0 0.0
  %1133 = vmatpush1.msra.mxu0 0.0
  %1134 = vmatprep.subr.mxu0 0.0
  %1135 = vmatpush1.msra.mxu0 0.0
  %1136 = vmatprep.mubr.f32.mxu0 0.0
  %1137 = vmatmul.mubr.f32.gmra.mrb[0].mxu0 %v1067
  %v1138 = vpop.f32.mrb[0].mxu0
  %v1139 = vadd.f32 0.0, %v1138
  %v1140 = vpop.f32.mrb[0].mxu0
  %1141 = vmatprep.mubr.f32.mxu0 0.0
  %1142 = vmatmul.mubr.f32.gmra.mrb[0].mxu0 %v1070
  %v1143 = vpop.f32.mrb[0].mxu0
  %v1144 = vadd.f32 0.0, %v1143
  %v1145 = vpop.f32.mrb[0].mxu0
  %1146 = vdwg.mxu0
  %v1147 = vadd.f32 %v952, %v1139
  %v1148 = vadd.f32 %v953, %v1144
  %v1149 = vld [vmem:[%s10] sm:$0x1]
  %v1150 = vld [vmem:[%s11] sm:$0x1]
  %v1151 = vsel %vm65, %v1147, 0.0
  %1152 = vadd.xlane.f32.xlu0 %v1151
  %v1153 = vpop.xlane.xlu0 %1152
  %v1154 = vsel %vm65, %v1148, 0.0
  %1155 = vadd.xlane.f32.xlu0 %v1154
  %v1156 = vpop.xlane.xlu0 %1155
  %v1157 = vmul.f32 %v1153, %v921
  %v1158 = vmul.f32 %v1156, %v921
  %v1159 = vsub.f32 %v1147, %v1157
  %v1160 = vsub.f32 %v1148, %v1158
  %v1161 = vmul.f32 %v1159, %v1159
  %v1162 = vmul.f32 %v1160, %v1160
  %v1163 = vsel %vm65, %v1161, 0.0
  %1164 = vadd.xlane.f32.xlu0 %v1163
  %v1165 = vpop.xlane.xlu0 %1164
  %v1166 = vsel %vm65, %v1162, 0.0
  %1167 = vadd.xlane.f32.xlu0 %v1166
  %v1168 = vpop.xlane.xlu0 %1167
  %v1169 = vmul.f32 %v1165, %v921
  %v1170 = vmul.f32 %v1168, %v921
  %v1171 = vadd.f32 %v1169, 1e-12
  %v1172 = vadd.f32 %v1170, 1e-12
  %v1173 = vrsqrt.pop %v1171
  %v1174 = vrsqrt.pop %v1172
  %v1175 = vmul.f32 %v1159, %v1173
  %v1176 = vmul.f32 %v1160, %v1174
  %v1177 = vlaneseq
  %v1178 = vshrl.u32 %v1177, 7
  %v1179 = vsub.s32 0, %v1178
  %v1180 = vrot.slane %v1149, %v1179
  %v1181 = vmul.f32 %v1175, %v1180
  %v1182 = vmul.f32 %v1176, %v1180
  %v1183 = vlaneseq
  %v1184 = vshrl.u32 %v1183, 7
  %v1185 = vsub.s32 0, %v1184
  %v1186 = vrot.slane %v1150, %v1185
  %v1187 = vadd.f32 %v1181, %v1186
  %v1188 = vadd.f32 %v1182, %v1186
  %s1189 = scalar_lea.vmem %s4, 32
  %v1190 = vld [vmem:[%s1189] sm:$0xff]
  %v1191 = vld [vmem:[%s1189 + $0x8] sm:$0xff]
  %v1192 = vld [vmem:[%s1189 + $0x10] sm:$0xff]
  %v1193 = vld [vmem:[%s1189 + $0x18] sm:$0xff]
  %v1195 = vsel %vm65, %v1187, 0
  %v1198 = vsel %vm65, %v1188, 0
  %1200 = vmatprep.subr.mxu0 0.0
  %1201 = vmatpush1.msra.mxu0 %v1190
  %1202 = vmatprep.subr.mxu0 0.0
  %1203 = vmatpush1.msra.mxu0 %v1191
  %1204 = vmatprep.subr.mxu0 0.0
  %1205 = vmatpush1.msra.mxu0 %v1192
  %1206 = vmatprep.subr.mxu0 0.0
  %1207 = vmatpush1.msra.mxu0 %v1193
  %1208 = vmatprep.subr.mxu0 0.0
  %1209 = vmatpush1.msra.mxu0 0.0
  %1210 = vmatprep.subr.mxu0 0.0
  %1211 = vmatpush1.msra.mxu0 0.0
  %1212 = vmatprep.subr.mxu0 0.0
  %1213 = vmatpush1.msra.mxu0 0.0
  %1214 = vmatprep.subr.mxu0 0.0
  %1215 = vmatpush1.msra.mxu0 0.0
  %1216 = vmatprep.subr.mxu0 0.0
  %1217 = vmatpush1.msra.mxu0 0.0
  %1218 = vmatprep.subr.mxu0 0.0
  %1219 = vmatpush1.msra.mxu0 0.0
  %1220 = vmatprep.subr.mxu0 0.0
  %1221 = vmatpush1.msra.mxu0 0.0
  %1222 = vmatprep.subr.mxu0 0.0
  %1223 = vmatpush1.msra.mxu0 0.0
  %1224 = vmatprep.subr.mxu0 0.0
  %1225 = vmatpush1.msra.mxu0 0.0
  %1226 = vmatprep.subr.mxu0 0.0
  %1227 = vmatpush1.msra.mxu0 0.0
  %1228 = vmatprep.subr.mxu0 0.0
  %1229 = vmatpush1.msra.mxu0 0.0
  %1230 = vmatprep.subr.mxu0 0.0
  %1231 = vmatpush1.msra.mxu0 0.0
  %1232 = vmatprep.subr.mxu0 0.0
  %1233 = vmatpush1.msra.mxu0 0.0
  %1234 = vmatprep.subr.mxu0 0.0
  %1235 = vmatpush1.msra.mxu0 0.0
  %1236 = vmatprep.subr.mxu0 0.0
  %1237 = vmatpush1.msra.mxu0 0.0
  %1238 = vmatprep.subr.mxu0 0.0
  %1239 = vmatpush1.msra.mxu0 0.0
  %1240 = vmatprep.subr.mxu0 0.0
  %1241 = vmatpush1.msra.mxu0 0.0
  %1242 = vmatprep.subr.mxu0 0.0
  %1243 = vmatpush1.msra.mxu0 0.0
  %1244 = vmatprep.subr.mxu0 0.0
  %1245 = vmatpush1.msra.mxu0 0.0
  %1246 = vmatprep.subr.mxu0 0.0
  %1247 = vmatpush1.msra.mxu0 0.0
  %1248 = vmatprep.subr.mxu0 0.0
  %1249 = vmatpush1.msra.mxu0 0.0
  %1250 = vmatprep.subr.mxu0 0.0
  %1251 = vmatpush1.msra.mxu0 0.0
  %1252 = vmatprep.subr.mxu0 0.0
  %1253 = vmatpush1.msra.mxu0 0.0
  %1254 = vmatprep.subr.mxu0 0.0
  %1255 = vmatpush1.msra.mxu0 0.0
  %1256 = vmatprep.subr.mxu0 0.0
  %1257 = vmatpush1.msra.mxu0 0.0
  %1258 = vmatprep.subr.mxu0 0.0
  %1259 = vmatpush1.msra.mxu0 0.0
  %1260 = vmatprep.subr.mxu0 0.0
  %1261 = vmatpush1.msra.mxu0 0.0
  %1262 = vmatprep.subr.mxu0 0.0
  %1263 = vmatpush1.msra.mxu0 0.0
  %1264 = vmatprep.mubr.f32.mxu0 0.0
  %1265 = vmatmul.mubr.f32.gmra.mrb[0].mxu0 %v1195
  %v1266 = vpop.f32.mrb[0].mxu0
  %v1267 = vadd.f32 0.0, %v1266
  %v1268 = vpop.f32.mrb[0].mxu0
  %1269 = vmatprep.mubr.f32.mxu0 0.0
  %1270 = vmatmul.mubr.f32.gmra.mrb[0].mxu0 %v1198
  %v1271 = vpop.f32.mrb[0].mxu0
  %v1272 = vadd.f32 0.0, %v1271
  %v1273 = vpop.f32.mrb[0].mxu0
  %1274 = vdwg.mxu0
  %1275 = vrot.lane.b32.xlu0 %v258, 64
  %v1276 = vpop.permute.xlu0 %1275
  %1277 = vrot.lane.b32.xlu0 %v264, 64
  %v1278 = vpop.permute.xlu0 %1277
  %v1280 = vsel %vm65, %v1267, 0
  %v1282 = vsel %vm65, %v1276, 0
  %v1284 = vsel %vm65, %v1278, 0
  %1286 = vmatprep.subr.mxu0 0.0
  %1287 = vmatpush1.xpose.msra.mxu0 %v1282
  %1288 = vmatprep.subr.mxu0 0.0
  %1289 = vmatpush1.xpose.msra.mxu0 %v1284
  %1290 = vmatprep.subr.mxu0 0.0
  %1291 = vmatpush1.xpose.msra.mxu0 0.0
  %1292 = vmatprep.subr.mxu0 0.0
  %1293 = vmatpush1.xpose.msra.mxu0 0.0
  %1294 = vmatprep.subr.mxu0 0.0
  %1295 = vmatpush1.xpose.msra.mxu0 0.0
  %1296 = vmatprep.subr.mxu0 0.0
  %1297 = vmatpush1.xpose.msra.mxu0 0.0
  %1298 = vmatprep.subr.mxu0 0.0
  %1299 = vmatpush1.xpose.msra.mxu0 0.0
  %1300 = vmatprep.subr.mxu0 0.0
  %1301 = vmatpush1.xpose.msra.mxu0 0.0
  %1302 = vmatprep.subr.mxu0 0.0
  %1303 = vmatpush1.xpose.msra.mxu0 0.0
  %1304 = vmatprep.subr.mxu0 0.0
  %1305 = vmatpush1.xpose.msra.mxu0 0.0
  %1306 = vmatprep.subr.mxu0 0.0
  %1307 = vmatpush1.xpose.msra.mxu0 0.0
  %1308 = vmatprep.subr.mxu0 0.0
  %1309 = vmatpush1.xpose.msra.mxu0 0.0
  %1310 = vmatprep.subr.mxu0 0.0
  %1311 = vmatpush1.xpose.msra.mxu0 0.0
  %1312 = vmatprep.subr.mxu0 0.0
  %1313 = vmatpush1.xpose.msra.mxu0 0.0
  %1314 = vmatprep.subr.mxu0 0.0
  %1315 = vmatpush1.xpose.msra.mxu0 0.0
  %1316 = vmatprep.subr.mxu0 0.0
  %1317 = vmatpush1.xpose.msra.mxu0 0.0
  %1318 = vmatprep.subr.mxu0 0.0
  %1319 = vmatpush1.xpose.msra.mxu0 0.0
  %1320 = vmatprep.subr.mxu0 0.0
  %1321 = vmatpush1.xpose.msra.mxu0 0.0
  %1322 = vmatprep.subr.mxu0 0.0
  %1323 = vmatpush1.xpose.msra.mxu0 0.0
  %1324 = vmatprep.subr.mxu0 0.0
  %1325 = vmatpush1.xpose.msra.mxu0 0.0
  %1326 = vmatprep.subr.mxu0 0.0
  %1327 = vmatpush1.xpose.msra.mxu0 0.0
  %1328 = vmatprep.subr.mxu0 0.0
  %1329 = vmatpush1.xpose.msra.mxu0 0.0
  %1330 = vmatprep.subr.mxu0 0.0
  %1331 = vmatpush1.xpose.msra.mxu0 0.0
  %1332 = vmatprep.subr.mxu0 0.0
  %1333 = vmatpush1.xpose.msra.mxu0 0.0
  %1334 = vmatprep.subr.mxu0 0.0
  %1335 = vmatpush1.xpose.msra.mxu0 0.0
  %1336 = vmatprep.subr.mxu0 0.0
  %1337 = vmatpush1.xpose.msra.mxu0 0.0
  %1338 = vmatprep.subr.mxu0 0.0
  %1339 = vmatpush1.xpose.msra.mxu0 0.0
  %1340 = vmatprep.subr.mxu0 0.0
  %1341 = vmatpush1.xpose.msra.mxu0 0.0
  %1342 = vmatprep.subr.mxu0 0.0
  %1343 = vmatpush1.xpose.msra.mxu0 0.0
  %1344 = vmatprep.subr.mxu0 0.0
  %1345 = vmatpush1.xpose.msra.mxu0 0.0
  %1346 = vmatprep.subr.mxu0 0.0
  %1347 = vmatpush1.xpose.msra.mxu0 0.0
  %1348 = vmatprep.subr.mxu0 0.0
  %1349 = vmatpush1.xpose.msra.mxu0 0.0
  %1350 = vmatprep.mubr.f32.mxu0 0.0
  %1351 = vmatmul.mubr.f32.gmra.mrb[0].mxu0 %v1280
  %v1352 = vpop.f32.mrb[0].mxu0
  %v1353 = vadd.f32 0.0, %v1352
  %v1354 = vpop.f32.mrb[0].mxu0
  %1355 = vdwg.mxu0
  %1356 = vrot.lane.b32.xlu0 %v270, 64
  %v1357 = vpop.permute.xlu0 %1356
  %1358 = vrot.lane.b32.xlu0 %v276, 64
  %v1359 = vpop.permute.xlu0 %1358
  %v1361 = vsel %vm65, %v1272, 0
  %v1363 = vsel %vm65, %v1357, 0
  %v1365 = vsel %vm65, %v1359, 0
  %1367 = vmatprep.subr.mxu0 0.0
  %1368 = vmatpush1.xpose.msra.mxu0 %v1363
  %1369 = vmatprep.subr.mxu0 0.0
  %1370 = vmatpush1.xpose.msra.mxu0 %v1365
  %1371 = vmatprep.subr.mxu0 0.0
  %1372 = vmatpush1.xpose.msra.mxu0 0.0
  %1373 = vmatprep.subr.mxu0 0.0
  %1374 = vmatpush1.xpose.msra.mxu0 0.0
  %1375 = vmatprep.subr.mxu0 0.0
  %1376 = vmatpush1.xpose.msra.mxu0 0.0
  %1377 = vmatprep.subr.mxu0 0.0
  %1378 = vmatpush1.xpose.msra.mxu0 0.0
  %1379 = vmatprep.subr.mxu0 0.0
  %1380 = vmatpush1.xpose.msra.mxu0 0.0
  %1381 = vmatprep.subr.mxu0 0.0
  %1382 = vmatpush1.xpose.msra.mxu0 0.0
  %1383 = vmatprep.subr.mxu0 0.0
  %1384 = vmatpush1.xpose.msra.mxu0 0.0
  %1385 = vmatprep.subr.mxu0 0.0
  %1386 = vmatpush1.xpose.msra.mxu0 0.0
  %1387 = vmatprep.subr.mxu0 0.0
  %1388 = vmatpush1.xpose.msra.mxu0 0.0
  %1389 = vmatprep.subr.mxu0 0.0
  %1390 = vmatpush1.xpose.msra.mxu0 0.0
  %1391 = vmatprep.subr.mxu0 0.0
  %1392 = vmatpush1.xpose.msra.mxu0 0.0
  %1393 = vmatprep.subr.mxu0 0.0
  %1394 = vmatpush1.xpose.msra.mxu0 0.0
  %1395 = vmatprep.subr.mxu0 0.0
  %1396 = vmatpush1.xpose.msra.mxu0 0.0
  %1397 = vmatprep.subr.mxu0 0.0
  %1398 = vmatpush1.xpose.msra.mxu0 0.0
  %1399 = vmatprep.subr.mxu0 0.0
  %1400 = vmatpush1.xpose.msra.mxu0 0.0
  %1401 = vmatprep.subr.mxu0 0.0
  %1402 = vmatpush1.xpose.msra.mxu0 0.0
  %1403 = vmatprep.subr.mxu0 0.0
  %1404 = vmatpush1.xpose.msra.mxu0 0.0
  %1405 = vmatprep.subr.mxu0 0.0
  %1406 = vmatpush1.xpose.msra.mxu0 0.0
  %1407 = vmatprep.subr.mxu0 0.0
  %1408 = vmatpush1.xpose.msra.mxu0 0.0
  %1409 = vmatprep.subr.mxu0 0.0
  %1410 = vmatpush1.xpose.msra.mxu0 0.0
  %1411 = vmatprep.subr.mxu0 0.0
  %1412 = vmatpush1.xpose.msra.mxu0 0.0
  %1413 = vmatprep.subr.mxu0 0.0
  %1414 = vmatpush1.xpose.msra.mxu0 0.0
  %1415 = vmatprep.subr.mxu0 0.0
  %1416 = vmatpush1.xpose.msra.mxu0 0.0
  %1417 = vmatprep.subr.mxu0 0.0
  %1418 = vmatpush1.xpose.msra.mxu0 0.0
  %1419 = vmatprep.subr.mxu0 0.0
  %1420 = vmatpush1.xpose.msra.mxu0 0.0
  %1421 = vmatprep.subr.mxu0 0.0
  %1422 = vmatpush1.xpose.msra.mxu0 0.0
  %1423 = vmatprep.subr.mxu0 0.0
  %1424 = vmatpush1.xpose.msra.mxu0 0.0
  %1425 = vmatprep.subr.mxu0 0.0
  %1426 = vmatpush1.xpose.msra.mxu0 0.0
  %1427 = vmatprep.subr.mxu0 0.0
  %1428 = vmatpush1.xpose.msra.mxu0 0.0
  %1429 = vmatprep.subr.mxu0 0.0
  %1430 = vmatpush1.xpose.msra.mxu0 0.0
  %1431 = vmatprep.mubr.f32.mxu0 0.0
  %1432 = vmatmul.mubr.f32.gmra.mrb[0].mxu0 %v1361
  %v1433 = vpop.f32.mrb[0].mxu0
  %v1434 = vadd.f32 0.0, %v1433
  %v1435 = vpop.f32.mrb[0].mxu0
  %1436 = vdwg.mxu0
  %v1437 = vmul.f32 %v1353, 0.17677669
  %v1438 = vmul.f32 %v1434, 0.17677669
  %v1439 = vadd.f32 %v1437, %v636
  %v1440 = vadd.f32 %v1438, %v640
  %v1441 = vsel %vm645, %v1439, -inf
  %1442 = vmax.xlane.f32.xlu0 %v1441
  %v1443 = vpop.xlane.xlu0 %1442
  %v1444 = vsel %vm645, %v1440, -inf
  %1445 = vmax.xlane.f32.xlu0 %v1444
  %v1446 = vpop.xlane.xlu0 %1445
  %v1447 = vsub.f32 %v1439, %v1443
  %v1448 = vsub.f32 %v1440, %v1446
  %v1449 = vmul.f32 %v1447, 1.442695
  %v1450 = vpow.pop %v1449
  %v1451 = vmul.f32 %v1448, 1.442695
  %v1452 = vpow.pop %v1451
  %v1453 = vsel %vm645, %v1450, 0.0
  %1454 = vadd.xlane.f32.xlu0 %v1453
  %v1455 = vpop.xlane.xlu0 %1454
  %v1456 = vsel %vm645, %v1452, 0.0
  %1457 = vadd.xlane.f32.xlu0 %v1456
  %v1458 = vpop.xlane.xlu0 %1457
  %v1459 = vrcp.pop %v1455
  %v1460 = vrcp.pop %v1458
  %v1461 = vmul.f32 %v1450, %v1459
  %v1462 = vmul.f32 %v1452, %v1460
  %1463 = vrot.lane.b32.xlu0 %v258, 32
  %v1464 = vpop.permute.xlu0 %1463
  %1465 = vrot.lane.b32.xlu0 %v264, 32
  %v1466 = vpop.permute.xlu0 %1465
  %v1470 = vsel %vm645, %v1461, 0
  %1472 = vmatprep.subr.mxu0 0.0
  %1473 = vmatpush1.msra.mxu0 %v1464
  %1474 = vmatprep.subr.mxu0 0.0
  %1475 = vmatpush1.msra.mxu0 %v1466
  %1476 = vmatprep.subr.mxu0 0.0
  %1477 = vmatpush1.msra.mxu0 0.0
  %1478 = vmatprep.subr.mxu0 0.0
  %1479 = vmatpush1.msra.mxu0 0.0
  %1480 = vmatprep.subr.mxu0 0.0
  %1481 = vmatpush1.msra.mxu0 0.0
  %1482 = vmatprep.subr.mxu0 0.0
  %1483 = vmatpush1.msra.mxu0 0.0
  %1484 = vmatprep.subr.mxu0 0.0
  %1485 = vmatpush1.msra.mxu0 0.0
  %1486 = vmatprep.subr.mxu0 0.0
  %1487 = vmatpush1.msra.mxu0 0.0
  %1488 = vmatprep.subr.mxu0 0.0
  %1489 = vmatpush1.msra.mxu0 0.0
  %1490 = vmatprep.subr.mxu0 0.0
  %1491 = vmatpush1.msra.mxu0 0.0
  %1492 = vmatprep.subr.mxu0 0.0
  %1493 = vmatpush1.msra.mxu0 0.0
  %1494 = vmatprep.subr.mxu0 0.0
  %1495 = vmatpush1.msra.mxu0 0.0
  %1496 = vmatprep.subr.mxu0 0.0
  %1497 = vmatpush1.msra.mxu0 0.0
  %1498 = vmatprep.subr.mxu0 0.0
  %1499 = vmatpush1.msra.mxu0 0.0
  %1500 = vmatprep.subr.mxu0 0.0
  %1501 = vmatpush1.msra.mxu0 0.0
  %1502 = vmatprep.subr.mxu0 0.0
  %1503 = vmatpush1.msra.mxu0 0.0
  %1504 = vmatprep.subr.mxu0 0.0
  %1505 = vmatpush1.msra.mxu0 0.0
  %1506 = vmatprep.subr.mxu0 0.0
  %1507 = vmatpush1.msra.mxu0 0.0
  %1508 = vmatprep.subr.mxu0 0.0
  %1509 = vmatpush1.msra.mxu0 0.0
  %1510 = vmatprep.subr.mxu0 0.0
  %1511 = vmatpush1.msra.mxu0 0.0
  %1512 = vmatprep.subr.mxu0 0.0
  %1513 = vmatpush1.msra.mxu0 0.0
  %1514 = vmatprep.subr.mxu0 0.0
  %1515 = vmatpush1.msra.mxu0 0.0
  %1516 = vmatprep.subr.mxu0 0.0
  %1517 = vmatpush1.msra.mxu0 0.0
  %1518 = vmatprep.subr.mxu0 0.0
  %1519 = vmatpush1.msra.mxu0 0.0
  %1520 = vmatprep.subr.mxu0 0.0
  %1521 = vmatpush1.msra.mxu0 0.0
  %1522 = vmatprep.subr.mxu0 0.0
  %1523 = vmatpush1.msra.mxu0 0.0
  %1524 = vmatprep.subr.mxu0 0.0
  %1525 = vmatpush1.msra.mxu0 0.0
  %1526 = vmatprep.subr.mxu0 0.0
  %1527 = vmatpush1.msra.mxu0 0.0
  %1528 = vmatprep.subr.mxu0 0.0
  %1529 = vmatpush1.msra.mxu0 0.0
  %1530 = vmatprep.subr.mxu0 0.0
  %1531 = vmatpush1.msra.mxu0 0.0
  %1532 = vmatprep.subr.mxu0 0.0
  %1533 = vmatpush1.msra.mxu0 0.0
  %1534 = vmatprep.subr.mxu0 0.0
  %1535 = vmatpush1.msra.mxu0 0.0
  %1536 = vmatprep.mubr.f32.mxu0 0.0
  %1537 = vmatmul.mubr.f32.gmra.mrb[0].mxu0 %v1470
  %v1538 = vpop.f32.mrb[0].mxu0
  %v1539 = vadd.f32 0.0, %v1538
  %v1540 = vpop.f32.mrb[0].mxu0
  %1541 = vdwg.mxu0
  %1542 = vrot.lane.b32.xlu0 %v270, 32
  %v1543 = vpop.permute.xlu0 %1542
  %1544 = vrot.lane.b32.xlu0 %v276, 32
  %v1545 = vpop.permute.xlu0 %1544
  %v1549 = vsel %vm645, %v1462, 0
  %1551 = vmatprep.subr.mxu0 0.0
  %1552 = vmatpush1.msra.mxu0 %v1543
  %1553 = vmatprep.subr.mxu0 0.0
  %1554 = vmatpush1.msra.mxu0 %v1545
  %1555 = vmatprep.subr.mxu0 0.0
  %1556 = vmatpush1.msra.mxu0 0.0
  %1557 = vmatprep.subr.mxu0 0.0
  %1558 = vmatpush1.msra.mxu0 0.0
  %1559 = vmatprep.subr.mxu0 0.0
  %1560 = vmatpush1.msra.mxu0 0.0
  %1561 = vmatprep.subr.mxu0 0.0
  %1562 = vmatpush1.msra.mxu0 0.0
  %1563 = vmatprep.subr.mxu0 0.0
  %1564 = vmatpush1.msra.mxu0 0.0
  %1565 = vmatprep.subr.mxu0 0.0
  %1566 = vmatpush1.msra.mxu0 0.0
  %1567 = vmatprep.subr.mxu0 0.0
  %1568 = vmatpush1.msra.mxu0 0.0
  %1569 = vmatprep.subr.mxu0 0.0
  %1570 = vmatpush1.msra.mxu0 0.0
  %1571 = vmatprep.subr.mxu0 0.0
  %1572 = vmatpush1.msra.mxu0 0.0
  %1573 = vmatprep.subr.mxu0 0.0
  %1574 = vmatpush1.msra.mxu0 0.0
  %1575 = vmatprep.subr.mxu0 0.0
  %1576 = vmatpush1.msra.mxu0 0.0
  %1577 = vmatprep.subr.mxu0 0.0
  %1578 = vmatpush1.msra.mxu0 0.0
  %1579 = vmatprep.subr.mxu0 0.0
  %1580 = vmatpush1.msra.mxu0 0.0
  %1581 = vmatprep.subr.mxu0 0.0
  %1582 = vmatpush1.msra.mxu0 0.0
  %1583 = vmatprep.subr.mxu0 0.0
  %1584 = vmatpush1.msra.mxu0 0.0
  %1585 = vmatprep.subr.mxu0 0.0
  %1586 = vmatpush1.msra.mxu0 0.0
  %1587 = vmatprep.subr.mxu0 0.0
  %1588 = vmatpush1.msra.mxu0 0.0
  %1589 = vmatprep.subr.mxu0 0.0
  %1590 = vmatpush1.msra.mxu0 0.0
  %1591 = vmatprep.subr.mxu0 0.0
  %1592 = vmatpush1.msra.mxu0 0.0
  %1593 = vmatprep.subr.mxu0 0.0
  %1594 = vmatpush1.msra.mxu0 0.0
  %1595 = vmatprep.subr.mxu0 0.0
  %1596 = vmatpush1.msra.mxu0 0.0
  %1597 = vmatprep.subr.mxu0 0.0
  %1598 = vmatpush1.msra.mxu0 0.0
  %1599 = vmatprep.subr.mxu0 0.0
  %1600 = vmatpush1.msra.mxu0 0.0
  %1601 = vmatprep.subr.mxu0 0.0
  %1602 = vmatpush1.msra.mxu0 0.0
  %1603 = vmatprep.subr.mxu0 0.0
  %1604 = vmatpush1.msra.mxu0 0.0
  %1605 = vmatprep.subr.mxu0 0.0
  %1606 = vmatpush1.msra.mxu0 0.0
  %1607 = vmatprep.subr.mxu0 0.0
  %1608 = vmatpush1.msra.mxu0 0.0
  %1609 = vmatprep.subr.mxu0 0.0
  %1610 = vmatpush1.msra.mxu0 0.0
  %1611 = vmatprep.subr.mxu0 0.0
  %1612 = vmatpush1.msra.mxu0 0.0
  %1613 = vmatprep.subr.mxu0 0.0
  %1614 = vmatpush1.msra.mxu0 0.0
  %1615 = vmatprep.mubr.f32.mxu0 0.0
  %1616 = vmatmul.mubr.f32.gmra.mrb[0].mxu0 %v1549
  %v1617 = vpop.f32.mrb[0].mxu0
  %v1618 = vadd.f32 0.0, %v1617
  %v1619 = vpop.f32.mrb[0].mxu0
  %1620 = vdwg.mxu0
  %s1621 = scalar_lea.vmem %s5, 32
  %v1622 = vld [vmem:[%s1621] sm:$0xff]
  %v1623 = vld [vmem:[%s1621 + $0x8] sm:$0xff]
  %v1624 = vld [vmem:[%s1621 + $0x10] sm:$0xff]
  %v1625 = vld [vmem:[%s1621 + $0x18] sm:$0xff]
  %v1627 = vsel %vm65, %v1539, 0
  %v1630 = vsel %vm65, %v1618, 0
  %1632 = vmatprep.subr.mxu0 0.0
  %1633 = vmatpush1.msra.mxu0 %v1622
  %1634 = vmatprep.subr.mxu0 0.0
  %1635 = vmatpush1.msra.mxu0 %v1623
  %1636 = vmatprep.subr.mxu0 0.0
  %1637 = vmatpush1.msra.mxu0 %v1624
  %1638 = vmatprep.subr.mxu0 0.0
  %1639 = vmatpush1.msra.mxu0 %v1625
  %1640 = vmatprep.subr.mxu0 0.0
  %1641 = vmatpush1.msra.mxu0 0.0
  %1642 = vmatprep.subr.mxu0 0.0
  %1643 = vmatpush1.msra.mxu0 0.0
  %1644 = vmatprep.subr.mxu0 0.0
  %1645 = vmatpush1.msra.mxu0 0.0
  %1646 = vmatprep.subr.mxu0 0.0
  %1647 = vmatpush1.msra.mxu0 0.0
  %1648 = vmatprep.subr.mxu0 0.0
  %1649 = vmatpush1.msra.mxu0 0.0
  %1650 = vmatprep.subr.mxu0 0.0
  %1651 = vmatpush1.msra.mxu0 0.0
  %1652 = vmatprep.subr.mxu0 0.0
  %1653 = vmatpush1.msra.mxu0 0.0
  %1654 = vmatprep.subr.mxu0 0.0
  %1655 = vmatpush1.msra.mxu0 0.0
  %1656 = vmatprep.subr.mxu0 0.0
  %1657 = vmatpush1.msra.mxu0 0.0
  %1658 = vmatprep.subr.mxu0 0.0
  %1659 = vmatpush1.msra.mxu0 0.0
  %1660 = vmatprep.subr.mxu0 0.0
  %1661 = vmatpush1.msra.mxu0 0.0
  %1662 = vmatprep.subr.mxu0 0.0
  %1663 = vmatpush1.msra.mxu0 0.0
  %1664 = vmatprep.subr.mxu0 0.0
  %1665 = vmatpush1.msra.mxu0 0.0
  %1666 = vmatprep.subr.mxu0 0.0
  %1667 = vmatpush1.msra.mxu0 0.0
  %1668 = vmatprep.subr.mxu0 0.0
  %1669 = vmatpush1.msra.mxu0 0.0
  %1670 = vmatprep.subr.mxu0 0.0
  %1671 = vmatpush1.msra.mxu0 0.0
  %1672 = vmatprep.subr.mxu0 0.0
  %1673 = vmatpush1.msra.mxu0 0.0
  %1674 = vmatprep.subr.mxu0 0.0
  %1675 = vmatpush1.msra.mxu0 0.0
  %1676 = vmatprep.subr.mxu0 0.0
  %1677 = vmatpush1.msra.mxu0 0.0
  %1678 = vmatprep.subr.mxu0 0.0
  %1679 = vmatpush1.msra.mxu0 0.0
  %1680 = vmatprep.subr.mxu0 0.0
  %1681 = vmatpush1.msra.mxu0 0.0
  %1682 = vmatprep.subr.mxu0 0.0
  %1683 = vmatpush1.msra.mxu0 0.0
  %1684 = vmatprep.subr.mxu0 0.0
  %1685 = vmatpush1.msra.mxu0 0.0
  %1686 = vmatprep.subr.mxu0 0.0
  %1687 = vmatpush1.msra.mxu0 0.0
  %1688 = vmatprep.subr.mxu0 0.0
  %1689 = vmatpush1.msra.mxu0 0.0
  %1690 = vmatprep.subr.mxu0 0.0
  %1691 = vmatpush1.msra.mxu0 0.0
  %1692 = vmatprep.subr.mxu0 0.0
  %1693 = vmatpush1.msra.mxu0 0.0
  %1694 = vmatprep.subr.mxu0 0.0
  %1695 = vmatpush1.msra.mxu0 0.0
  %1696 = vmatprep.mubr.f32.mxu0 0.0
  %1697 = vmatmul.mubr.f32.gmra.mrb[0].mxu0 %v1627
  %v1698 = vpop.f32.mrb[0].mxu0
  %v1699 = vadd.f32 0.0, %v1698
  %v1700 = vpop.f32.mrb[0].mxu0
  %1701 = vmatprep.mubr.f32.mxu0 0.0
  %1702 = vmatmul.mubr.f32.gmra.mrb[0].mxu0 %v1630
  %v1703 = vpop.f32.mrb[0].mxu0
  %v1704 = vadd.f32 0.0, %v1703
  %v1705 = vpop.f32.mrb[0].mxu0
  %1706 = vdwg.mxu0
  %v1707 = vadd.f32 %v1187, %v1699
  %v1708 = vadd.f32 %v1188, %v1704
  %v1709 = vld [vmem:[%s8 + $0x1] sm:$0x1]
  %v1710 = vld [vmem:[%s9 + $0x1] sm:$0x1]
  %v1711 = vsel %vm65, %v1707, 0.0
  %1712 = vadd.xlane.f32.xlu0 %v1711
  %v1713 = vpop.xlane.xlu0 %1712
  %v1714 = vsel %vm65, %v1708, 0.0
  %1715 = vadd.xlane.f32.xlu0 %v1714
  %v1716 = vpop.xlane.xlu0 %1715
  %v1717 = vmul.f32 %v1713, %v921
  %v1718 = vmul.f32 %v1716, %v921
  %v1719 = vsub.f32 %v1707, %v1717
  %v1720 = vsub.f32 %v1708, %v1718
  %v1721 = vmul.f32 %v1719, %v1719
  %v1722 = vmul.f32 %v1720, %v1720
  %v1723 = vsel %vm65, %v1721, 0.0
  %1724 = vadd.xlane.f32.xlu0 %v1723
  %v1725 = vpop.xlane.xlu0 %1724
  %v1726 = vsel %vm65, %v1722, 0.0
  %1727 = vadd.xlane.f32.xlu0 %v1726
  %v1728 = vpop.xlane.xlu0 %1727
  %v1729 = vmul.f32 %v1725, %v921
  %v1730 = vmul.f32 %v1728, %v921
  %v1731 = vadd.f32 %v1729, 1e-12
  %v1732 = vadd.f32 %v1730, 1e-12
  %v1733 = vrsqrt.pop %v1731
  %v1734 = vrsqrt.pop %v1732
  %v1735 = vmul.f32 %v1719, %v1733
  %v1736 = vmul.f32 %v1720, %v1734
  %v1737 = vlaneseq
  %v1738 = vshrl.u32 %v1737, 7
  %v1739 = vsub.s32 0, %v1738
  %v1740 = vrot.slane %v1709, %v1739
  %v1741 = vmul.f32 %v1735, %v1740
  %v1742 = vmul.f32 %v1736, %v1740
  %v1743 = vlaneseq
  %v1744 = vshrl.u32 %v1743, 7
  %v1745 = vsub.s32 0, %v1744
  %v1746 = vrot.slane %v1710, %v1745
  %v1747 = vadd.f32 %v1741, %v1746
  %v1748 = vadd.f32 %v1742, %v1746
  %s1749 = scalar_lea.vmem %s6, 32
  %v1750 = vld [vmem:[%s1749] sm:$0xff]
  %v1751 = vld [vmem:[%s1749 + $0x8] sm:$0xff]
  %v1752 = vld [vmem:[%s1749 + $0x10] sm:$0xff]
  %v1753 = vld [vmem:[%s1749 + $0x18] sm:$0xff]
  %v1755 = vsel %vm65, %v1747, 0
  %v1758 = vsel %vm65, %v1748, 0
  %1760 = vmatprep.subr.mxu0 0.0
  %1761 = vmatpush1.msra.mxu0 %v1750
  %1762 = vmatprep.subr.mxu0 0.0
  %1763 = vmatpush1.msra.mxu0 %v1751
  %1764 = vmatprep.subr.mxu0 0.0
  %1765 = vmatpush1.msra.mxu0 %v1752
  %1766 = vmatprep.subr.mxu0 0.0
  %1767 = vmatpush1.msra.mxu0 %v1753
  %1768 = vmatprep.subr.mxu0 0.0
  %1769 = vmatpush1.msra.mxu0 0.0
  %1770 = vmatprep.subr.mxu0 0.0
  %1771 = vmatpush1.msra.mxu0 0.0
  %1772 = vmatprep.subr.mxu0 0.0
  %1773 = vmatpush1.msra.mxu0 0.0
  %1774 = vmatprep.subr.mxu0 0.0
  %1775 = vmatpush1.msra.mxu0 0.0
  %1776 = vmatprep.subr.mxu0 0.0
  %1777 = vmatpush1.msra.mxu0 0.0
  %1778 = vmatprep.subr.mxu0 0.0
  %1779 = vmatpush1.msra.mxu0 0.0
  %1780 = vmatprep.subr.mxu0 0.0
  %1781 = vmatpush1.msra.mxu0 0.0
  %1782 = vmatprep.subr.mxu0 0.0
  %1783 = vmatpush1.msra.mxu0 0.0
  %1784 = vmatprep.subr.mxu0 0.0
  %1785 = vmatpush1.msra.mxu0 0.0
  %1786 = vmatprep.subr.mxu0 0.0
  %1787 = vmatpush1.msra.mxu0 0.0
  %1788 = vmatprep.subr.mxu0 0.0
  %1789 = vmatpush1.msra.mxu0 0.0
  %1790 = vmatprep.subr.mxu0 0.0
  %1791 = vmatpush1.msra.mxu0 0.0
  %1792 = vmatprep.subr.mxu0 0.0
  %1793 = vmatpush1.msra.mxu0 0.0
  %1794 = vmatprep.subr.mxu0 0.0
  %1795 = vmatpush1.msra.mxu0 0.0
  %1796 = vmatprep.subr.mxu0 0.0
  %1797 = vmatpush1.msra.mxu0 0.0
  %1798 = vmatprep.subr.mxu0 0.0
  %1799 = vmatpush1.msra.mxu0 0.0
  %1800 = vmatprep.subr.mxu0 0.0
  %1801 = vmatpush1.msra.mxu0 0.0
  %1802 = vmatprep.subr.mxu0 0.0
  %1803 = vmatpush1.msra.mxu0 0.0
  %1804 = vmatprep.subr.mxu0 0.0
  %1805 = vmatpush1.msra.mxu0 0.0
  %1806 = vmatprep.subr.mxu0 0.0
  %1807 = vmatpush1.msra.mxu0 0.0
  %1808 = vmatprep.subr.mxu0 0.0
  %1809 = vmatpush1.msra.mxu0 0.0
  %1810 = vmatprep.subr.mxu0 0.0
  %1811 = vmatpush1.msra.mxu0 0.0
  %1812 = vmatprep.subr.mxu0 0.0
  %1813 = vmatpush1.msra.mxu0 0.0
  %1814 = vmatprep.subr.mxu0 0.0
  %1815 = vmatpush1.msra.mxu0 0.0
  %1816 = vmatprep.subr.mxu0 0.0
  %1817 = vmatpush1.msra.mxu0 0.0
  %1818 = vmatprep.subr.mxu0 0.0
  %1819 = vmatpush1.msra.mxu0 0.0
  %1820 = vmatprep.subr.mxu0 0.0
  %1821 = vmatpush1.msra.mxu0 0.0
  %1822 = vmatprep.subr.mxu0 0.0
  %1823 = vmatpush1.msra.mxu0 0.0
  %1824 = vmatprep.mubr.f32.mxu0 0.0
  %1825 = vmatmul.mubr.f32.gmra.mrb[0].mxu0 %v1755
  %v1826 = vpop.f32.mrb[0].mxu0
  %v1827 = vadd.f32 0.0, %v1826
  %v1828 = vpop.f32.mrb[0].mxu0
  %1829 = vmatprep.mubr.f32.mxu0 0.0
  %1830 = vmatmul.mubr.f32.gmra.mrb[0].mxu0 %v1758
  %v1831 = vpop.f32.mrb[0].mxu0
  %v1832 = vadd.f32 0.0, %v1831
  %v1833 = vpop.f32.mrb[0].mxu0
  %1834 = vdwg.mxu0
  %v1835 = vmul.f32 %v1827, %v1827
  %v1836 = vmul.f32 %v1832, %v1832
  %v1837 = vmul.f32 %v1827, %v1835
  %v1838 = vmul.f32 %v1832, %v1836
  %v1839 = vmul.f32 %v1837, 0.044715
  %v1840 = vmul.f32 %v1838, 0.044715
  %v1841 = vadd.f32 %v1827, %v1839
  %v1842 = vadd.f32 %v1832, %v1840
  %v1843 = vmul.f32 %v1841, 0.7978846
  %v1844 = vmul.f32 %v1842, 0.7978846
  %v1845 = vtanh.pop %v1843
  %v1846 = vtanh.pop %v1844
  %v1847 = vadd.f32 %v1845, 1.0
  %v1848 = vadd.f32 %v1846, 1.0
  %v1849 = vmul.f32 %v1847, 0.5
  %v1850 = vmul.f32 %v1848, 0.5
  %v1851 = vmul.f32 %v1827, %v1849
  %v1852 = vmul.f32 %v1832, %v1850
  %s1853 = scalar_lea.vmem %s7, 64
  %v1854 = vld [vmem:[%s1853] sm:$0xff]
  %v1855 = vld [vmem:[%s1853 + $0x8] sm:$0xff]
  %v1856 = vld [vmem:[%s1853 + $0x10] sm:$0xff]
  %v1857 = vld [vmem:[%s1853 + $0x18] sm:$0xff]
  %v1858 = vld [vmem:[%s1853 + $0x20] sm:$0xff]
  %v1859 = vld [vmem:[%s1853 + $0x28] sm:$0xff]
  %v1860 = vld [vmem:[%s1853 + $0x30] sm:$0xff]
  %v1861 = vld [vmem:[%s1853 + $0x38] sm:$0xff]
  %v1863 = vsel %vm1065, %v1851, 0
  %v1866 = vsel %vm1065, %v1852, 0
  %1868 = vmatprep.subr.mxu0 0.0
  %1869 = vmatpush1.msra.mxu0 %v1854
  %1870 = vmatprep.subr.mxu0 0.0
  %1871 = vmatpush1.msra.mxu0 %v1855
  %1872 = vmatprep.subr.mxu0 0.0
  %1873 = vmatpush1.msra.mxu0 %v1856
  %1874 = vmatprep.subr.mxu0 0.0
  %1875 = vmatpush1.msra.mxu0 %v1857
  %1876 = vmatprep.subr.mxu0 0.0
  %1877 = vmatpush1.msra.mxu0 %v1858
  %1878 = vmatprep.subr.mxu0 0.0
  %1879 = vmatpush1.msra.mxu0 %v1859
  %1880 = vmatprep.subr.mxu0 0.0
  %1881 = vmatpush1.msra.mxu0 %v1860
  %1882 = vmatprep.subr.mxu0 0.0
  %1883 = vmatpush1.msra.mxu0 %v1861
  %1884 = vmatprep.subr.mxu0 0.0
  %1885 = vmatpush1.msra.mxu0 0.0
  %1886 = vmatprep.subr.mxu0 0.0
  %1887 = vmatpush1.msra.mxu0 0.0
  %1888 = vmatprep.subr.mxu0 0.0
  %1889 = vmatpush1.msra.mxu0 0.0
  %1890 = vmatprep.subr.mxu0 0.0
  %1891 = vmatpush1.msra.mxu0 0.0
  %1892 = vmatprep.subr.mxu0 0.0
  %1893 = vmatpush1.msra.mxu0 0.0
  %1894 = vmatprep.subr.mxu0 0.0
  %1895 = vmatpush1.msra.mxu0 0.0
  %1896 = vmatprep.subr.mxu0 0.0
  %1897 = vmatpush1.msra.mxu0 0.0
  %1898 = vmatprep.subr.mxu0 0.0
  %1899 = vmatpush1.msra.mxu0 0.0
  %1900 = vmatprep.subr.mxu0 0.0
  %1901 = vmatpush1.msra.mxu0 0.0
  %1902 = vmatprep.subr.mxu0 0.0
  %1903 = vmatpush1.msra.mxu0 0.0
  %1904 = vmatprep.subr.mxu0 0.0
  %1905 = vmatpush1.msra.mxu0 0.0
  %1906 = vmatprep.subr.mxu0 0.0
  %1907 = vmatpush1.msra.mxu0 0.0
  %1908 = vmatprep.subr.mxu0 0.0
  %1909 = vmatpush1.msra.mxu0 0.0
  %1910 = vmatprep.subr.mxu0 0.0
  %1911 = vmatpush1.msra.mxu0 0.0
  %1912 = vmatprep.subr.mxu0 0.0
  %1913 = vmatpush1.msra.mxu0 0.0
  %1914 = vmatprep.subr.mxu0 0.0
  %1915 = vmatpush1.msra.mxu0 0.0
  %1916 = vmatprep.subr.mxu0 0.0
  %1917 = vmatpush1.msra.mxu0 0.0
  %1918 = vmatprep.subr.mxu0 0.0
  %1919 = vmatpush1.msra.mxu0 0.0
  %1920 = vmatprep.subr.mxu0 0.0
  %1921 = vmatpush1.msra.mxu0 0.0
  %1922 = vmatprep.subr.mxu0 0.0
  %1923 = vmatpush1.msra.mxu0 0.0
  %1924 = vmatprep.subr.mxu0 0.0
  %1925 = vmatpush1.msra.mxu0 0.0
  %1926 = vmatprep.subr.mxu0 0.0
  %1927 = vmatpush1.msra.mxu0 0.0
  %1928 = vmatprep.subr.mxu0 0.0
  %1929 = vmatpush1.msra.mxu0 0.0
  %1930 = vmatprep.subr.mxu0 0.0
  %1931 = vmatpush1.msra.mxu0 0.0
  %1932 = vmatprep.mubr.f32.mxu0 0.0
  %1933 = vmatmul.mubr.f32.gmra.mrb[0].mxu0 %v1863
  %v1934 = vpop.f32.mrb[0].mxu0
  %v1935 = vadd.f32 0.0, %v1934
  %v1936 = vpop.f32.mrb[0].mxu0
  %1937 = vmatprep.mubr.f32.mxu0 0.0
  %1938 = vmatmul.mubr.f32.gmra.mrb[0].mxu0 %v1866
  %v1939 = vpop.f32.mrb[0].mxu0
  %v1940 = vadd.f32 0.0, %v1939
  %v1941 = vpop.f32.mrb[0].mxu0
  %1942 = vdwg.mxu0
  %v1943 = vadd.f32 %v1747, %v1935
  %v1944 = vadd.f32 %v1748, %v1940
  %v1945 = vld [vmem:[%s10 + $0x1] sm:$0x1]
  %v1946 = vld [vmem:[%s11 + $0x1] sm:$0x1]
  %v1947 = vsel %vm65, %v1943, 0.0
  %1948 = vadd.xlane.f32.xlu0 %v1947
  %v1949 = vpop.xlane.xlu0 %1948
  %v1950 = vsel %vm65, %v1944, 0.0
  %1951 = vadd.xlane.f32.xlu0 %v1950
  %v1952 = vpop.xlane.xlu0 %1951
  %v1953 = vmul.f32 %v1949, %v921
  %v1954 = vmul.f32 %v1952, %v921
  %v1955 = vsub.f32 %v1943, %v1953
  %v1956 = vsub.f32 %v1944, %v1954
  %v1957 = vmul.f32 %v1955, %v1955
  %v1958 = vmul.f32 %v1956, %v1956
  %v1959 = vsel %vm65, %v1957, 0.0
  %1960 = vadd.xlane.f32.xlu0 %v1959
  %v1961 = vpop.xlane.xlu0 %1960
  %v1962 = vsel %vm65, %v1958, 0.0
  %1963 = vadd.xlane.f32.xlu0 %v1962
  %v1964 = vpop.xlane.xlu0 %1963
  %v1965 = vmul.f32 %v1961, %v921
  %v1966 = vmul.f32 %v1964, %v921
  %v1967 = vadd.f32 %v1965, 1e-12
  %v1968 = vadd.f32 %v1966, 1e-12
  %v1969 = vrsqrt.pop %v1967
  %v1970 = vrsqrt.pop %v1968
  %v1971 = vmul.f32 %v1955, %v1969
  %v1972 = vmul.f32 %v1956, %v1970
  %v1973 = vlaneseq
  %v1974 = vshrl.u32 %v1973, 7
  %v1975 = vsub.s32 0, %v1974
  %v1976 = vrot.slane %v1945, %v1975
  %v1977 = vmul.f32 %v1971, %v1976
  %v1978 = vmul.f32 %v1972, %v1976
  %v1979 = vlaneseq
  %v1980 = vshrl.u32 %v1979, 7
  %v1981 = vsub.s32 0, %v1980
  %v1982 = vrot.slane %v1946, %v1981
  %v1983 = vadd.f32 %v1977, %v1982
  %v1984 = vadd.f32 %v1978, %v1982
  %v1985 = vld [vmem:[%s14] sm:$0xff]
  %v1986 = vld [vmem:[%s14 + $0x8] sm:$0xff]
  %v1987 = vld [vmem:[%s14 + $0x10] sm:$0xff]
  %v1988 = vld [vmem:[%s14 + $0x18] sm:$0xff]
  %v1989 = vld [vmem:[%s14 + $0x20] sm:$0xff]
  %v1990 = vld [vmem:[%s14 + $0x28] sm:$0xff]
  %v1991 = vld [vmem:[%s14 + $0x30] sm:$0xff]
  %v1992 = vld [vmem:[%s14 + $0x38] sm:$0xff]
  %v1993 = vld [vmem:[%s15] sm:$0x3]
  %v1995 = vlaneseq
  %v1996 = vshrl.u32 %v1995, 7
  %v1997 = vsub.s32 0, %v1996
  %v1998 = vrot.slane %v1993, %v1997
  %v1999 = vlaneseq
  %v2000 = vshrl.u32 %v1999, 7
  %v2001 = vsub.s32 1, %v2000
  %v2002 = vrot.slane %v1993, %v2001
  %v2006 = vsel %vm65, %v1983, 0
  %v2009 = vsel %vm65, %v1984, 0
  %2011 = vmatprep.subr.mxu0 %v1986
  %2012 = vmatpush1.msra.mxu0 %v1985
  %2013 = vmatprep.subr.mxu0 %v1988
  %2014 = vmatpush1.msra.mxu0 %v1987
  %2015 = vmatprep.subr.mxu0 %v1990
  %2016 = vmatpush1.msra.mxu0 %v1989
  %2017 = vmatprep.subr.mxu0 %v1992
  %2018 = vmatpush1.msra.mxu0 %v1991
  %2019 = vmatprep.subr.mxu0 0.0
  %2020 = vmatpush1.msra.mxu0 0.0
  %2021 = vmatprep.subr.mxu0 0.0
  %2022 = vmatpush1.msra.mxu0 0.0
  %2023 = vmatprep.subr.mxu0 0.0
  %2024 = vmatpush1.msra.mxu0 0.0
  %2025 = vmatprep.subr.mxu0 0.0
  %2026 = vmatpush1.msra.mxu0 0.0
  %2027 = vmatprep.subr.mxu0 0.0
  %2028 = vmatpush1.msra.mxu0 0.0
  %2029 = vmatprep.subr.mxu0 0.0
  %2030 = vmatpush1.msra.mxu0 0.0
  %2031 = vmatprep.subr.mxu0 0.0
  %2032 = vmatpush1.msra.mxu0 0.0
  %2033 = vmatprep.subr.mxu0 0.0
  %2034 = vmatpush1.msra.mxu0 0.0
  %2035 = vmatprep.subr.mxu0 0.0
  %2036 = vmatpush1.msra.mxu0 0.0
  %2037 = vmatprep.subr.mxu0 0.0
  %2038 = vmatpush1.msra.mxu0 0.0
  %2039 = vmatprep.subr.mxu0 0.0
  %2040 = vmatpush1.msra.mxu0 0.0
  %2041 = vmatprep.subr.mxu0 0.0
  %2042 = vmatpush1.msra.mxu0 0.0
  %2043 = vmatprep.subr.mxu0 0.0
  %2044 = vmatpush1.msra.mxu0 0.0
  %2045 = vmatprep.subr.mxu0 0.0
  %2046 = vmatpush1.msra.mxu0 0.0
  %2047 = vmatprep.subr.mxu0 0.0
  %2048 = vmatpush1.msra.mxu0 0.0
  %2049 = vmatprep.subr.mxu0 0.0
  %2050 = vmatpush1.msra.mxu0 0.0
  %2051 = vmatprep.subr.mxu0 0.0
  %2052 = vmatpush1.msra.mxu0 0.0
  %2053 = vmatprep.subr.mxu0 0.0
  %2054 = vmatpush1.msra.mxu0 0.0
  %2055 = vmatprep.subr.mxu0 0.0
  %2056 = vmatpush1.msra.mxu0 0.0
  %2057 = vmatprep.subr.mxu0 0.0
  %2058 = vmatpush1.msra.mxu0 0.0
  %2059 = vmatprep.subr.mxu0 0.0
  %2060 = vmatpush1.msra.mxu0 0.0
  %2061 = vmatprep.subr.mxu0 0.0
  %2062 = vmatpush1.msra.mxu0 0.0
  %2063 = vmatprep.subr.mxu0 0.0
  %2064 = vmatpush1.msra.mxu0 0.0
  %2065 = vmatprep.subr.mxu0 0.0
  %2066 = vmatpush1.msra.mxu0 0.0
  %2067 = vmatprep.subr.mxu0 0.0
  %2068 = vmatpush1.msra.mxu0 0.0
  %2069 = vmatprep.subr.mxu0 0.0
  %2070 = vmatpush1.msra.mxu0 0.0
  %2071 = vmatprep.subr.mxu0 0.0
  %2072 = vmatpush1.msra.mxu0 0.0
  %2073 = vmatprep.subr.mxu0 0.0
  %2074 = vmatpush1.msra.mxu0 0.0
  %2075 = vmatprep.mubr.f32.mxu0 0.0
  %2076 = vmatmul.mubr.f32.gmra.mrb[0].mxu0 %v2006
  %v2077 = vpop.f32.mrb[0].mxu0
  %v2078 = vadd.f32 %v1998, %v2077
  %v2079 = vpop.f32.mrb[0].mxu0
  %v2080 = vadd.f32 %v2002, %v2079
  %2081 = vmatprep.mubr.f32.mxu0 0.0
  %2082 = vmatmul.mubr.f32.gmra.mrb[0].mxu0 %v2009
  %v2083 = vpop.f32.mrb[0].mxu0
  %v2084 = vadd.f32 %v1998, %v2083
  %v2085 = vpop.f32.mrb[0].mxu0
  %v2086 = vadd.f32 %v2002, %v2085
  %2087 = vdwg.mxu0
  %v2088 = vld [vmem:[%s13] sm:$0x3]
  %v2090 = vlaneseq
  %v2091 = vshrl.u32 %v2090, 7
  %v2092 = vsub.s32 0, %v2091
  %v2093 = vrot.slane %v2088, %v2092
  %v2094 = vlaneseq
  %v2095 = vshrl.u32 %v2094, 7
  %v2096 = vsub.s32 1, %v2095
  %v2097 = vrot.slane %v2088, %v2096
  %v2100 = vadd.f32 %v260, %v2093
  %v2101 = vadd.f32 %v347, %v2097
  %v2102 = vadd.f32 %v266, %v2093
  %v2103 = vadd.f32 %v352, %v2097
  %v2104 = vadd.f32 %v272, %v2093
  %v2105 = vadd.f32 %v357, %v2097
  %v2106 = vadd.f32 %v278, %v2093
  %v2107 = vadd.f32 %v362, %v2097
  %v2112 = vcombine.low %v2078, %v2080
  %v2113 = vcombine.high %v2078, %v2080
  %v2115 = vunpack.c.l.s4 1966171168
  %v2116 = vunpack.c.0.s8 %v2115
  %v2117 = vlaneseq
  %v2118 = vshrl.u32 %v2117, 7
  %v2119 = vsub.s32 %v2116, %v2118
  %v2120 = vrot.slane %v2112, %v2119
  %v2122 = vunpack.c.l.s4 1966171168
  %v2123 = vunpack.c.0.s8 %v2122
  %v2124 = vlaneseq
  %v2125 = vshrl.u32 %v2124, 7
  %v2126 = vsub.s32 %v2123, %v2125
  %v2127 = vrot.slane %v2113, %v2126
  %v2128 = vcombine.high %v2120, %v2120
  %v2129 = vcombine.high %v2127, %v2127
  %v2131 = vunpack.c.l.s4 1966171168
  %v2132 = vunpack.c.0.s8 %v2131
  %v2133 = vlaneseq
  %v2134 = vshrl.u32 %v2133, 7
  %v2135 = vsub.s32 %v2132, %v2134
  %v2136 = vrot.slane %v2120, %v2135
  %v2138 = vunpack.c.l.s4 1966171168
  %v2139 = vunpack.c.0.s8 %v2138
  %v2140 = vlaneseq
  %v2141 = vshrl.u32 %v2140, 7
  %v2142 = vsub.s32 %v2139, %v2141
  %v2143 = vrot.slane %v2127, %v2142
  %v2145 = vunpack.c.l.s4 1966171168
  %v2146 = vunpack.c.0.s8 %v2145
  %v2147 = vlaneseq
  %v2148 = vshrl.u32 %v2147, 7
  %v2149 = vsub.s32 %v2146, %v2148
  %v2150 = vrot.slane %v2128, %v2149
  %v2152 = vunpack.c.l.s4 1966171168
  %v2153 = vunpack.c.0.s8 %v2152
  %v2154 = vlaneseq
  %v2155 = vshrl.u32 %v2154, 7
  %v2156 = vsub.s32 %v2153, %v2155
  %v2157 = vrot.slane %v2129, %v2156
  %v2158 = vcombine.high %v2136, %v2136
  %v2159 = vcombine.high %v2143, %v2143
  %v2160 = vcombine.high %v2150, %v2150
  %v2161 = vcombine.high %v2157, %v2157
  %v2162 = vcombine.low %v2084, %v2086
  %v2163 = vcombine.high %v2084, %v2086
  %v2165 = vunpack.c.l.s4 1966171168
  %v2166 = vunpack.c.0.s8 %v2165
  %v2167 = vlaneseq
  %v2168 = vshrl.u32 %v2167, 7
  %v2169 = vsub.s32 %v2166, %v2168
  %v2170 = vrot.slane %v2162, %v2169
  %v2172 = vunpack.c.l.s4 1966171168
  %v2173 = vunpack.c.0.s8 %v2172
  %v2174 = vlaneseq
  %v2175 = vshrl.u32 %v2174, 7
  %v2176 = vsub.s32 %v2173, %v2175
  %v2177 = vrot.slane %v2163, %v2176
  %v2178 = vcombine.high %v2170, %v2170
  %v2179 = vcombine.high %v2177, %v2177
  %v2181 = vunpack.c.l.s4 1966171168
  %v2182 = vunpack.c.0.s8 %v2181
  %v2183 = vlaneseq
  %v2184 = vshrl.u32 %v2183, 7
  %v2185 = vsub.s32 %v2182, %v2184
  %v2186 = vrot.slane %v2170, %v2185
  %v2188 = vunpack.c.l.s4 1966171168
  %v2189 = vunpack.c.0.s8 %v2188
  %v2190 = vlaneseq
  %v2191 = vshrl.u32 %v2190, 7
  %v2192 = vsub.s32 %v2189, %v2191
  %v2193 = vrot.slane %v2177, %v2192
  %v2195 = vunpack.c.l.s4 1966171168
  %v2196 = vunpack.c.0.s8 %v2195
  %v2197 = vlaneseq
  %v2198 = vshrl.u32 %v2197, 7
  %v2199 = vsub.s32 %v2196, %v2198
  %v2200 = vrot.slane %v2178, %v2199
  %v2202 = vunpack.c.l.s4 1966171168
  %v2203 = vunpack.c.0.s8 %v2202
  %v2204 = vlaneseq
  %v2205 = vshrl.u32 %v2204, 7
  %v2206 = vsub.s32 %v2203, %v2205
  %v2207 = vrot.slane %v2179, %v2206
  %v2208 = vcombine.high %v2186, %v2186
  %v2209 = vcombine.high %v2193, %v2193
  %v2210 = vcombine.high %v2200, %v2200
  %v2211 = vcombine.high %v2207, %v2207
  %v2212 = vlaneseq
  %v2213 = vshrl.u32 %v2212, 7
  %v2214 = vsub.s32 0, %v2213
  %v2215 = vrot.slane %v2136, %v2214
  %v2216 = vlaneseq
  %v2217 = vshrl.u32 %v2216, 7
  %v2218 = vsub.s32 1, %v2217
  %v2219 = vrot.slane %v2136, %v2218
  %v2220 = vlaneseq
  %v2221 = vshrl.u32 %v2220, 7
  %v2222 = vsub.s32 0, %v2221
  %v2223 = vrot.slane %v2150, %v2222
  %v2224 = vlaneseq
  %v2225 = vshrl.u32 %v2224, 7
  %v2226 = vsub.s32 1, %v2225
  %v2227 = vrot.slane %v2150, %v2226
  %v2228 = vlaneseq
  %v2229 = vshrl.u32 %v2228, 7
  %v2230 = vsub.s32 0, %v2229
  %v2231 = vrot.slane %v2158, %v2230
  %v2232 = vlaneseq
  %v2233 = vshrl.u32 %v2232, 7
  %v2234 = vsub.s32 1, %v2233
  %v2235 = vrot.slane %v2158, %v2234
  %v2236 = vlaneseq
  %v2237 = vshrl.u32 %v2236, 7
  %v2238 = vsub.s32 0, %v2237
  %v2239 = vrot.slane %v2160, %v2238
  %v2240 = vlaneseq
  %v2241 = vshrl.u32 %v2240, 7
  %v2242 = vsub.s32 1, %v2241
  %v2243 = vrot.slane %v2160, %v2242
  %v2244 = vlaneseq
  %v2245 = vshrl.u32 %v2244, 7
  %v2246 = vsub.s32 0, %v2245
  %v2247 = vrot.slane %v2143, %v2246
  %v2248 = vlaneseq
  %v2249 = vshrl.u32 %v2248, 7
  %v2250 = vsub.s32 1, %v2249
  %v2251 = vrot.slane %v2143, %v2250
  %v2252 = vlaneseq
  %v2253 = vshrl.u32 %v2252, 7
  %v2254 = vsub.s32 0, %v2253
  %v2255 = vrot.slane %v2157, %v2254
  %v2256 = vlaneseq
  %v2257 = vshrl.u32 %v2256, 7
  %v2258 = vsub.s32 1, %v2257
  %v2259 = vrot.slane %v2157, %v2258
  %v2260 = vlaneseq
  %v2261 = vshrl.u32 %v2260, 7
  %v2262 = vsub.s32 0, %v2261
  %v2263 = vrot.slane %v2159, %v2262
  %v2264 = vlaneseq
  %v2265 = vshrl.u32 %v2264, 7
  %v2266 = vsub.s32 1, %v2265
  %v2267 = vrot.slane %v2159, %v2266
  %v2268 = vlaneseq
  %v2269 = vshrl.u32 %v2268, 7
  %v2270 = vsub.s32 0, %v2269
  %v2271 = vrot.slane %v2161, %v2270
  %v2272 = vlaneseq
  %v2273 = vshrl.u32 %v2272, 7
  %v2274 = vsub.s32 1, %v2273
  %v2275 = vrot.slane %v2161, %v2274
  %v2276 = vlaneseq
  %v2277 = vshrl.u32 %v2276, 7
  %v2278 = vsub.s32 0, %v2277
  %v2279 = vrot.slane %v2186, %v2278
  %v2280 = vlaneseq
  %v2281 = vshrl.u32 %v2280, 7
  %v2282 = vsub.s32 1, %v2281
  %v2283 = vrot.slane %v2186, %v2282
  %v2284 = vlaneseq
  %v2285 = vshrl.u32 %v2284, 7
  %v2286 = vsub.s32 0, %v2285
  %v2287 = vrot.slane %v2200, %v2286
  %v2288 = vlaneseq
  %v2289 = vshrl.u32 %v2288, 7
  %v2290 = vsub.s32 1, %v2289
  %v2291 = vrot.slane %v2200, %v2290
  %v2292 = vlaneseq
  %v2293 = vshrl.u32 %v2292, 7
  %v2294 = vsub.s32 0, %v2293
  %v2295 = vrot.slane %v2208, %v2294
  %v2296 = vlaneseq
  %v2297 = vshrl.u32 %v2296, 7
  %v2298 = vsub.s32 1, %v2297
  %v2299 = vrot.slane %v2208, %v2298
  %v2300 = vlaneseq
  %v2301 = vshrl.u32 %v2300, 7
  %v2302 = vsub.s32 0, %v2301
  %v2303 = vrot.slane %v2210, %v2302
  %v2304 = vlaneseq
  %v2305 = vshrl.u32 %v2304, 7
  %v2306 = vsub.s32 1, %v2305
  %v2307 = vrot.slane %v2210, %v2306
  %v2308 = vlaneseq
  %v2309 = vshrl.u32 %v2308, 7
  %v2310 = vsub.s32 0, %v2309
  %v2311 = vrot.slane %v2193, %v2310
  %v2312 = vlaneseq
  %v2313 = vshrl.u32 %v2312, 7
  %v2314 = vsub.s32 1, %v2313
  %v2315 = vrot.slane %v2193, %v2314
  %v2316 = vlaneseq
  %v2317 = vshrl.u32 %v2316, 7
  %v2318 = vsub.s32 0, %v2317
  %v2319 = vrot.slane %v2207, %v2318
  %v2320 = vlaneseq
  %v2321 = vshrl.u32 %v2320, 7
  %v2322 = vsub.s32 1, %v2321
  %v2323 = vrot.slane %v2207, %v2322
  %v2324 = vlaneseq
  %v2325 = vshrl.u32 %v2324, 7
  %v2326 = vsub.s32 0, %v2325
  %v2327 = vrot.slane %v2209, %v2326
  %v2328 = vlaneseq
  %v2329 = vshrl.u32 %v2328, 7
  %v2330 = vsub.s32 1, %v2329
  %v2331 = vrot.slane %v2209, %v2330
  %v2332 = vlaneseq
  %v2333 = vshrl.u32 %v2332, 7
  %v2334 = vsub.s32 0, %v2333
  %v2335 = vrot.slane %v2211, %v2334
  %v2336 = vlaneseq
  %v2337 = vshrl.u32 %v2336, 7
  %v2338 = vsub.s32 1, %v2337
  %v2339 = vrot.slane %v2211, %v2338
  %v2372 = vadd.f32 %v2215, %v2100
  %v2373 = vadd.f32 %v2219, %v2101
  %v2374 = vadd.f32 %v2215, %v2102
  %v2375 = vadd.f32 %v2219, %v2103
  %v2376 = vadd.f32 %v2223, %v2100
  %v2377 = vadd.f32 %v2227, %v2101
  %v2378 = vadd.f32 %v2223, %v2102
  %v2379 = vadd.f32 %v2227, %v2103
  %v2380 = vadd.f32 %v2231, %v2100
  %v2381 = vadd.f32 %v2235, %v2101
  %v2382 = vadd.f32 %v2231, %v2102
  %v2383 = vadd.f32 %v2235, %v2103
  %v2384 = vadd.f32 %v2239, %v2100
  %v2385 = vadd.f32 %v2243, %v2101
  %v2386 = vadd.f32 %v2239, %v2102
  %v2387 = vadd.f32 %v2243, %v2103
  %v2388 = vadd.f32 %v2247, %v2100
  %v2389 = vadd.f32 %v2251, %v2101
  %v2390 = vadd.f32 %v2247, %v2102
  %v2391 = vadd.f32 %v2251, %v2103
  %v2392 = vadd.f32 %v2255, %v2100
  %v2393 = vadd.f32 %v2259, %v2101
  %v2394 = vadd.f32 %v2255, %v2102
  %v2395 = vadd.f32 %v2259, %v2103
  %v2396 = vadd.f32 %v2263, %v2100
  %v2397 = vadd.f32 %v2267, %v2101
  %v2398 = vadd.f32 %v2263, %v2102
  %v2399 = vadd.f32 %v2267, %v2103
  %v2400 = vadd.f32 %v2271, %v2100
  %v2401 = vadd.f32 %v2275, %v2101
  %v2402 = vadd.f32 %v2271, %v2102
  %v2403 = vadd.f32 %v2275, %v2103
  %v2404 = vadd.f32 %v2279, %v2104
  %v2405 = vadd.f32 %v2283, %v2105
  %v2406 = vadd.f32 %v2279, %v2106
  %v2407 = vadd.f32 %v2283, %v2107
  %v2408 = vadd.f32 %v2287, %v2104
  %v2409 = vadd.f32 %v2291, %v2105
  %v2410 = vadd.f32 %v2287, %v2106
  %v2411 = vadd.f32 %v2291, %v2107
  %v2412 = vadd.f32 %v2295, %v2104
  %v2413 = vadd.f32 %v2299, %v2105
  %v2414 = vadd.f32 %v2295, %v2106
  %v2415 = vadd.f32 %v2299, %v2107
  %v2416 = vadd.f32 %v2303, %v2104
  %v2417 = vadd.f32 %v2307, %v2105
  %v2418 = vadd.f32 %v2303, %v2106
  %v2419 = vadd.f32 %v2307, %v2107
  %v2420 = vadd.f32 %v2311, %v2104
  %v2421 = vadd.f32 %v2315, %v2105
  %v2422 = vadd.f32 %v2311, %v2106
  %v2423 = vadd.f32 %v2315, %v2107
  %v2424 = vadd.f32 %v2319, %v2104
  %v2425 = vadd.f32 %v2323, %v2105
  %v2426 = vadd.f32 %v2319, %v2106
  %v2427 = vadd.f32 %v2323, %v2107
  %v2428 = vadd.f32 %v2327, %v2104
  %v2429 = vadd.f32 %v2331, %v2105
  %v2430 = vadd.f32 %v2327, %v2106
  %v2431 = vadd.f32 %v2331, %v2107
  %v2432 = vadd.f32 %v2335, %v2104
  %v2433 = vadd.f32 %v2339, %v2105
  %v2434 = vadd.f32 %v2335, %v2106
  %v2435 = vadd.f32 %v2339, %v2107
  %v2436 = vtanh.pop %v2372
  %v2437 = vtanh.pop %v2373
  %v2438 = vtanh.pop %v2374
  %v2439 = vtanh.pop %v2375
  %v2440 = vtanh.pop %v2376
  %v2441 = vtanh.pop %v2377
  %v2442 = vtanh.pop %v2378
  %v2443 = vtanh.pop %v2379
  %v2444 = vtanh.pop %v2380
  %v2445 = vtanh.pop %v2381
  %v2446 = vtanh.pop %v2382
  %v2447 = vtanh.pop %v2383
  %v2448 = vtanh.pop %v2384
  %v2449 = vtanh.pop %v2385
  %v2450 = vtanh.pop %v2386
  %v2451 = vtanh.pop %v2387
  %v2452 = vtanh.pop %v2388
  %v2453 = vtanh.pop %v2389
  %v2454 = vtanh.pop %v2390
  %v2455 = vtanh.pop %v2391
  %v2456 = vtanh.pop %v2392
  %v2457 = vtanh.pop %v2393
  %v2458 = vtanh.pop %v2394
  %v2459 = vtanh.pop %v2395
  %v2460 = vtanh.pop %v2396
  %v2461 = vtanh.pop %v2397
  %v2462 = vtanh.pop %v2398
  %v2463 = vtanh.pop %v2399
  %v2464 = vtanh.pop %v2400
  %v2465 = vtanh.pop %v2401
  %v2466 = vtanh.pop %v2402
  %v2467 = vtanh.pop %v2403
  %v2468 = vtanh.pop %v2404
  %v2469 = vtanh.pop %v2405
  %v2470 = vtanh.pop %v2406
  %v2471 = vtanh.pop %v2407
  %v2472 = vtanh.pop %v2408
  %v2473 = vtanh.pop %v2409
  %v2474 = vtanh.pop %v2410
  %v2475 = vtanh.pop %v2411
  %v2476 = vtanh.pop %v2412
  %v2477 = vtanh.pop %v2413
  %v2478 = vtanh.pop %v2414
  %v2479 = vtanh.pop %v2415
  %v2480 = vtanh.pop %v2416
  %v2481 = vtanh.pop %v2417
  %v2482 = vtanh.pop %v2418
  %v2483 = vtanh.pop %v2419
  %v2484 = vtanh.pop %v2420
  %v2485 = vtanh.pop %v2421
  %v2486 = vtanh.pop %v2422
  %v2487 = vtanh.pop %v2423
  %v2488 = vtanh.pop %v2424
  %v2489 = vtanh.pop %v2425
  %v2490 = vtanh.pop %v2426
  %v2491 = vtanh.pop %v2427
  %v2492 = vtanh.pop %v2428
  %v2493 = vtanh.pop %v2429
  %v2494 = vtanh.pop %v2430
  %v2495 = vtanh.pop %v2431
  %v2496 = vtanh.pop %v2432
  %v2497 = vtanh.pop %v2433
  %v2498 = vtanh.pop %v2434
  %v2499 = vtanh.pop %v2435
  %v2500 = vld [vmem:[%s16] sm:$0x3]
  %v2502 = vlaneseq
  %v2503 = vshrl.u32 %v2502, 7
  %v2504 = vsub.s32 0, %v2503
  %v2505 = vrot.slane %v2500, %v2504
  %v2506 = vlaneseq
  %v2507 = vshrl.u32 %v2506, 7
  %v2508 = vsub.s32 1, %v2507
  %v2509 = vrot.slane %v2500, %v2508
  %v2512 = vmul.f32 %v2436, %v2505
  %v2513 = vmul.f32 %v2437, %v2509
  %v2514 = vmul.f32 %v2438, %v2505
  %v2515 = vmul.f32 %v2439, %v2509
  %v2516 = vmul.f32 %v2440, %v2505
  %v2517 = vmul.f32 %v2441, %v2509
  %v2518 = vmul.f32 %v2442, %v2505
  %v2519 = vmul.f32 %v2443, %v2509
  %v2520 = vmul.f32 %v2444, %v2505
  %v2521 = vmul.f32 %v2445, %v2509
  %v2522 = vmul.f32 %v2446, %v2505
  %v2523 = vmul.f32 %v2447, %v2509
  %v2524 = vmul.f32 %v2448, %v2505
  %v2525 = vmul.f32 %v2449, %v2509
  %v2526 = vmul.f32 %v2450, %v2505
  %v2527 = vmul.f32 %v2451, %v2509
  %v2528 = vmul.f32 %v2452, %v2505
  %v2529 = vmul.f32 %v2453, %v2509
  %v2530 = vmul.f32 %v2454, %v2505
  %v2531 = vmul.f32 %v2455, %v2509
  %v2532 = vmul.f32 %v2456, %v2505
  %v2533 = vmul.f32 %v2457, %v2509
  %v2534 = vmul.f32 %v2458, %v2505
  %v2535 = vmul.f32 %v2459, %v2509
  %v2536 = vmul.f32 %v2460, %v2505
  %v2537 = vmul.f32 %v2461, %v2509
  %v2538 = vmul.f32 %v2462, %v2505
  %v2539 = vmul.f32 %v2463, %v2509
  %v2540 = vmul.f32 %v2464, %v2505
  %v2541 = vmul.f32 %v2465, %v2509
  %v2542 = vmul.f32 %v2466, %v2505
  %v2543 = vmul.f32 %v2467, %v2509
  %v2544 = vmul.f32 %v2468, %v2505
  %v2545 = vmul.f32 %v2469, %v2509
  %v2546 = vmul.f32 %v2470, %v2505
  %v2547 = vmul.f32 %v2471, %v2509
  %v2548 = vmul.f32 %v2472, %v2505
  %v2549 = vmul.f32 %v2473, %v2509
  %v2550 = vmul.f32 %v2474, %v2505
  %v2551 = vmul.f32 %v2475, %v2509
  %v2552 = vmul.f32 %v2476, %v2505
  %v2553 = vmul.f32 %v2477, %v2509
  %v2554 = vmul.f32 %v2478, %v2505
  %v2555 = vmul.f32 %v2479, %v2509
  %v2556 = vmul.f32 %v2480, %v2505
  %v2557 = vmul.f32 %v2481, %v2509
  %v2558 = vmul.f32 %v2482, %v2505
  %v2559 = vmul.f32 %v2483, %v2509
  %v2560 = vmul.f32 %v2484, %v2505
  %v2561 = vmul.f32 %v2485, %v2509
  %v2562 = vmul.f32 %v2486, %v2505
  %v2563 = vmul.f32 %v2487, %v2509
  %v2564 = vmul.f32 %v2488, %v2505
  %v2565 = vmul.f32 %v2489, %v2509
  %v2566 = vmul.f32 %v2490, %v2505
  %v2567 = vmul.f32 %v2491, %v2509
  %v2568 = vmul.f32 %v2492, %v2505
  %v2569 = vmul.f32 %v2493, %v2509
  %v2570 = vmul.f32 %v2494, %v2505
  %v2571 = vmul.f32 %v2495, %v2509
  %v2572 = vmul.f32 %v2496, %v2505
  %v2573 = vmul.f32 %v2497, %v2509
  %v2574 = vmul.f32 %v2498, %v2505
  %v2575 = vmul.f32 %v2499, %v2509
  %v2578 = vunpack.c.l.s4 1966171168
  %v2579 = vunpack.c.0.s8 %v2578
  %v2580 = vlaneseq
  %v2581 = vshrl.u32 %v2580, 7
  %v2582 = vsub.s32 %v2579, %v2581
  %v2583 = vrot.slane %v60, %v2582
  %v2584 = vcombine.high %v2583, %v2583
  %v2586 = vunpack.c.l.s4 1966171168
  %v2587 = vunpack.c.0.s8 %v2586
  %v2588 = vlaneseq
  %v2589 = vshrl.u32 %v2588, 7
  %v2590 = vsub.s32 %v2587, %v2589
  %v2591 = vrot.slane %v2583, %v2590
  %v2593 = vunpack.c.l.s4 1966171168
  %v2594 = vunpack.c.0.s8 %v2593
  %v2595 = vlaneseq
  %v2596 = vshrl.u32 %v2595, 7
  %v2597 = vsub.s32 %v2594, %v2596
  %v2598 = vrot.slane %v2584, %v2597
  %vm2601 = vcmp.gt.f32.partialorder %v2591, 0.5
  %vm2602 = vcmp.gt.f32.partialorder %v2598, 0.5
  %v2603 = vsel %vm65, %v2512, 0.0
  %2604 = vadd.xlane.f32.xlu0 %v2603
  %v2605 = vpop.xlane.xlu0 %2604
  %v2606 = vsel %vm65, %v2514, 0.0
  %2607 = vadd.xlane.f32.xlu0 %v2606
  %v2608 = vpop.xlane.xlu0 %2607
  %v2609 = vsel %vm65, %v2516, 0.0
  %2610 = vadd.xlane.f32.xlu0 %v2609
  %v2611 = vpop.xlane.xlu0 %2610
  %v2612 = vsel %vm65, %v2518, 0.0
  %2613 = vadd.xlane.f32.xlu0 %v2612
  %v2614 = vpop.xlane.xlu0 %2613
  %v2615 = vsel %vm65, %v2520, 0.0
  %2616 = vadd.xlane.f32.xlu0 %v2615
  %v2617 = vpop.xlane.xlu0 %2616
  %v2618 = vsel %vm65, %v2522, 0.0
  %2619 = vadd.xlane.f32.xlu0 %v2618
  %v2620 = vpop.xlane.xlu0 %2619
  %v2621 = vsel %vm65, %v2524, 0.0
  %2622 = vadd.xlane.f32.xlu0 %v2621
  %v2623 = vpop.xlane.xlu0 %2622
  %v2624 = vsel %vm65, %v2526, 0.0
  %2625 = vadd.xlane.f32.xlu0 %v2624
  %v2626 = vpop.xlane.xlu0 %2625
  %v2627 = vsel %vm65, %v2528, 0.0
  %2628 = vadd.xlane.f32.xlu0 %v2627
  %v2629 = vpop.xlane.xlu0 %2628
  %v2630 = vsel %vm65, %v2530, 0.0
  %2631 = vadd.xlane.f32.xlu0 %v2630
  %v2632 = vpop.xlane.xlu0 %2631
  %v2633 = vsel %vm65, %v2532, 0.0
  %2634 = vadd.xlane.f32.xlu0 %v2633
  %v2635 = vpop.xlane.xlu0 %2634
  %v2636 = vsel %vm65, %v2534, 0.0
  %2637 = vadd.xlane.f32.xlu0 %v2636
  %v2638 = vpop.xlane.xlu0 %2637
  %v2639 = vsel %vm65, %v2536, 0.0
  %2640 = vadd.xlane.f32.xlu0 %v2639
  %v2641 = vpop.xlane.xlu0 %2640
  %v2642 = vsel %vm65, %v2538, 0.0
  %2643 = vadd.xlane.f32.xlu0 %v2642
  %v2644 = vpop.xlane.xlu0 %2643
  %v2645 = vsel %vm65, %v2540, 0.0
  %2646 = vadd.xlane.f32.xlu0 %v2645
  %v2647 = vpop.xlane.xlu0 %2646
  %v2648 = vsel %vm65, %v2542, 0.0
  %2649 = vadd.xlane.f32.xlu0 %v2648
  %v2650 = vpop.xlane.xlu0 %2649
  %v2651 = vsel %vm65, %v2544, 0.0
  %2652 = vadd.xlane.f32.xlu0 %v2651
  %v2653 = vpop.xlane.xlu0 %2652
  %v2654 = vsel %vm65, %v2546, 0.0
  %2655 = vadd.xlane.f32.xlu0 %v2654
  %v2656 = vpop.xlane.xlu0 %2655
  %v2657 = vsel %vm65, %v2548, 0.0
  %2658 = vadd.xlane.f32.xlu0 %v2657
  %v2659 = vpop.xlane.xlu0 %2658
  %v2660 = vsel %vm65, %v2550, 0.0
  %2661 = vadd.xlane.f32.xlu0 %v2660
  %v2662 = vpop.xlane.xlu0 %2661
  %v2663 = vsel %vm65, %v2552, 0.0
  %2664 = vadd.xlane.f32.xlu0 %v2663
  %v2665 = vpop.xlane.xlu0 %2664
  %v2666 = vsel %vm65, %v2554, 0.0
  %2667 = vadd.xlane.f32.xlu0 %v2666
  %v2668 = vpop.xlane.xlu0 %2667
  %v2669 = vsel %vm65, %v2556, 0.0
  %2670 = vadd.xlane.f32.xlu0 %v2669
  %v2671 = vpop.xlane.xlu0 %2670
  %v2672 = vsel %vm65, %v2558, 0.0
  %2673 = vadd.xlane.f32.xlu0 %v2672
  %v2674 = vpop.xlane.xlu0 %2673
  %v2675 = vsel %vm65, %v2560, 0.0
  %2676 = vadd.xlane.f32.xlu0 %v2675
  %v2677 = vpop.xlane.xlu0 %2676
  %v2678 = vsel %vm65, %v2562, 0.0
  %2679 = vadd.xlane.f32.xlu0 %v2678
  %v2680 = vpop.xlane.xlu0 %2679
  %v2681 = vsel %vm65, %v2564, 0.0
  %2682 = vadd.xlane.f32.xlu0 %v2681
  %v2683 = vpop.xlane.xlu0 %2682
  %v2684 = vsel %vm65, %v2566, 0.0
  %2685 = vadd.xlane.f32.xlu0 %v2684
  %v2686 = vpop.xlane.xlu0 %2685
  %v2687 = vsel %vm65, %v2568, 0.0
  %2688 = vadd.xlane.f32.xlu0 %v2687
  %v2689 = vpop.xlane.xlu0 %2688
  %v2690 = vsel %vm65, %v2570, 0.0
  %2691 = vadd.xlane.f32.xlu0 %v2690
  %v2692 = vpop.xlane.xlu0 %2691
  %v2693 = vsel %vm65, %v2572, 0.0
  %2694 = vadd.xlane.f32.xlu0 %v2693
  %v2695 = vpop.xlane.xlu0 %2694
  %v2696 = vsel %vm65, %v2574, 0.0
  %2697 = vadd.xlane.f32.xlu0 %v2696
  %v2698 = vpop.xlane.xlu0 %2697
  %v2699 = vsel %vm2601, 1, 0
  %v2700 = vsel %vm2602, 1, 0
  %v2701 = vlaneseq
  %v2702 = vshrl.u32 %v2701, 7
  %v2703 = vsub.s32 0, %v2702
  %v2704 = vrot.slane %v2699, %v2703
  %v2705 = vlaneseq
  %v2706 = vshrl.u32 %v2705, 7
  %v2707 = vsub.s32 0, %v2706
  %v2708 = vrot.slane %v2700, %v2707
  %vm2709 = vcmp.eq.s32.totalorder %v2704, 1
  %vm2710 = vcmp.eq.s32.totalorder %v2708, 1
  %v2743 = vlaneseq
  %v2744 = vand.u32 %v2743, 127
  %v2745 = vlaneseq
  %v2746 = vshrl.u32 %v2745, 7
  %v2747 = vsub.s32 %v2744, %v2746
  %v2748 = vrot.slane %v2605, %v2747
  %v2749 = vadd.s32 %v2744, 4294967288
  %v2750 = vlaneseq
  %v2751 = vshrl.u32 %v2750, 7
  %v2752 = vsub.s32 %v2749, %v2751
  %v2753 = vrot.slane %v2608, %v2752
  %vm2754 = vcmask 130112
  %v2755 = vsel %vm2754, %v2753, %v2748
  %v2756 = vlaneseq
  %v2757 = vshrl.u32 %v2756, 7
  %v2758 = vsub.s32 %v2744, %v2757
  %v2759 = vrot.slane %v2611, %v2758
  %v2760 = vlaneseq
  %v2761 = vshrl.u32 %v2760, 7
  %v2762 = vsub.s32 %v2749, %v2761
  %v2763 = vrot.slane %v2614, %v2762
  %v2764 = vsel %vm2754, %v2763, %v2759
  %v2765 = vlaneseq
  %v2766 = vshrl.u32 %v2765, 7
  %v2767 = vsub.s32 %v2744, %v2766
  %v2768 = vrot.slane %v2617, %v2767
  %v2769 = vlaneseq
  %v2770 = vshrl.u32 %v2769, 7
  %v2771 = vsub.s32 %v2749, %v2770
  %v2772 = vrot.slane %v2620, %v2771
  %v2773 = vsel %vm2754, %v2772, %v2768
  %v2774 = vlaneseq
  %v2775 = vshrl.u32 %v2774, 7
  %v2776 = vsub.s32 %v2744, %v2775
  %v2777 = vrot.slane %v2623, %v2776
  %v2778 = vlaneseq
  %v2779 = vshrl.u32 %v2778, 7
  %v2780 = vsub.s32 %v2749, %v2779
  %v2781 = vrot.slane %v2626, %v2780
  %v2782 = vsel %vm2754, %v2781, %v2777
  %v2783 = vlaneseq
  %v2784 = vshrl.u32 %v2783, 7
  %v2785 = vsub.s32 %v2744, %v2784
  %v2786 = vrot.slane %v2629, %v2785
  %v2787 = vlaneseq
  %v2788 = vshrl.u32 %v2787, 7
  %v2789 = vsub.s32 %v2749, %v2788
  %v2790 = vrot.slane %v2632, %v2789
  %v2791 = vsel %vm2754, %v2790, %v2786
  %v2792 = vlaneseq
  %v2793 = vshrl.u32 %v2792, 7
  %v2794 = vsub.s32 %v2744, %v2793
  %v2795 = vrot.slane %v2635, %v2794
  %v2796 = vlaneseq
  %v2797 = vshrl.u32 %v2796, 7
  %v2798 = vsub.s32 %v2749, %v2797
  %v2799 = vrot.slane %v2638, %v2798
  %v2800 = vsel %vm2754, %v2799, %v2795
  %v2801 = vlaneseq
  %v2802 = vshrl.u32 %v2801, 7
  %v2803 = vsub.s32 %v2744, %v2802
  %v2804 = vrot.slane %v2641, %v2803
  %v2805 = vlaneseq
  %v2806 = vshrl.u32 %v2805, 7
  %v2807 = vsub.s32 %v2749, %v2806
  %v2808 = vrot.slane %v2644, %v2807
  %v2809 = vsel %vm2754, %v2808, %v2804
  %v2810 = vlaneseq
  %v2811 = vshrl.u32 %v2810, 7
  %v2812 = vsub.s32 %v2744, %v2811
  %v2813 = vrot.slane %v2647, %v2812
  %v2814 = vlaneseq
  %v2815 = vshrl.u32 %v2814, 7
  %v2816 = vsub.s32 %v2749, %v2815
  %v2817 = vrot.slane %v2650, %v2816
  %v2818 = vsel %vm2754, %v2817, %v2813
  %v2819 = vlaneseq
  %v2820 = vshrl.u32 %v2819, 7
  %v2821 = vsub.s32 %v2744, %v2820
  %v2822 = vrot.slane %v2653, %v2821
  %v2823 = vlaneseq
  %v2824 = vshrl.u32 %v2823, 7
  %v2825 = vsub.s32 %v2749, %v2824
  %v2826 = vrot.slane %v2656, %v2825
  %v2827 = vsel %vm2754, %v2826, %v2822
  %v2828 = vlaneseq
  %v2829 = vshrl.u32 %v2828, 7
  %v2830 = vsub.s32 %v2744, %v2829
  %v2831 = vrot.slane %v2659, %v2830
  %v2832 = vlaneseq
  %v2833 = vshrl.u32 %v2832, 7
  %v2834 = vsub.s32 %v2749, %v2833
  %v2835 = vrot.slane %v2662, %v2834
  %v2836 = vsel %vm2754, %v2835, %v2831
  %v2837 = vlaneseq
  %v2838 = vshrl.u32 %v2837, 7
  %v2839 = vsub.s32 %v2744, %v2838
  %v2840 = vrot.slane %v2665, %v2839
  %v2841 = vlaneseq
  %v2842 = vshrl.u32 %v2841, 7
  %v2843 = vsub.s32 %v2749, %v2842
  %v2844 = vrot.slane %v2668, %v2843
  %v2845 = vsel %vm2754, %v2844, %v2840
  %v2846 = vlaneseq
  %v2847 = vshrl.u32 %v2846, 7
  %v2848 = vsub.s32 %v2744, %v2847
  %v2849 = vrot.slane %v2671, %v2848
  %v2850 = vlaneseq
  %v2851 = vshrl.u32 %v2850, 7
  %v2852 = vsub.s32 %v2749, %v2851
  %v2853 = vrot.slane %v2674, %v2852
  %v2854 = vsel %vm2754, %v2853, %v2849
  %v2855 = vlaneseq
  %v2856 = vshrl.u32 %v2855, 7
  %v2857 = vsub.s32 %v2744, %v2856
  %v2858 = vrot.slane %v2677, %v2857
  %v2859 = vlaneseq
  %v2860 = vshrl.u32 %v2859, 7
  %v2861 = vsub.s32 %v2749, %v2860
  %v2862 = vrot.slane %v2680, %v2861
  %v2863 = vsel %vm2754, %v2862, %v2858
  %v2864 = vlaneseq
  %v2865 = vshrl.u32 %v2864, 7
  %v2866 = vsub.s32 %v2744, %v2865
  %v2867 = vrot.slane %v2683, %v2866
  %v2868 = vlaneseq
  %v2869 = vshrl.u32 %v2868, 7
  %v2870 = vsub.s32 %v2749, %v2869
  %v2871 = vrot.slane %v2686, %v2870
  %v2872 = vsel %vm2754, %v2871, %v2867
  %v2873 = vlaneseq
  %v2874 = vshrl.u32 %v2873, 7
  %v2875 = vsub.s32 %v2744, %v2874
  %v2876 = vrot.slane %v2689, %v2875
  %v2877 = vlaneseq
  %v2878 = vshrl.u32 %v2877, 7
  %v2879 = vsub.s32 %v2749, %v2878
  %v2880 = vrot.slane %v2692, %v2879
  %v2881 = vsel %vm2754, %v2880, %v2876
  %v2882 = vlaneseq
  %v2883 = vshrl.u32 %v2882, 7
  %v2884 = vsub.s32 %v2744, %v2883
  %v2885 = vrot.slane %v2695, %v2884
  %v2886 = vlaneseq
  %v2887 = vshrl.u32 %v2886, 7
  %v2888 = vsub.s32 %v2749, %v2887
  %v2889 = vrot.slane %v2698, %v2888
  %v2890 = vsel %vm2754, %v2889, %v2885
  %vm2891 = vcmask 1041409
  %v2892 = vsel %vm2891, %v2764, %v2755
  %vm2893 = vcmask 1042434
  %v2894 = vsel %vm2893, %v2773, %v2892
  %vm2895 = vcmask 1043459
  %v2896 = vsel %vm2895, %v2782, %v2894
  %vm2897 = vcmask 1044484
  %v2898 = vsel %vm2897, %v2791, %v2896
  %vm2899 = vcmask 1045509
  %v2900 = vsel %vm2899, %v2800, %v2898
  %vm2901 = vcmask 1046534
  %v2902 = vsel %vm2901, %v2809, %v2900
  %vm2903 = vcmask 1047559
  %v2904 = vsel %vm2903, %v2818, %v2902
  %v2905 = vsel %vm2891, %v2836, %v2827
  %v2906 = vsel %vm2893, %v2845, %v2905
  %v2907 = vsel %vm2895, %v2854, %v2906
  %v2908 = vsel %vm2897, %v2863, %v2907
  %v2909 = vsel %vm2899, %v2872, %v2908
  %v2910 = vsel %vm2901, %v2881, %v2909
  %v2911 = vsel %vm2903, %v2890, %v2910
  %v2914 = vsel %vm2709, %v2904, -10000.0
  %v2915 = vsel %vm2710, %v2911, -10000.0
  %2948 = vrot.lane.b32.xlu0 %v2512, 96
  %v2949 = vpop.permute.xlu0 %2948
  %2950 = vrot.lane.b32.xlu0 %v2514, 96
  %v2951 = vpop.permute.xlu0 %2950
  %2952 = vrot.lane.b32.xlu0 %v2516, 96
  %v2953 = vpop.permute.xlu0 %2952
  %2954 = vrot.lane.b32.xlu0 %v2518, 96
  %v2955 = vpop.permute.xlu0 %2954
  %2956 = vrot.lane.b32.xlu0 %v2520, 96
  %v2957 = vpop.permute.xlu0 %2956
  %2958 = vrot.lane.b32.xlu0 %v2522, 96
  %v2959 = vpop.permute.xlu0 %2958
  %2960 = vrot.lane.b32.xlu0 %v2524, 96
  %v2961 = vpop.permute.xlu0 %2960
  %2962 = vrot.lane.b32.xlu0 %v2526, 96
  %v2963 = vpop.permute.xlu0 %2962
  %2964 = vrot.lane.b32.xlu0 %v2528, 96
  %v2965 = vpop.permute.xlu0 %2964
  %2966 = vrot.lane.b32.xlu0 %v2530, 96
  %v2967 = vpop.permute.xlu0 %2966
  %2968 = vrot.lane.b32.xlu0 %v2532, 96
  %v2969 = vpop.permute.xlu0 %2968
  %2970 = vrot.lane.b32.xlu0 %v2534, 96
  %v2971 = vpop.permute.xlu0 %2970
  %2972 = vrot.lane.b32.xlu0 %v2536, 96
  %v2973 = vpop.permute.xlu0 %2972
  %2974 = vrot.lane.b32.xlu0 %v2538, 96
  %v2975 = vpop.permute.xlu0 %2974
  %2976 = vrot.lane.b32.xlu0 %v2540, 96
  %v2977 = vpop.permute.xlu0 %2976
  %2978 = vrot.lane.b32.xlu0 %v2542, 96
  %v2979 = vpop.permute.xlu0 %2978
  %2980 = vrot.lane.b32.xlu0 %v2544, 96
  %v2981 = vpop.permute.xlu0 %2980
  %2982 = vrot.lane.b32.xlu0 %v2546, 96
  %v2983 = vpop.permute.xlu0 %2982
  %2984 = vrot.lane.b32.xlu0 %v2548, 96
  %v2985 = vpop.permute.xlu0 %2984
  %2986 = vrot.lane.b32.xlu0 %v2550, 96
  %v2987 = vpop.permute.xlu0 %2986
  %2988 = vrot.lane.b32.xlu0 %v2552, 96
  %v2989 = vpop.permute.xlu0 %2988
  %2990 = vrot.lane.b32.xlu0 %v2554, 96
  %v2991 = vpop.permute.xlu0 %2990
  %2992 = vrot.lane.b32.xlu0 %v2556, 96
  %v2993 = vpop.permute.xlu0 %2992
  %2994 = vrot.lane.b32.xlu0 %v2558, 96
  %v2995 = vpop.permute.xlu0 %2994
  %2996 = vrot.lane.b32.xlu0 %v2560, 96
  %v2997 = vpop.permute.xlu0 %2996
  %2998 = vrot.lane.b32.xlu0 %v2562, 96
  %v2999 = vpop.permute.xlu0 %2998
  %3000 = vrot.lane.b32.xlu0 %v2564, 96
  %v3001 = vpop.permute.xlu0 %3000
  %3002 = vrot.lane.b32.xlu0 %v2566, 96
  %v3003 = vpop.permute.xlu0 %3002
  %3004 = vrot.lane.b32.xlu0 %v2568, 96
  %v3005 = vpop.permute.xlu0 %3004
  %3006 = vrot.lane.b32.xlu0 %v2570, 96
  %v3007 = vpop.permute.xlu0 %3006
  %3008 = vrot.lane.b32.xlu0 %v2572, 96
  %v3009 = vpop.permute.xlu0 %3008
  %3010 = vrot.lane.b32.xlu0 %v2574, 96
  %v3011 = vpop.permute.xlu0 %3010
  %v3044 = vsel %vm65, %v2949, 0.0
  %3045 = vadd.xlane.f32.xlu0 %v3044
  %v3046 = vpop.xlane.xlu0 %3045
  %v3047 = vsel %vm65, %v2951, 0.0
  %3048 = vadd.xlane.f32.xlu0 %v3047
  %v3049 = vpop.xlane.xlu0 %3048
  %v3050 = vsel %vm65, %v2953, 0.0
  %3051 = vadd.xlane.f32.xlu0 %v3050
  %v3052 = vpop.xlane.xlu0 %3051
  %v3053 = vsel %vm65, %v2955, 0.0
  %3054 = vadd.xlane.f32.xlu0 %v3053
  %v3055 = vpop.xlane.xlu0 %3054
  %v3056 = vsel %vm65, %v2957, 0.0
  %3057 = vadd.xlane.f32.xlu0 %v3056
  %v3058 = vpop.xlane.xlu0 %3057
  %v3059 = vsel %vm65, %v2959, 0.0
  %3060 = vadd.xlane.f32.xlu0 %v3059
  %v3061 = vpop.xlane.xlu0 %3060
  %v3062 = vsel %vm65, %v2961, 0.0
  %3063 = vadd.xlane.f32.xlu0 %v3062
  %v3064 = vpop.xlane.xlu0 %3063
  %v3065 = vsel %vm65, %v2963, 0.0
  %3066 = vadd.xlane.f32.xlu0 %v3065
  %v3067 = vpop.xlane.xlu0 %3066
  %v3068 = vsel %vm65, %v2965, 0.0
  %3069 = vadd.xlane.f32.xlu0 %v3068
  %v3070 = vpop.xlane.xlu0 %3069
  %v3071 = vsel %vm65, %v2967, 0.0
  %3072 = vadd.xlane.f32.xlu0 %v3071
  %v3073 = vpop.xlane.xlu0 %3072
  %v3074 = vsel %vm65, %v2969, 0.0
  %3075 = vadd.xlane.f32.xlu0 %v3074
  %v3076 = vpop.xlane.xlu0 %3075
  %v3077 = vsel %vm65, %v2971, 0.0
  %3078 = vadd.xlane.f32.xlu0 %v3077
  %v3079 = vpop.xlane.xlu0 %3078
  %v3080 = vsel %vm65, %v2973, 0.0
  %3081 = vadd.xlane.f32.xlu0 %v3080
  %v3082 = vpop.xlane.xlu0 %3081
  %v3083 = vsel %vm65, %v2975, 0.0
  %3084 = vadd.xlane.f32.xlu0 %v3083
  %v3085 = vpop.xlane.xlu0 %3084
  %v3086 = vsel %vm65, %v2977, 0.0
  %3087 = vadd.xlane.f32.xlu0 %v3086
  %v3088 = vpop.xlane.xlu0 %3087
  %v3089 = vsel %vm65, %v2979, 0.0
  %3090 = vadd.xlane.f32.xlu0 %v3089
  %v3091 = vpop.xlane.xlu0 %3090
  %v3092 = vsel %vm65, %v2981, 0.0
  %3093 = vadd.xlane.f32.xlu0 %v3092
  %v3094 = vpop.xlane.xlu0 %3093
  %v3095 = vsel %vm65, %v2983, 0.0
  %3096 = vadd.xlane.f32.xlu0 %v3095
  %v3097 = vpop.xlane.xlu0 %3096
  %v3098 = vsel %vm65, %v2985, 0.0
  %3099 = vadd.xlane.f32.xlu0 %v3098
  %v3100 = vpop.xlane.xlu0 %3099
  %v3101 = vsel %vm65, %v2987, 0.0
  %3102 = vadd.xlane.f32.xlu0 %v3101
  %v3103 = vpop.xlane.xlu0 %3102
  %v3104 = vsel %vm65, %v2989, 0.0
  %3105 = vadd.xlane.f32.xlu0 %v3104
  %v3106 = vpop.xlane.xlu0 %3105
  %v3107 = vsel %vm65, %v2991, 0.0
  %3108 = vadd.xlane.f32.xlu0 %v3107
  %v3109 = vpop.xlane.xlu0 %3108
  %v3110 = vsel %vm65, %v2993, 0.0
  %3111 = vadd.xlane.f32.xlu0 %v3110
  %v3112 = vpop.xlane.xlu0 %3111
  %v3113 = vsel %vm65, %v2995, 0.0
  %3114 = vadd.xlane.f32.xlu0 %v3113
  %v3115 = vpop.xlane.xlu0 %3114
  %v3116 = vsel %vm65, %v2997, 0.0
  %3117 = vadd.xlane.f32.xlu0 %v3116
  %v3118 = vpop.xlane.xlu0 %3117
  %v3119 = vsel %vm65, %v2999, 0.0
  %3120 = vadd.xlane.f32.xlu0 %v3119
  %v3121 = vpop.xlane.xlu0 %3120
  %v3122 = vsel %vm65, %v3001, 0.0
  %3123 = vadd.xlane.f32.xlu0 %v3122
  %v3124 = vpop.xlane.xlu0 %3123
  %v3125 = vsel %vm65, %v3003, 0.0
  %3126 = vadd.xlane.f32.xlu0 %v3125
  %v3127 = vpop.xlane.xlu0 %3126
  %v3128 = vsel %vm65, %v3005, 0.0
  %3129 = vadd.xlane.f32.xlu0 %v3128
  %v3130 = vpop.xlane.xlu0 %3129
  %v3131 = vsel %vm65, %v3007, 0.0
  %3132 = vadd.xlane.f32.xlu0 %v3131
  %v3133 = vpop.xlane.xlu0 %3132
  %v3134 = vsel %vm65, %v3009, 0.0
  %3135 = vadd.xlane.f32.xlu0 %v3134
  %v3136 = vpop.xlane.xlu0 %3135
  %v3137 = vsel %vm65, %v3011, 0.0
  %3138 = vadd.xlane.f32.xlu0 %v3137
  %v3139 = vpop.xlane.xlu0 %3138
  %v3172 = vlaneseq
  %v3173 = vshrl.u32 %v3172, 7
  %v3174 = vsub.s32 %v2744, %v3173
  %v3175 = vrot.slane %v3046, %v3174
  %v3176 = vlaneseq
  %v3177 = vshrl.u32 %v3176, 7
  %v3178 = vsub.s32 %v2749, %v3177
  %v3179 = vrot.slane %v3049, %v3178
  %v3180 = vsel %vm2754, %v3179, %v3175
  %v3181 = vlaneseq
  %v3182 = vshrl.u32 %v3181, 7
  %v3183 = vsub.s32 %v2744, %v3182
  %v3184 = vrot.slane %v3052, %v3183
  %v3185 = vlaneseq
  %v3186 = vshrl.u32 %v3185, 7
  %v3187 = vsub.s32 %v2749, %v3186
  %v3188 = vrot.slane %v3055, %v3187
  %v3189 = vsel %vm2754, %v3188, %v3184
  %v3190 = vlaneseq
  %v3191 = vshrl.u32 %v3190, 7
  %v3192 = vsub.s32 %v2744, %v3191
  %v3193 = vrot.slane %v3058, %v3192
  %v3194 = vlaneseq
  %v3195 = vshrl.u32 %v3194, 7
  %v3196 = vsub.s32 %v2749, %v3195
  %v3197 = vrot.slane %v3061, %v3196
  %v3198 = vsel %vm2754, %v3197, %v3193
  %v3199 = vlaneseq
  %v3200 = vshrl.u32 %v3199, 7
  %v3201 = vsub.s32 %v2744, %v3200
  %v3202 = vrot.slane %v3064, %v3201
  %v3203 = vlaneseq
  %v3204 = vshrl.u32 %v3203, 7
  %v3205 = vsub.s32 %v2749, %v3204
  %v3206 = vrot.slane %v3067, %v3205
  %v3207 = vsel %vm2754, %v3206, %v3202
  %v3208 = vlaneseq
  %v3209 = vshrl.u32 %v3208, 7
  %v3210 = vsub.s32 %v2744, %v3209
  %v3211 = vrot.slane %v3070, %v3210
  %v3212 = vlaneseq
  %v3213 = vshrl.u32 %v3212, 7
  %v3214 = vsub.s32 %v2749, %v3213
  %v3215 = vrot.slane %v3073, %v3214
  %v3216 = vsel %vm2754, %v3215, %v3211
  %v3217 = vlaneseq
  %v3218 = vshrl.u32 %v3217, 7
  %v3219 = vsub.s32 %v2744, %v3218
  %v3220 = vrot.slane %v3076, %v3219
  %v3221 = vlaneseq
  %v3222 = vshrl.u32 %v3221, 7
  %v3223 = vsub.s32 %v2749, %v3222
  %v3224 = vrot.slane %v3079, %v3223
  %v3225 = vsel %vm2754, %v3224, %v3220
  %v3226 = vlaneseq
  %v3227 = vshrl.u32 %v3226, 7
  %v3228 = vsub.s32 %v2744, %v3227
  %v3229 = vrot.slane %v3082, %v3228
  %v3230 = vlaneseq
  %v3231 = vshrl.u32 %v3230, 7
  %v3232 = vsub.s32 %v2749, %v3231
  %v3233 = vrot.slane %v3085, %v3232
  %v3234 = vsel %vm2754, %v3233, %v3229
  %v3235 = vlaneseq
  %v3236 = vshrl.u32 %v3235, 7
  %v3237 = vsub.s32 %v2744, %v3236
  %v3238 = vrot.slane %v3088, %v3237
  %v3239 = vlaneseq
  %v3240 = vshrl.u32 %v3239, 7
  %v3241 = vsub.s32 %v2749, %v3240
  %v3242 = vrot.slane %v3091, %v3241
  %v3243 = vsel %vm2754, %v3242, %v3238
  %v3244 = vlaneseq
  %v3245 = vshrl.u32 %v3244, 7
  %v3246 = vsub.s32 %v2744, %v3245
  %v3247 = vrot.slane %v3094, %v3246
  %v3248 = vlaneseq
  %v3249 = vshrl.u32 %v3248, 7
  %v3250 = vsub.s32 %v2749, %v3249
  %v3251 = vrot.slane %v3097, %v3250
  %v3252 = vsel %vm2754, %v3251, %v3247
  %v3253 = vlaneseq
  %v3254 = vshrl.u32 %v3253, 7
  %v3255 = vsub.s32 %v2744, %v3254
  %v3256 = vrot.slane %v3100, %v3255
  %v3257 = vlaneseq
  %v3258 = vshrl.u32 %v3257, 7
  %v3259 = vsub.s32 %v2749, %v3258
  %v3260 = vrot.slane %v3103, %v3259
  %v3261 = vsel %vm2754, %v3260, %v3256
  %v3262 = vlaneseq
  %v3263 = vshrl.u32 %v3262, 7
  %v3264 = vsub.s32 %v2744, %v3263
  %v3265 = vrot.slane %v3106, %v3264
  %v3266 = vlaneseq
  %v3267 = vshrl.u32 %v3266, 7
  %v3268 = vsub.s32 %v2749, %v3267
  %v3269 = vrot.slane %v3109, %v3268
  %v3270 = vsel %vm2754, %v3269, %v3265
  %v3271 = vlaneseq
  %v3272 = vshrl.u32 %v3271, 7
  %v3273 = vsub.s32 %v2744, %v3272
  %v3274 = vrot.slane %v3112, %v3273
  %v3275 = vlaneseq
  %v3276 = vshrl.u32 %v3275, 7
  %v3277 = vsub.s32 %v2749, %v3276
  %v3278 = vrot.slane %v3115, %v3277
  %v3279 = vsel %vm2754, %v3278, %v3274
  %v3280 = vlaneseq
  %v3281 = vshrl.u32 %v3280, 7
  %v3282 = vsub.s32 %v2744, %v3281
  %v3283 = vrot.slane %v3118, %v3282
  %v3284 = vlaneseq
  %v3285 = vshrl.u32 %v3284, 7
  %v3286 = vsub.s32 %v2749, %v3285
  %v3287 = vrot.slane %v3121, %v3286
  %v3288 = vsel %vm2754, %v3287, %v3283
  %v3289 = vlaneseq
  %v3290 = vshrl.u32 %v3289, 7
  %v3291 = vsub.s32 %v2744, %v3290
  %v3292 = vrot.slane %v3124, %v3291
  %v3293 = vlaneseq
  %v3294 = vshrl.u32 %v3293, 7
  %v3295 = vsub.s32 %v2749, %v3294
  %v3296 = vrot.slane %v3127, %v3295
  %v3297 = vsel %vm2754, %v3296, %v3292
  %v3298 = vlaneseq
  %v3299 = vshrl.u32 %v3298, 7
  %v3300 = vsub.s32 %v2744, %v3299
  %v3301 = vrot.slane %v3130, %v3300
  %v3302 = vlaneseq
  %v3303 = vshrl.u32 %v3302, 7
  %v3304 = vsub.s32 %v2749, %v3303
  %v3305 = vrot.slane %v3133, %v3304
  %v3306 = vsel %vm2754, %v3305, %v3301
  %v3307 = vlaneseq
  %v3308 = vshrl.u32 %v3307, 7
  %v3309 = vsub.s32 %v2744, %v3308
  %v3310 = vrot.slane %v3136, %v3309
  %v3311 = vlaneseq
  %v3312 = vshrl.u32 %v3311, 7
  %v3313 = vsub.s32 %v2749, %v3312
  %v3314 = vrot.slane %v3139, %v3313
  %v3315 = vsel %vm2754, %v3314, %v3310
  %v3316 = vsel %vm2891, %v3189, %v3180
  %v3317 = vsel %vm2893, %v3198, %v3316
  %v3318 = vsel %vm2895, %v3207, %v3317
  %v3319 = vsel %vm2897, %v3216, %v3318
  %v3320 = vsel %vm2899, %v3225, %v3319
  %v3321 = vsel %vm2901, %v3234, %v3320
  %v3322 = vsel %vm2903, %v3243, %v3321
  %v3323 = vsel %vm2891, %v3261, %v3252
  %v3324 = vsel %vm2893, %v3270, %v3323
  %v3325 = vsel %vm2895, %v3279, %v3324
  %v3326 = vsel %vm2897, %v3288, %v3325
  %v3327 = vsel %vm2899, %v3297, %v3326
  %v3328 = vsel %vm2901, %v3306, %v3327
  %v3329 = vsel %vm2903, %v3315, %v3328
  %v3332 = vsel %vm2709, %v3322, -10000.0
  %v3333 = vsel %vm2710, %v3329, -10000.0
  %3334 = vrot.lane.b32.xlu0 %v2512, 64
  %v3335 = vpop.permute.xlu0 %3334
  %3336 = vrot.lane.b32.xlu0 %v2514, 64
  %v3337 = vpop.permute.xlu0 %3336
  %3338 = vrot.lane.b32.xlu0 %v2516, 64
  %v3339 = vpop.permute.xlu0 %3338
  %3340 = vrot.lane.b32.xlu0 %v2518, 64
  %v3341 = vpop.permute.xlu0 %3340
  %3342 = vrot.lane.b32.xlu0 %v2520, 64
  %v3343 = vpop.permute.xlu0 %3342
  %3344 = vrot.lane.b32.xlu0 %v2522, 64
  %v3345 = vpop.permute.xlu0 %3344
  %3346 = vrot.lane.b32.xlu0 %v2524, 64
  %v3347 = vpop.permute.xlu0 %3346
  %3348 = vrot.lane.b32.xlu0 %v2526, 64
  %v3349 = vpop.permute.xlu0 %3348
  %3350 = vrot.lane.b32.xlu0 %v2528, 64
  %v3351 = vpop.permute.xlu0 %3350
  %3352 = vrot.lane.b32.xlu0 %v2530, 64
  %v3353 = vpop.permute.xlu0 %3352
  %3354 = vrot.lane.b32.xlu0 %v2532, 64
  %v3355 = vpop.permute.xlu0 %3354
  %3356 = vrot.lane.b32.xlu0 %v2534, 64
  %v3357 = vpop.permute.xlu0 %3356
  %3358 = vrot.lane.b32.xlu0 %v2536, 64
  %v3359 = vpop.permute.xlu0 %3358
  %3360 = vrot.lane.b32.xlu0 %v2538, 64
  %v3361 = vpop.permute.xlu0 %3360
  %3362 = vrot.lane.b32.xlu0 %v2540, 64
  %v3363 = vpop.permute.xlu0 %3362
  %3364 = vrot.lane.b32.xlu0 %v2542, 64
  %v3365 = vpop.permute.xlu0 %3364
  %3366 = vrot.lane.b32.xlu0 %v2544, 64
  %v3367 = vpop.permute.xlu0 %3366
  %3368 = vrot.lane.b32.xlu0 %v2546, 64
  %v3369 = vpop.permute.xlu0 %3368
  %3370 = vrot.lane.b32.xlu0 %v2548, 64
  %v3371 = vpop.permute.xlu0 %3370
  %3372 = vrot.lane.b32.xlu0 %v2550, 64
  %v3373 = vpop.permute.xlu0 %3372
  %3374 = vrot.lane.b32.xlu0 %v2552, 64
  %v3375 = vpop.permute.xlu0 %3374
  %3376 = vrot.lane.b32.xlu0 %v2554, 64
  %v3377 = vpop.permute.xlu0 %3376
  %3378 = vrot.lane.b32.xlu0 %v2556, 64
  %v3379 = vpop.permute.xlu0 %3378
  %3380 = vrot.lane.b32.xlu0 %v2558, 64
  %v3381 = vpop.permute.xlu0 %3380
  %3382 = vrot.lane.b32.xlu0 %v2560, 64
  %v3383 = vpop.permute.xlu0 %3382
  %3384 = vrot.lane.b32.xlu0 %v2562, 64
  %v3385 = vpop.permute.xlu0 %3384
  %3386 = vrot.lane.b32.xlu0 %v2564, 64
  %v3387 = vpop.permute.xlu0 %3386
  %3388 = vrot.lane.b32.xlu0 %v2566, 64
  %v3389 = vpop.permute.xlu0 %3388
  %3390 = vrot.lane.b32.xlu0 %v2568, 64
  %v3391 = vpop.permute.xlu0 %3390
  %3392 = vrot.lane.b32.xlu0 %v2570, 64
  %v3393 = vpop.permute.xlu0 %3392
  %3394 = vrot.lane.b32.xlu0 %v2572, 64
  %v3395 = vpop.permute.xlu0 %3394
  %3396 = vrot.lane.b32.xlu0 %v2574, 64
  %v3397 = vpop.permute.xlu0 %3396
  %v3430 = vsel %vm65, %v3335, 0.0
  %3431 = vadd.xlane.f32.xlu0 %v3430
  %v3432 = vpop.xlane.xlu0 %3431
  %v3433 = vsel %vm65, %v3337, 0.0
  %3434 = vadd.xlane.f32.xlu0 %v3433
  %v3435 = vpop.xlane.xlu0 %3434
  %v3436 = vsel %vm65, %v3339, 0.0
  %3437 = vadd.xlane.f32.xlu0 %v3436
  %v3438 = vpop.xlane.xlu0 %3437
  %v3439 = vsel %vm65, %v3341, 0.0
  %3440 = vadd.xlane.f32.xlu0 %v3439
  %v3441 = vpop.xlane.xlu0 %3440
  %v3442 = vsel %vm65, %v3343, 0.0
  %3443 = vadd.xlane.f32.xlu0 %v3442
  %v3444 = vpop.xlane.xlu0 %3443
  %v3445 = vsel %vm65, %v3345, 0.0
  %3446 = vadd.xlane.f32.xlu0 %v3445
  %v3447 = vpop.xlane.xlu0 %3446
  %v3448 = vsel %vm65, %v3347, 0.0
  %3449 = vadd.xlane.f32.xlu0 %v3448
  %v3450 = vpop.xlane.xlu0 %3449
  %v3451 = vsel %vm65, %v3349, 0.0
  %3452 = vadd.xlane.f32.xlu0 %v3451
  %v3453 = vpop.xlane.xlu0 %3452
  %v3454 = vsel %vm65, %v3351, 0.0
  %3455 = vadd.xlane.f32.xlu0 %v3454
  %v3456 = vpop.xlane.xlu0 %3455
  %v3457 = vsel %vm65, %v3353, 0.0
  %3458 = vadd.xlane.f32.xlu0 %v3457
  %v3459 = vpop.xlane.xlu0 %3458
  %v3460 = vsel %vm65, %v3355, 0.0
  %3461 = vadd.xlane.f32.xlu0 %v3460
  %v3462 = vpop.xlane.xlu0 %3461
  %v3463 = vsel %vm65, %v3357, 0.0
  %3464 = vadd.xlane.f32.xlu0 %v3463
  %v3465 = vpop.xlane.xlu0 %3464
  %v3466 = vsel %vm65, %v3359, 0.0
  %3467 = vadd.xlane.f32.xlu0 %v3466
  %v3468 = vpop.xlane.xlu0 %3467
  %v3469 = vsel %vm65, %v3361, 0.0
  %3470 = vadd.xlane.f32.xlu0 %v3469
  %v3471 = vpop.xlane.xlu0 %3470
  %v3472 = vsel %vm65, %v3363, 0.0
  %3473 = vadd.xlane.f32.xlu0 %v3472
  %v3474 = vpop.xlane.xlu0 %3473
  %v3475 = vsel %vm65, %v3365, 0.0
  %3476 = vadd.xlane.f32.xlu0 %v3475
  %v3477 = vpop.xlane.xlu0 %3476
  %v3478 = vsel %vm65, %v3367, 0.0
  %3479 = vadd.xlane.f32.xlu0 %v3478
  %v3480 = vpop.xlane.xlu0 %3479
  %v3481 = vsel %vm65, %v3369, 0.0
  %3482 = vadd.xlane.f32.xlu0 %v3481
  %v3483 = vpop.xlane.xlu0 %3482
  %v3484 = vsel %vm65, %v3371, 0.0
  %3485 = vadd.xlane.f32.xlu0 %v3484
  %v3486 = vpop.xlane.xlu0 %3485
  %v3487 = vsel %vm65, %v3373, 0.0
  %3488 = vadd.xlane.f32.xlu0 %v3487
  %v3489 = vpop.xlane.xlu0 %3488
  %v3490 = vsel %vm65, %v3375, 0.0
  %3491 = vadd.xlane.f32.xlu0 %v3490
  %v3492 = vpop.xlane.xlu0 %3491
  %v3493 = vsel %vm65, %v3377, 0.0
  %3494 = vadd.xlane.f32.xlu0 %v3493
  %v3495 = vpop.xlane.xlu0 %3494
  %v3496 = vsel %vm65, %v3379, 0.0
  %3497 = vadd.xlane.f32.xlu0 %v3496
  %v3498 = vpop.xlane.xlu0 %3497
  %v3499 = vsel %vm65, %v3381, 0.0
  %3500 = vadd.xlane.f32.xlu0 %v3499
  %v3501 = vpop.xlane.xlu0 %3500
  %v3502 = vsel %vm65, %v3383, 0.0
  %3503 = vadd.xlane.f32.xlu0 %v3502
  %v3504 = vpop.xlane.xlu0 %3503
  %v3505 = vsel %vm65, %v3385, 0.0
  %3506 = vadd.xlane.f32.xlu0 %v3505
  %v3507 = vpop.xlane.xlu0 %3506
  %v3508 = vsel %vm65, %v3387, 0.0
  %3509 = vadd.xlane.f32.xlu0 %v3508
  %v3510 = vpop.xlane.xlu0 %3509
  %v3511 = vsel %vm65, %v3389, 0.0
  %3512 = vadd.xlane.f32.xlu0 %v3511
  %v3513 = vpop.xlane.xlu0 %3512
  %v3514 = vsel %vm65, %v3391, 0.0
  %3515 = vadd.xlane.f32.xlu0 %v3514
  %v3516 = vpop.xlane.xlu0 %3515
  %v3517 = vsel %vm65, %v3393, 0.0
  %3518 = vadd.xlane.f32.xlu0 %v3517
  %v3519 = vpop.xlane.xlu0 %3518
  %v3520 = vsel %vm65, %v3395, 0.0
  %3521 = vadd.xlane.f32.xlu0 %v3520
  %v3522 = vpop.xlane.xlu0 %3521
  %v3523 = vsel %vm65, %v3397, 0.0
  %3524 = vadd.xlane.f32.xlu0 %v3523
  %v3525 = vpop.xlane.xlu0 %3524
  %v3558 = vlaneseq
  %v3559 = vshrl.u32 %v3558, 7
  %v3560 = vsub.s32 %v2744, %v3559
  %v3561 = vrot.slane %v3432, %v3560
  %v3562 = vlaneseq
  %v3563 = vshrl.u32 %v3562, 7
  %v3564 = vsub.s32 %v2749, %v3563
  %v3565 = vrot.slane %v3435, %v3564
  %v3566 = vsel %vm2754, %v3565, %v3561
  %v3567 = vlaneseq
  %v3568 = vshrl.u32 %v3567, 7
  %v3569 = vsub.s32 %v2744, %v3568
  %v3570 = vrot.slane %v3438, %v3569
  %v3571 = vlaneseq
  %v3572 = vshrl.u32 %v3571, 7
  %v3573 = vsub.s32 %v2749, %v3572
  %v3574 = vrot.slane %v3441, %v3573
  %v3575 = vsel %vm2754, %v3574, %v3570
  %v3576 = vlaneseq
  %v3577 = vshrl.u32 %v3576, 7
  %v3578 = vsub.s32 %v2744, %v3577
  %v3579 = vrot.slane %v3444, %v3578
  %v3580 = vlaneseq
  %v3581 = vshrl.u32 %v3580, 7
  %v3582 = vsub.s32 %v2749, %v3581
  %v3583 = vrot.slane %v3447, %v3582
  %v3584 = vsel %vm2754, %v3583, %v3579
  %v3585 = vlaneseq
  %v3586 = vshrl.u32 %v3585, 7
  %v3587 = vsub.s32 %v2744, %v3586
  %v3588 = vrot.slane %v3450, %v3587
  %v3589 = vlaneseq
  %v3590 = vshrl.u32 %v3589, 7
  %v3591 = vsub.s32 %v2749, %v3590
  %v3592 = vrot.slane %v3453, %v3591
  %v3593 = vsel %vm2754, %v3592, %v3588
  %v3594 = vlaneseq
  %v3595 = vshrl.u32 %v3594, 7
  %v3596 = vsub.s32 %v2744, %v3595
  %v3597 = vrot.slane %v3456, %v3596
  %v3598 = vlaneseq
  %v3599 = vshrl.u32 %v3598, 7
  %v3600 = vsub.s32 %v2749, %v3599
  %v3601 = vrot.slane %v3459, %v3600
  %v3602 = vsel %vm2754, %v3601, %v3597
  %v3603 = vlaneseq
  %v3604 = vshrl.u32 %v3603, 7
  %v3605 = vsub.s32 %v2744, %v3604
  %v3606 = vrot.slane %v3462, %v3605
  %v3607 = vlaneseq
  %v3608 = vshrl.u32 %v3607, 7
  %v3609 = vsub.s32 %v2749, %v3608
  %v3610 = vrot.slane %v3465, %v3609
  %v3611 = vsel %vm2754, %v3610, %v3606
  %v3612 = vlaneseq
  %v3613 = vshrl.u32 %v3612, 7
  %v3614 = vsub.s32 %v2744, %v3613
  %v3615 = vrot.slane %v3468, %v3614
  %v3616 = vlaneseq
  %v3617 = vshrl.u32 %v3616, 7
  %v3618 = vsub.s32 %v2749, %v3617
  %v3619 = vrot.slane %v3471, %v3618
  %v3620 = vsel %vm2754, %v3619, %v3615
  %v3621 = vlaneseq
  %v3622 = vshrl.u32 %v3621, 7
  %v3623 = vsub.s32 %v2744, %v3622
  %v3624 = vrot.slane %v3474, %v3623
  %v3625 = vlaneseq
  %v3626 = vshrl.u32 %v3625, 7
  %v3627 = vsub.s32 %v2749, %v3626
  %v3628 = vrot.slane %v3477, %v3627
  %v3629 = vsel %vm2754, %v3628, %v3624
  %v3630 = vlaneseq
  %v3631 = vshrl.u32 %v3630, 7
  %v3632 = vsub.s32 %v2744, %v3631
  %v3633 = vrot.slane %v3480, %v3632
  %v3634 = vlaneseq
  %v3635 = vshrl.u32 %v3634, 7
  %v3636 = vsub.s32 %v2749, %v3635
  %v3637 = vrot.slane %v3483, %v3636
  %v3638 = vsel %vm2754, %v3637, %v3633
  %v3639 = vlaneseq
  %v3640 = vshrl.u32 %v3639, 7
  %v3641 = vsub.s32 %v2744, %v3640
  %v3642 = vrot.slane %v3486, %v3641
  %v3643 = vlaneseq
  %v3644 = vshrl.u32 %v3643, 7
  %v3645 = vsub.s32 %v2749, %v3644
  %v3646 = vrot.slane %v3489, %v3645
  %v3647 = vsel %vm2754, %v3646, %v3642
  %v3648 = vlaneseq
  %v3649 = vshrl.u32 %v3648, 7
  %v3650 = vsub.s32 %v2744, %v3649
  %v3651 = vrot.slane %v3492, %v3650
  %v3652 = vlaneseq
  %v3653 = vshrl.u32 %v3652, 7
  %v3654 = vsub.s32 %v2749, %v3653
  %v3655 = vrot.slane %v3495, %v3654
  %v3656 = vsel %vm2754, %v3655, %v3651
  %v3657 = vlaneseq
  %v3658 = vshrl.u32 %v3657, 7
  %v3659 = vsub.s32 %v2744, %v3658
  %v3660 = vrot.slane %v3498, %v3659
  %v3661 = vlaneseq
  %v3662 = vshrl.u32 %v3661, 7
  %v3663 = vsub.s32 %v2749, %v3662
  %v3664 = vrot.slane %v3501, %v3663
  %v3665 = vsel %vm2754, %v3664, %v3660
  %v3666 = vlaneseq
  %v3667 = vshrl.u32 %v3666, 7
  %v3668 = vsub.s32 %v2744, %v3667
  %v3669 = vrot.slane %v3504, %v3668
  %v3670 = vlaneseq
  %v3671 = vshrl.u32 %v3670, 7
  %v3672 = vsub.s32 %v2749, %v3671
  %v3673 = vrot.slane %v3507, %v3672
  %v3674 = vsel %vm2754, %v3673, %v3669
  %v3675 = vlaneseq
  %v3676 = vshrl.u32 %v3675, 7
  %v3677 = vsub.s32 %v2744, %v3676
  %v3678 = vrot.slane %v3510, %v3677
  %v3679 = vlaneseq
  %v3680 = vshrl.u32 %v3679, 7
  %v3681 = vsub.s32 %v2749, %v3680
  %v3682 = vrot.slane %v3513, %v3681
  %v3683 = vsel %vm2754, %v3682, %v3678
  %v3684 = vlaneseq
  %v3685 = vshrl.u32 %v3684, 7
  %v3686 = vsub.s32 %v2744, %v3685
  %v3687 = vrot.slane %v3516, %v3686
  %v3688 = vlaneseq
  %v3689 = vshrl.u32 %v3688, 7
  %v3690 = vsub.s32 %v2749, %v3689
  %v3691 = vrot.slane %v3519, %v3690
  %v3692 = vsel %vm2754, %v3691, %v3687
  %v3693 = vlaneseq
  %v3694 = vshrl.u32 %v3693, 7
  %v3695 = vsub.s32 %v2744, %v3694
  %v3696 = vrot.slane %v3522, %v3695
  %v3697 = vlaneseq
  %v3698 = vshrl.u32 %v3697, 7
  %v3699 = vsub.s32 %v2749, %v3698
  %v3700 = vrot.slane %v3525, %v3699
  %v3701 = vsel %vm2754, %v3700, %v3696
  %v3702 = vsel %vm2891, %v3575, %v3566
  %v3703 = vsel %vm2893, %v3584, %v3702
  %v3704 = vsel %vm2895, %v3593, %v3703
  %v3705 = vsel %vm2897, %v3602, %v3704
  %v3706 = vsel %vm2899, %v3611, %v3705
  %v3707 = vsel %vm2901, %v3620, %v3706
  %v3708 = vsel %vm2903, %v3629, %v3707
  %v3709 = vsel %vm2891, %v3647, %v3638
  %v3710 = vsel %vm2893, %v3656, %v3709
  %v3711 = vsel %vm2895, %v3665, %v3710
  %v3712 = vsel %vm2897, %v3674, %v3711
  %v3713 = vsel %vm2899, %v3683, %v3712
  %v3714 = vsel %vm2901, %v3692, %v3713
  %v3715 = vsel %vm2903, %v3701, %v3714
  %v3718 = vsel %vm2709, %v3708, -10000.0
  %v3719 = vsel %vm2710, %v3715, -10000.0
  %3720 = vrot.lane.b32.xlu0 %v2512, 32
  %v3721 = vpop.permute.xlu0 %3720
  %3722 = vrot.lane.b32.xlu0 %v2514, 32
  %v3723 = vpop.permute.xlu0 %3722
  %3724 = vrot.lane.b32.xlu0 %v2516, 32
  %v3725 = vpop.permute.xlu0 %3724
  %3726 = vrot.lane.b32.xlu0 %v2518, 32
  %v3727 = vpop.permute.xlu0 %3726
  %3728 = vrot.lane.b32.xlu0 %v2520, 32
  %v3729 = vpop.permute.xlu0 %3728
  %3730 = vrot.lane.b32.xlu0 %v2522, 32
  %v3731 = vpop.permute.xlu0 %3730
  %3732 = vrot.lane.b32.xlu0 %v2524, 32
  %v3733 = vpop.permute.xlu0 %3732
  %3734 = vrot.lane.b32.xlu0 %v2526, 32
  %v3735 = vpop.permute.xlu0 %3734
  %3736 = vrot.lane.b32.xlu0 %v2528, 32
  %v3737 = vpop.permute.xlu0 %3736
  %3738 = vrot.lane.b32.xlu0 %v2530, 32
  %v3739 = vpop.permute.xlu0 %3738
  %3740 = vrot.lane.b32.xlu0 %v2532, 32
  %v3741 = vpop.permute.xlu0 %3740
  %3742 = vrot.lane.b32.xlu0 %v2534, 32
  %v3743 = vpop.permute.xlu0 %3742
  %3744 = vrot.lane.b32.xlu0 %v2536, 32
  %v3745 = vpop.permute.xlu0 %3744
  %3746 = vrot.lane.b32.xlu0 %v2538, 32
  %v3747 = vpop.permute.xlu0 %3746
  %3748 = vrot.lane.b32.xlu0 %v2540, 32
  %v3749 = vpop.permute.xlu0 %3748
  %3750 = vrot.lane.b32.xlu0 %v2542, 32
  %v3751 = vpop.permute.xlu0 %3750
  %3752 = vrot.lane.b32.xlu0 %v2544, 32
  %v3753 = vpop.permute.xlu0 %3752
  %3754 = vrot.lane.b32.xlu0 %v2546, 32
  %v3755 = vpop.permute.xlu0 %3754
  %3756 = vrot.lane.b32.xlu0 %v2548, 32
  %v3757 = vpop.permute.xlu0 %3756
  %3758 = vrot.lane.b32.xlu0 %v2550, 32
  %v3759 = vpop.permute.xlu0 %3758
  %3760 = vrot.lane.b32.xlu0 %v2552, 32
  %v3761 = vpop.permute.xlu0 %3760
  %3762 = vrot.lane.b32.xlu0 %v2554, 32
  %v3763 = vpop.permute.xlu0 %3762
  %3764 = vrot.lane.b32.xlu0 %v2556, 32
  %v3765 = vpop.permute.xlu0 %3764
  %3766 = vrot.lane.b32.xlu0 %v2558, 32
  %v3767 = vpop.permute.xlu0 %3766
  %3768 = vrot.lane.b32.xlu0 %v2560, 32
  %v3769 = vpop.permute.xlu0 %3768
  %3770 = vrot.lane.b32.xlu0 %v2562, 32
  %v3771 = vpop.permute.xlu0 %3770
  %3772 = vrot.lane.b32.xlu0 %v2564, 32
  %v3773 = vpop.permute.xlu0 %3772
  %3774 = vrot.lane.b32.xlu0 %v2566, 32
  %v3775 = vpop.permute.xlu0 %3774
  %3776 = vrot.lane.b32.xlu0 %v2568, 32
  %v3777 = vpop.permute.xlu0 %3776
  %3778 = vrot.lane.b32.xlu0 %v2570, 32
  %v3779 = vpop.permute.xlu0 %3778
  %3780 = vrot.lane.b32.xlu0 %v2572, 32
  %v3781 = vpop.permute.xlu0 %3780
  %3782 = vrot.lane.b32.xlu0 %v2574, 32
  %v3783 = vpop.permute.xlu0 %3782
  %v3816 = vsel %vm65, %v3721, 0.0
  %3817 = vadd.xlane.f32.xlu0 %v3816
  %v3818 = vpop.xlane.xlu0 %3817
  %v3819 = vsel %vm65, %v3723, 0.0
  %3820 = vadd.xlane.f32.xlu0 %v3819
  %v3821 = vpop.xlane.xlu0 %3820
  %v3822 = vsel %vm65, %v3725, 0.0
  %3823 = vadd.xlane.f32.xlu0 %v3822
  %v3824 = vpop.xlane.xlu0 %3823
  %v3825 = vsel %vm65, %v3727, 0.0
  %3826 = vadd.xlane.f32.xlu0 %v3825
  %v3827 = vpop.xlane.xlu0 %3826
  %v3828 = vsel %vm65, %v3729, 0.0
  %3829 = vadd.xlane.f32.xlu0 %v3828
  %v3830 = vpop.xlane.xlu0 %3829
  %v3831 = vsel %vm65, %v3731, 0.0
  %3832 = vadd.xlane.f32.xlu0 %v3831
  %v3833 = vpop.xlane.xlu0 %3832
  %v3834 = vsel %vm65, %v3733, 0.0
  %3835 = vadd.xlane.f32.xlu0 %v3834
  %v3836 = vpop.xlane.xlu0 %3835
  %v3837 = vsel %vm65, %v3735, 0.0
  %3838 = vadd.xlane.f32.xlu0 %v3837
  %v3839 = vpop.xlane.xlu0 %3838
  %v3840 = vsel %vm65, %v3737, 0.0
  %3841 = vadd.xlane.f32.xlu0 %v3840
  %v3842 = vpop.xlane.xlu0 %3841
  %v3843 = vsel %vm65, %v3739, 0.0
  %3844 = vadd.xlane.f32.xlu0 %v3843
  %v3845 = vpop.xlane.xlu0 %3844
  %v3846 = vsel %vm65, %v3741, 0.0
  %3847 = vadd.xlane.f32.xlu0 %v3846
  %v3848 = vpop.xlane.xlu0 %3847
  %v3849 = vsel %vm65, %v3743, 0.0
  %3850 = vadd.xlane.f32.xlu0 %v3849
  %v3851 = vpop.xlane.xlu0 %3850
  %v3852 = vsel %vm65, %v3745, 0.0
  %3853 = vadd.xlane.f32.xlu0 %v3852
  %v3854 = vpop.xlane.xlu0 %3853
  %v3855 = vsel %vm65, %v3747, 0.0
  %3856 = vadd.xlane.f32.xlu0 %v3855
  %v3857 = vpop.xlane.xlu0 %3856
  %v3858 = vsel %vm65, %v3749, 0.0
  %3859 = vadd.xlane.f32.xlu0 %v3858
  %v3860 = vpop.xlane.xlu0 %3859
  %v3861 = vsel %vm65, %v3751, 0.0
  %3862 = vadd.xlane.f32.xlu0 %v3861
  %v3863 = vpop.xlane.xlu0 %3862
  %v3864 = vsel %vm65, %v3753, 0.0
  %3865 = vadd.xlane.f32.xlu0 %v3864
  %v3866 = vpop.xlane.xlu0 %3865
  %v3867 = vsel %vm65, %v3755, 0.0
  %3868 = vadd.xlane.f32.xlu0 %v3867
  %v3869 = vpop.xlane.xlu0 %3868
  %v3870 = vsel %vm65, %v3757, 0.0
  %3871 = vadd.xlane.f32.xlu0 %v3870
  %v3872 = vpop.xlane.xlu0 %3871
  %v3873 = vsel %vm65, %v3759, 0.0
  %3874 = vadd.xlane.f32.xlu0 %v3873
  %v3875 = vpop.xlane.xlu0 %3874
  %v3876 = vsel %vm65, %v3761, 0.0
  %3877 = vadd.xlane.f32.xlu0 %v3876
  %v3878 = vpop.xlane.xlu0 %3877
  %v3879 = vsel %vm65, %v3763, 0.0
  %3880 = vadd.xlane.f32.xlu0 %v3879
  %v3881 = vpop.xlane.xlu0 %3880
  %v3882 = vsel %vm65, %v3765, 0.0
  %3883 = vadd.xlane.f32.xlu0 %v3882
  %v3884 = vpop.xlane.xlu0 %3883
  %v3885 = vsel %vm65, %v3767, 0.0
  %3886 = vadd.xlane.f32.xlu0 %v3885
  %v3887 = vpop.xlane.xlu0 %3886
  %v3888 = vsel %vm65, %v3769, 0.0
  %3889 = vadd.xlane.f32.xlu0 %v3888
  %v3890 = vpop.xlane.xlu0 %3889
  %v3891 = vsel %vm65, %v3771, 0.0
  %3892 = vadd.xlane.f32.xlu0 %v3891
  %v3893 = vpop.xlane.xlu0 %3892
  %v3894 = vsel %vm65, %v3773, 0.0
  %3895 = vadd.xlane.f32.xlu0 %v3894
  %v3896 = vpop.xlane.xlu0 %3895
  %v3897 = vsel %vm65, %v3775, 0.0
  %3898 = vadd.xlane.f32.xlu0 %v3897
  %v3899 = vpop.xlane.xlu0 %3898
  %v3900 = vsel %vm65, %v3777, 0.0
  %3901 = vadd.xlane.f32.xlu0 %v3900
  %v3902 = vpop.xlane.xlu0 %3901
  %v3903 = vsel %vm65, %v3779, 0.0
  %3904 = vadd.xlane.f32.xlu0 %v3903
  %v3905 = vpop.xlane.xlu0 %3904
  %v3906 = vsel %vm65, %v3781, 0.0
  %3907 = vadd.xlane.f32.xlu0 %v3906
  %v3908 = vpop.xlane.xlu0 %3907
  %v3909 = vsel %vm65, %v3783, 0.0
  %3910 = vadd.xlane.f32.xlu0 %v3909
  %v3911 = vpop.xlane.xlu0 %3910
  %v3944 = vlaneseq
  %v3945 = vshrl.u32 %v3944, 7
  %v3946 = vsub.s32 %v2744, %v3945
  %v3947 = vrot.slane %v3818, %v3946
  %v3948 = vlaneseq
  %v3949 = vshrl.u32 %v3948, 7
  %v3950 = vsub.s32 %v2749, %v3949
  %v3951 = vrot.slane %v3821, %v3950
  %v3952 = vsel %vm2754, %v3951, %v3947
  %v3953 = vlaneseq
  %v3954 = vshrl.u32 %v3953, 7
  %v3955 = vsub.s32 %v2744, %v3954
  %v3956 = vrot.slane %v3824, %v3955
  %v3957 = vlaneseq
  %v3958 = vshrl.u32 %v3957, 7
  %v3959 = vsub.s32 %v2749, %v3958
  %v3960 = vrot.slane %v3827, %v3959
  %v3961 = vsel %vm2754, %v3960, %v3956
  %v3962 = vlaneseq
  %v3963 = vshrl.u32 %v3962, 7
  %v3964 = vsub.s32 %v2744, %v3963
  %v3965 = vrot.slane %v3830, %v3964
  %v3966 = vlaneseq
  %v3967 = vshrl.u32 %v3966, 7
  %v3968 = vsub.s32 %v2749, %v3967
  %v3969 = vrot.slane %v3833, %v3968
  %v3970 = vsel %vm2754, %v3969, %v3965
  %v3971 = vlaneseq
  %v3972 = vshrl.u32 %v3971, 7
  %v3973 = vsub.s32 %v2744, %v3972
  %v3974 = vrot.slane %v3836, %v3973
  %v3975 = vlaneseq
  %v3976 = vshrl.u32 %v3975, 7
  %v3977 = vsub.s32 %v2749, %v3976
  %v3978 = vrot.slane %v3839, %v3977
  %v3979 = vsel %vm2754, %v3978, %v3974
  %v3980 = vlaneseq
  %v3981 = vshrl.u32 %v3980, 7
  %v3982 = vsub.s32 %v2744, %v3981
  %v3983 = vrot.slane %v3842, %v3982
  %v3984 = vlaneseq
  %v3985 = vshrl.u32 %v3984, 7
  %v3986 = vsub.s32 %v2749, %v3985
  %v3987 = vrot.slane %v3845, %v3986
  %v3988 = vsel %vm2754, %v3987, %v3983
  %v3989 = vlaneseq
  %v3990 = vshrl.u32 %v3989, 7
  %v3991 = vsub.s32 %v2744, %v3990
  %v3992 = vrot.slane %v3848, %v3991
  %v3993 = vlaneseq
  %v3994 = vshrl.u32 %v3993, 7
  %v3995 = vsub.s32 %v2749, %v3994
  %v3996 = vrot.slane %v3851, %v3995
  %v3997 = vsel %vm2754, %v3996, %v3992
  %v3998 = vlaneseq
  %v3999 = vshrl.u32 %v3998, 7
  %v4000 = vsub.s32 %v2744, %v3999
  %v4001 = vrot.slane %v3854, %v4000
  %v4002 = vlaneseq
  %v4003 = vshrl.u32 %v4002, 7
  %v4004 = vsub.s32 %v2749, %v4003
  %v4005 = vrot.slane %v3857, %v4004
  %v4006 = vsel %vm2754, %v4005, %v4001
  %v4007 = vlaneseq
  %v4008 = vshrl.u32 %v4007, 7
  %v4009 = vsub.s32 %v2744, %v4008
  %v4010 = vrot.slane %v3860, %v4009
  %v4011 = vlaneseq
  %v4012 = vshrl.u32 %v4011, 7
  %v4013 = vsub.s32 %v2749, %v4012
  %v4014 = vrot.slane %v3863, %v4013
  %v4015 = vsel %vm2754, %v4014, %v4010
  %v4016 = vlaneseq
  %v4017 = vshrl.u32 %v4016, 7
  %v4018 = vsub.s32 %v2744, %v4017
  %v4019 = vrot.slane %v3866, %v4018
  %v4020 = vlaneseq
  %v4021 = vshrl.u32 %v4020, 7
  %v4022 = vsub.s32 %v2749, %v4021
  %v4023 = vrot.slane %v3869, %v4022
  %v4024 = vsel %vm2754, %v4023, %v4019
  %v4025 = vlaneseq
  %v4026 = vshrl.u32 %v4025, 7
  %v4027 = vsub.s32 %v2744, %v4026
  %v4028 = vrot.slane %v3872, %v4027
  %v4029 = vlaneseq
  %v4030 = vshrl.u32 %v4029, 7
  %v4031 = vsub.s32 %v2749, %v4030
  %v4032 = vrot.slane %v3875, %v4031
  %v4033 = vsel %vm2754, %v4032, %v4028
  %v4034 = vlaneseq
  %v4035 = vshrl.u32 %v4034, 7
  %v4036 = vsub.s32 %v2744, %v4035
  %v4037 = vrot.slane %v3878, %v4036
  %v4038 = vlaneseq
  %v4039 = vshrl.u32 %v4038, 7
  %v4040 = vsub.s32 %v2749, %v4039
  %v4041 = vrot.slane %v3881, %v4040
  %v4042 = vsel %vm2754, %v4041, %v4037
  %v4043 = vlaneseq
  %v4044 = vshrl.u32 %v4043, 7
  %v4045 = vsub.s32 %v2744, %v4044
  %v4046 = vrot.slane %v3884, %v4045
  %v4047 = vlaneseq
  %v4048 = vshrl.u32 %v4047, 7
  %v4049 = vsub.s32 %v2749, %v4048
  %v4050 = vrot.slane %v3887, %v4049
  %v4051 = vsel %vm2754, %v4050, %v4046
  %v4052 = vlaneseq
  %v4053 = vshrl.u32 %v4052, 7
  %v4054 = vsub.s32 %v2744, %v4053
  %v4055 = vrot.slane %v3890, %v4054
  %v4056 = vlaneseq
  %v4057 = vshrl.u32 %v4056, 7
  %v4058 = vsub.s32 %v2749, %v4057
  %v4059 = vrot.slane %v3893, %v4058
  %v4060 = vsel %vm2754, %v4059, %v4055
  %v4061 = vlaneseq
  %v4062 = vshrl.u32 %v4061, 7
  %v4063 = vsub.s32 %v2744, %v4062
  %v4064 = vrot.slane %v3896, %v4063
  %v4065 = vlaneseq
  %v4066 = vshrl.u32 %v4065, 7
  %v4067 = vsub.s32 %v2749, %v4066
  %v4068 = vrot.slane %v3899, %v4067
  %v4069 = vsel %vm2754, %v4068, %v4064
  %v4070 = vlaneseq
  %v4071 = vshrl.u32 %v4070, 7
  %v4072 = vsub.s32 %v2744, %v4071
  %v4073 = vrot.slane %v3902, %v4072
  %v4074 = vlaneseq
  %v4075 = vshrl.u32 %v4074, 7
  %v4076 = vsub.s32 %v2749, %v4075
  %v4077 = vrot.slane %v3905, %v4076
  %v4078 = vsel %vm2754, %v4077, %v4073
  %v4079 = vlaneseq
  %v4080 = vshrl.u32 %v4079, 7
  %v4081 = vsub.s32 %v2744, %v4080
  %v4082 = vrot.slane %v3908, %v4081
  %v4083 = vlaneseq
  %v4084 = vshrl.u32 %v4083, 7
  %v4085 = vsub.s32 %v2749, %v4084
  %v4086 = vrot.slane %v3911, %v4085
  %v4087 = vsel %vm2754, %v4086, %v4082
  %v4088 = vsel %vm2891, %v3961, %v3952
  %v4089 = vsel %vm2893, %v3970, %v4088
  %v4090 = vsel %vm2895, %v3979, %v4089
  %v4091 = vsel %vm2897, %v3988, %v4090
  %v4092 = vsel %vm2899, %v3997, %v4091
  %v4093 = vsel %vm2901, %v4006, %v4092
  %v4094 = vsel %vm2903, %v4015, %v4093
  %v4095 = vsel %vm2891, %v4033, %v4024
  %v4096 = vsel %vm2893, %v4042, %v4095
  %v4097 = vsel %vm2895, %v4051, %v4096
  %v4098 = vsel %vm2897, %v4060, %v4097
  %v4099 = vsel %vm2899, %v4069, %v4098
  %v4100 = vsel %vm2901, %v4078, %v4099
  %v4101 = vsel %vm2903, %v4087, %v4100
  %v4104 = vsel %vm2709, %v4094, -10000.0
  %v4105 = vsel %vm2710, %v4101, -10000.0
  %v4106 = vsel %vm65, %v2513, 0.0
  %4107 = vadd.xlane.f32.xlu0 %v4106
  %v4108 = vpop.xlane.xlu0 %4107
  %v4109 = vsel %vm65, %v2515, 0.0
  %4110 = vadd.xlane.f32.xlu0 %v4109
  %v4111 = vpop.xlane.xlu0 %4110
  %v4112 = vsel %vm65, %v2517, 0.0
  %4113 = vadd.xlane.f32.xlu0 %v4112
  %v4114 = vpop.xlane.xlu0 %4113
  %v4115 = vsel %vm65, %v2519, 0.0
  %4116 = vadd.xlane.f32.xlu0 %v4115
  %v4117 = vpop.xlane.xlu0 %4116
  %v4118 = vsel %vm65, %v2521, 0.0
  %4119 = vadd.xlane.f32.xlu0 %v4118
  %v4120 = vpop.xlane.xlu0 %4119
  %v4121 = vsel %vm65, %v2523, 0.0
  %4122 = vadd.xlane.f32.xlu0 %v4121
  %v4123 = vpop.xlane.xlu0 %4122
  %v4124 = vsel %vm65, %v2525, 0.0
  %4125 = vadd.xlane.f32.xlu0 %v4124
  %v4126 = vpop.xlane.xlu0 %4125
  %v4127 = vsel %vm65, %v2527, 0.0
  %4128 = vadd.xlane.f32.xlu0 %v4127
  %v4129 = vpop.xlane.xlu0 %4128
  %v4130 = vsel %vm65, %v2529, 0.0
  %4131 = vadd.xlane.f32.xlu0 %v4130
  %v4132 = vpop.xlane.xlu0 %4131
  %v4133 = vsel %vm65, %v2531, 0.0
  %4134 = vadd.xlane.f32.xlu0 %v4133
  %v4135 = vpop.xlane.xlu0 %4134
  %v4136 = vsel %vm65, %v2533, 0.0
  %4137 = vadd.xlane.f32.xlu0 %v4136
  %v4138 = vpop.xlane.xlu0 %4137
  %v4139 = vsel %vm65, %v2535, 0.0
  %4140 = vadd.xlane.f32.xlu0 %v4139
  %v4141 = vpop.xlane.xlu0 %4140
  %v4142 = vsel %vm65, %v2537, 0.0
  %4143 = vadd.xlane.f32.xlu0 %v4142
  %v4144 = vpop.xlane.xlu0 %4143
  %v4145 = vsel %vm65, %v2539, 0.0
  %4146 = vadd.xlane.f32.xlu0 %v4145
  %v4147 = vpop.xlane.xlu0 %4146
  %v4148 = vsel %vm65, %v2541, 0.0
  %4149 = vadd.xlane.f32.xlu0 %v4148
  %v4150 = vpop.xlane.xlu0 %4149
  %v4151 = vsel %vm65, %v2543, 0.0
  %4152 = vadd.xlane.f32.xlu0 %v4151
  %v4153 = vpop.xlane.xlu0 %4152
  %v4154 = vsel %vm65, %v2545, 0.0
  %4155 = vadd.xlane.f32.xlu0 %v4154
  %v4156 = vpop.xlane.xlu0 %4155
  %v4157 = vsel %vm65, %v2547, 0.0
  %4158 = vadd.xlane.f32.xlu0 %v4157
  %v4159 = vpop.xlane.xlu0 %4158
  %v4160 = vsel %vm65, %v2549, 0.0
  %4161 = vadd.xlane.f32.xlu0 %v4160
  %v4162 = vpop.xlane.xlu0 %4161
  %v4163 = vsel %vm65, %v2551, 0.0
  %4164 = vadd.xlane.f32.xlu0 %v4163
  %v4165 = vpop.xlane.xlu0 %4164
  %v4166 = vsel %vm65, %v2553, 0.0
  %4167 = vadd.xlane.f32.xlu0 %v4166
  %v4168 = vpop.xlane.xlu0 %4167
  %v4169 = vsel %vm65, %v2555, 0.0
  %4170 = vadd.xlane.f32.xlu0 %v4169
  %v4171 = vpop.xlane.xlu0 %4170
  %v4172 = vsel %vm65, %v2557, 0.0
  %4173 = vadd.xlane.f32.xlu0 %v4172
  %v4174 = vpop.xlane.xlu0 %4173
  %v4175 = vsel %vm65, %v2559, 0.0
  %4176 = vadd.xlane.f32.xlu0 %v4175
  %v4177 = vpop.xlane.xlu0 %4176
  %v4178 = vsel %vm65, %v2561, 0.0
  %4179 = vadd.xlane.f32.xlu0 %v4178
  %v4180 = vpop.xlane.xlu0 %4179
  %v4181 = vsel %vm65, %v2563, 0.0
  %4182 = vadd.xlane.f32.xlu0 %v4181
  %v4183 = vpop.xlane.xlu0 %4182
  %v4184 = vsel %vm65, %v2565, 0.0
  %4185 = vadd.xlane.f32.xlu0 %v4184
  %v4186 = vpop.xlane.xlu0 %4185
  %v4187 = vsel %vm65, %v2567, 0.0
  %4188 = vadd.xlane.f32.xlu0 %v4187
  %v4189 = vpop.xlane.xlu0 %4188
  %v4190 = vsel %vm65, %v2569, 0.0
  %4191 = vadd.xlane.f32.xlu0 %v4190
  %v4192 = vpop.xlane.xlu0 %4191
  %v4193 = vsel %vm65, %v2571, 0.0
  %4194 = vadd.xlane.f32.xlu0 %v4193
  %v4195 = vpop.xlane.xlu0 %4194
  %v4196 = vsel %vm65, %v2573, 0.0
  %4197 = vadd.xlane.f32.xlu0 %v4196
  %v4198 = vpop.xlane.xlu0 %4197
  %v4199 = vsel %vm65, %v2575, 0.0
  %4200 = vadd.xlane.f32.xlu0 %v4199
  %v4201 = vpop.xlane.xlu0 %4200
  %v4234 = vlaneseq
  %v4235 = vshrl.u32 %v4234, 7
  %v4236 = vsub.s32 %v2744, %v4235
  %v4237 = vrot.slane %v4108, %v4236
  %v4238 = vlaneseq
  %v4239 = vshrl.u32 %v4238, 7
  %v4240 = vsub.s32 %v2749, %v4239
  %v4241 = vrot.slane %v4111, %v4240
  %v4242 = vsel %vm2754, %v4241, %v4237
  %v4243 = vlaneseq
  %v4244 = vshrl.u32 %v4243, 7
  %v4245 = vsub.s32 %v2744, %v4244
  %v4246 = vrot.slane %v4114, %v4245
  %v4247 = vlaneseq
  %v4248 = vshrl.u32 %v4247, 7
  %v4249 = vsub.s32 %v2749, %v4248
  %v4250 = vrot.slane %v4117, %v4249
  %v4251 = vsel %vm2754, %v4250, %v4246
  %v4252 = vlaneseq
  %v4253 = vshrl.u32 %v4252, 7
  %v4254 = vsub.s32 %v2744, %v4253
  %v4255 = vrot.slane %v4120, %v4254
  %v4256 = vlaneseq
  %v4257 = vshrl.u32 %v4256, 7
  %v4258 = vsub.s32 %v2749, %v4257
  %v4259 = vrot.slane %v4123, %v4258
  %v4260 = vsel %vm2754, %v4259, %v4255
  %v4261 = vlaneseq
  %v4262 = vshrl.u32 %v4261, 7
  %v4263 = vsub.s32 %v2744, %v4262
  %v4264 = vrot.slane %v4126, %v4263
  %v4265 = vlaneseq
  %v4266 = vshrl.u32 %v4265, 7
  %v4267 = vsub.s32 %v2749, %v4266
  %v4268 = vrot.slane %v4129, %v4267
  %v4269 = vsel %vm2754, %v4268, %v4264
  %v4270 = vlaneseq
  %v4271 = vshrl.u32 %v4270, 7
  %v4272 = vsub.s32 %v2744, %v4271
  %v4273 = vrot.slane %v4132, %v4272
  %v4274 = vlaneseq
  %v4275 = vshrl.u32 %v4274, 7
  %v4276 = vsub.s32 %v2749, %v4275
  %v4277 = vrot.slane %v4135, %v4276
  %v4278 = vsel %vm2754, %v4277, %v4273
  %v4279 = vlaneseq
  %v4280 = vshrl.u32 %v4279, 7
  %v4281 = vsub.s32 %v2744, %v4280
  %v4282 = vrot.slane %v4138, %v4281
  %v4283 = vlaneseq
  %v4284 = vshrl.u32 %v4283, 7
  %v4285 = vsub.s32 %v2749, %v4284
  %v4286 = vrot.slane %v4141, %v4285
  %v4287 = vsel %vm2754, %v4286, %v4282
  %v4288 = vlaneseq
  %v4289 = vshrl.u32 %v4288, 7
  %v4290 = vsub.s32 %v2744, %v4289
  %v4291 = vrot.slane %v4144, %v4290
  %v4292 = vlaneseq
  %v4293 = vshrl.u32 %v4292, 7
  %v4294 = vsub.s32 %v2749, %v4293
  %v4295 = vrot.slane %v4147, %v4294
  %v4296 = vsel %vm2754, %v4295, %v4291
  %v4297 = vlaneseq
  %v4298 = vshrl.u32 %v4297, 7
  %v4299 = vsub.s32 %v2744, %v4298
  %v4300 = vrot.slane %v4150, %v4299
  %v4301 = vlaneseq
  %v4302 = vshrl.u32 %v4301, 7
  %v4303 = vsub.s32 %v2749, %v4302
  %v4304 = vrot.slane %v4153, %v4303
  %v4305 = vsel %vm2754, %v4304, %v4300
  %v4306 = vlaneseq
  %v4307 = vshrl.u32 %v4306, 7
  %v4308 = vsub.s32 %v2744, %v4307
  %v4309 = vrot.slane %v4156, %v4308
  %v4310 = vlaneseq
  %v4311 = vshrl.u32 %v4310, 7
  %v4312 = vsub.s32 %v2749, %v4311
  %v4313 = vrot.slane %v4159, %v4312
  %v4314 = vsel %vm2754, %v4313, %v4309
  %v4315 = vlaneseq
  %v4316 = vshrl.u32 %v4315, 7
  %v4317 = vsub.s32 %v2744, %v4316
  %v4318 = vrot.slane %v4162, %v4317
  %v4319 = vlaneseq
  %v4320 = vshrl.u32 %v4319, 7
  %v4321 = vsub.s32 %v2749, %v4320
  %v4322 = vrot.slane %v4165, %v4321
  %v4323 = vsel %vm2754, %v4322, %v4318
  %v4324 = vlaneseq
  %v4325 = vshrl.u32 %v4324, 7
  %v4326 = vsub.s32 %v2744, %v4325
  %v4327 = vrot.slane %v4168, %v4326
  %v4328 = vlaneseq
  %v4329 = vshrl.u32 %v4328, 7
  %v4330 = vsub.s32 %v2749, %v4329
  %v4331 = vrot.slane %v4171, %v4330
  %v4332 = vsel %vm2754, %v4331, %v4327
  %v4333 = vlaneseq
  %v4334 = vshrl.u32 %v4333, 7
  %v4335 = vsub.s32 %v2744, %v4334
  %v4336 = vrot.slane %v4174, %v4335
  %v4337 = vlaneseq
  %v4338 = vshrl.u32 %v4337, 7
  %v4339 = vsub.s32 %v2749, %v4338
  %v4340 = vrot.slane %v4177, %v4339
  %v4341 = vsel %vm2754, %v4340, %v4336
  %v4342 = vlaneseq
  %v4343 = vshrl.u32 %v4342, 7
  %v4344 = vsub.s32 %v2744, %v4343
  %v4345 = vrot.slane %v4180, %v4344
  %v4346 = vlaneseq
  %v4347 = vshrl.u32 %v4346, 7
  %v4348 = vsub.s32 %v2749, %v4347
  %v4349 = vrot.slane %v4183, %v4348
  %v4350 = vsel %vm2754, %v4349, %v4345
  %v4351 = vlaneseq
  %v4352 = vshrl.u32 %v4351, 7
  %v4353 = vsub.s32 %v2744, %v4352
  %v4354 = vrot.slane %v4186, %v4353
  %v4355 = vlaneseq
  %v4356 = vshrl.u32 %v4355, 7
  %v4357 = vsub.s32 %v2749, %v4356
  %v4358 = vrot.slane %v4189, %v4357
  %v4359 = vsel %vm2754, %v4358, %v4354
  %v4360 = vlaneseq
  %v4361 = vshrl.u32 %v4360, 7
  %v4362 = vsub.s32 %v2744, %v4361
  %v4363 = vrot.slane %v4192, %v4362
  %v4364 = vlaneseq
  %v4365 = vshrl.u32 %v4364, 7
  %v4366 = vsub.s32 %v2749, %v4365
  %v4367 = vrot.slane %v4195, %v4366
  %v4368 = vsel %vm2754, %v4367, %v4363
  %v4369 = vlaneseq
  %v4370 = vshrl.u32 %v4369, 7
  %v4371 = vsub.s32 %v2744, %v4370
  %v4372 = vrot.slane %v4198, %v4371
  %v4373 = vlaneseq
  %v4374 = vshrl.u32 %v4373, 7
  %v4375 = vsub.s32 %v2749, %v4374
  %v4376 = vrot.slane %v4201, %v4375
  %v4377 = vsel %vm2754, %v4376, %v4372
  %v4378 = vsel %vm2891, %v4251, %v4242
  %v4379 = vsel %vm2893, %v4260, %v4378
  %v4380 = vsel %vm2895, %v4269, %v4379
  %v4381 = vsel %vm2897, %v4278, %v4380
  %v4382 = vsel %vm2899, %v4287, %v4381
  %v4383 = vsel %vm2901, %v4296, %v4382
  %v4384 = vsel %vm2903, %v4305, %v4383
  %v4385 = vsel %vm2891, %v4323, %v4314
  %v4386 = vsel %vm2893, %v4332, %v4385
  %v4387 = vsel %vm2895, %v4341, %v4386
  %v4388 = vsel %vm2897, %v4350, %v4387
  %v4389 = vsel %vm2899, %v4359, %v4388
  %v4390 = vsel %vm2901, %v4368, %v4389
  %v4391 = vsel %vm2903, %v4377, %v4390
  %v4394 = vsel %vm2709, %v4384, -10000.0
  %v4395 = vsel %vm2710, %v4391, -10000.0
  %4428 = vrot.lane.b32.xlu0 %v2513, 96
  %v4429 = vpop.permute.xlu0 %4428
  %4430 = vrot.lane.b32.xlu0 %v2515, 96
  %v4431 = vpop.permute.xlu0 %4430
  %4432 = vrot.lane.b32.xlu0 %v2517, 96
  %v4433 = vpop.permute.xlu0 %4432
  %4434 = vrot.lane.b32.xlu0 %v2519, 96
  %v4435 = vpop.permute.xlu0 %4434
  %4436 = vrot.lane.b32.xlu0 %v2521, 96
  %v4437 = vpop.permute.xlu0 %4436
  %4438 = vrot.lane.b32.xlu0 %v2523, 96
  %v4439 = vpop.permute.xlu0 %4438
  %4440 = vrot.lane.b32.xlu0 %v2525, 96
  %v4441 = vpop.permute.xlu0 %4440
  %4442 = vrot.lane.b32.xlu0 %v2527, 96
  %v4443 = vpop.permute.xlu0 %4442
  %4444 = vrot.lane.b32.xlu0 %v2529, 96
  %v4445 = vpop.permute.xlu0 %4444
  %4446 = vrot.lane.b32.xlu0 %v2531, 96
  %v4447 = vpop.permute.xlu0 %4446
  %4448 = vrot.lane.b32.xlu0 %v2533, 96
  %v4449 = vpop.permute.xlu0 %4448
  %4450 = vrot.lane.b32.xlu0 %v2535, 96
  %v4451 = vpop.permute.xlu0 %4450
  %4452 = vrot.lane.b32.xlu0 %v2537, 96
  %v4453 = vpop.permute.xlu0 %4452
  %4454 = vrot.lane.b32.xlu0 %v2539, 96
  %v4455 = vpop.permute.xlu0 %4454
  %4456 = vrot.lane.b32.xlu0 %v2541, 96
  %v4457 = vpop.permute.xlu0 %4456
  %4458 = vrot.lane.b32.xlu0 %v2543, 96
  %v4459 = vpop.permute.xlu0 %4458
  %4460 = vrot.lane.b32.xlu0 %v2545, 96
  %v4461 = vpop.permute.xlu0 %4460
  %4462 = vrot.lane.b32.xlu0 %v2547, 96
  %v4463 = vpop.permute.xlu0 %4462
  %4464 = vrot.lane.b32.xlu0 %v2549, 96
  %v4465 = vpop.permute.xlu0 %4464
  %4466 = vrot.lane.b32.xlu0 %v2551, 96
  %v4467 = vpop.permute.xlu0 %4466
  %4468 = vrot.lane.b32.xlu0 %v2553, 96
  %v4469 = vpop.permute.xlu0 %4468
  %4470 = vrot.lane.b32.xlu0 %v2555, 96
  %v4471 = vpop.permute.xlu0 %4470
  %4472 = vrot.lane.b32.xlu0 %v2557, 96
  %v4473 = vpop.permute.xlu0 %4472
  %4474 = vrot.lane.b32.xlu0 %v2559, 96
  %v4475 = vpop.permute.xlu0 %4474
  %4476 = vrot.lane.b32.xlu0 %v2561, 96
  %v4477 = vpop.permute.xlu0 %4476
  %4478 = vrot.lane.b32.xlu0 %v2563, 96
  %v4479 = vpop.permute.xlu0 %4478
  %4480 = vrot.lane.b32.xlu0 %v2565, 96
  %v4481 = vpop.permute.xlu0 %4480
  %4482 = vrot.lane.b32.xlu0 %v2567, 96
  %v4483 = vpop.permute.xlu0 %4482
  %4484 = vrot.lane.b32.xlu0 %v2569, 96
  %v4485 = vpop.permute.xlu0 %4484
  %4486 = vrot.lane.b32.xlu0 %v2571, 96
  %v4487 = vpop.permute.xlu0 %4486
  %4488 = vrot.lane.b32.xlu0 %v2573, 96
  %v4489 = vpop.permute.xlu0 %4488
  %4490 = vrot.lane.b32.xlu0 %v2575, 96
  %v4491 = vpop.permute.xlu0 %4490
  %v4524 = vsel %vm65, %v4429, 0.0
  %4525 = vadd.xlane.f32.xlu0 %v4524
  %v4526 = vpop.xlane.xlu0 %4525
  %v4527 = vsel %vm65, %v4431, 0.0
  %4528 = vadd.xlane.f32.xlu0 %v4527
  %v4529 = vpop.xlane.xlu0 %4528
  %v4530 = vsel %vm65, %v4433, 0.0
  %4531 = vadd.xlane.f32.xlu0 %v4530
  %v4532 = vpop.xlane.xlu0 %4531
  %v4533 = vsel %vm65, %v4435, 0.0
  %4534 = vadd.xlane.f32.xlu0 %v4533
  %v4535 = vpop.xlane.xlu0 %4534
  %v4536 = vsel %vm65, %v4437, 0.0
  %4537 = vadd.xlane.f32.xlu0 %v4536
  %v4538 = vpop.xlane.xlu0 %4537
  %v4539 = vsel %vm65, %v4439, 0.0
  %4540 = vadd.xlane.f32.xlu0 %v4539
  %v4541 = vpop.xlane.xlu0 %4540
  %v4542 = vsel %vm65, %v4441, 0.0
  %4543 = vadd.xlane.f32.xlu0 %v4542
  %v4544 = vpop.xlane.xlu0 %4543
  %v4545 = vsel %vm65, %v4443, 0.0
  %4546 = vadd.xlane.f32.xlu0 %v4545
  %v4547 = vpop.xlane.xlu0 %4546
  %v4548 = vsel %vm65, %v4445, 0.0
  %4549 = vadd.xlane.f32.xlu0 %v4548
  %v4550 = vpop.xlane.xlu0 %4549
  %v4551 = vsel %vm65, %v4447, 0.0
  %4552 = vadd.xlane.f32.xlu0 %v4551
  %v4553 = vpop.xlane.xlu0 %4552
  %v4554 = vsel %vm65, %v4449, 0.0
  %4555 = vadd.xlane.f32.xlu0 %v4554
  %v4556 = vpop.xlane.xlu0 %4555
  %v4557 = vsel %vm65, %v4451, 0.0
  %4558 = vadd.xlane.f32.xlu0 %v4557
  %v4559 = vpop.xlane.xlu0 %4558
  %v4560 = vsel %vm65, %v4453, 0.0
  %4561 = vadd.xlane.f32.xlu0 %v4560
  %v4562 = vpop.xlane.xlu0 %4561
  %v4563 = vsel %vm65, %v4455, 0.0
  %4564 = vadd.xlane.f32.xlu0 %v4563
  %v4565 = vpop.xlane.xlu0 %4564
  %v4566 = vsel %vm65, %v4457, 0.0
  %4567 = vadd.xlane.f32.xlu0 %v4566
  %v4568 = vpop.xlane.xlu0 %4567
  %v4569 = vsel %vm65, %v4459, 0.0
  %4570 = vadd.xlane.f32.xlu0 %v4569
  %v4571 = vpop.xlane.xlu0 %4570
  %v4572 = vsel %vm65, %v4461, 0.0
  %4573 = vadd.xlane.f32.xlu0 %v4572
  %v4574 = vpop.xlane.xlu0 %4573
  %v4575 = vsel %vm65, %v4463, 0.0
  %4576 = vadd.xlane.f32.xlu0 %v4575
  %v4577 = vpop.xlane.xlu0 %4576
  %v4578 = vsel %vm65, %v4465, 0.0
  %4579 = vadd.xlane.f32.xlu0 %v4578
  %v4580 = vpop.xlane.xlu0 %4579
  %v4581 = vsel %vm65, %v4467, 0.0
  %4582 = vadd.xlane.f32.xlu0 %v4581
  %v4583 = vpop.xlane.xlu0 %4582
  %v4584 = vsel %vm65, %v4469, 0.0
  %4585 = vadd.xlane.f32.xlu0 %v4584
  %v4586 = vpop.xlane.xlu0 %4585
  %v4587 = vsel %vm65, %v4471, 0.0
  %4588 = vadd.xlane.f32.xlu0 %v4587
  %v4589 = vpop.xlane.xlu0 %4588
  %v4590 = vsel %vm65, %v4473, 0.0
  %4591 = vadd.xlane.f32.xlu0 %v4590
  %v4592 = vpop.xlane.xlu0 %4591
  %v4593 = vsel %vm65, %v4475, 0.0
  %4594 = vadd.xlane.f32.xlu0 %v4593
  %v4595 = vpop.xlane.xlu0 %4594
  %v4596 = vsel %vm65, %v4477, 0.0
  %4597 = vadd.xlane.f32.xlu0 %v4596
  %v4598 = vpop.xlane.xlu0 %4597
  %v4599 = vsel %vm65, %v4479, 0.0
  %4600 = vadd.xlane.f32.xlu0 %v4599
  %v4601 = vpop.xlane.xlu0 %4600
  %v4602 = vsel %vm65, %v4481, 0.0
  %4603 = vadd.xlane.f32.xlu0 %v4602
  %v4604 = vpop.xlane.xlu0 %4603
  %v4605 = vsel %vm65, %v4483, 0.0
  %4606 = vadd.xlane.f32.xlu0 %v4605
  %v4607 = vpop.xlane.xlu0 %4606
  %v4608 = vsel %vm65, %v4485, 0.0
  %4609 = vadd.xlane.f32.xlu0 %v4608
  %v4610 = vpop.xlane.xlu0 %4609
  %v4611 = vsel %vm65, %v4487, 0.0
  %4612 = vadd.xlane.f32.xlu0 %v4611
  %v4613 = vpop.xlane.xlu0 %4612
  %v4614 = vsel %vm65, %v4489, 0.0
  %4615 = vadd.xlane.f32.xlu0 %v4614
  %v4616 = vpop.xlane.xlu0 %4615
  %v4617 = vsel %vm65, %v4491, 0.0
  %4618 = vadd.xlane.f32.xlu0 %v4617
  %v4619 = vpop.xlane.xlu0 %4618
  %v4652 = vlaneseq
  %v4653 = vshrl.u32 %v4652, 7
  %v4654 = vsub.s32 %v2744, %v4653
  %v4655 = vrot.slane %v4526, %v4654
  %v4656 = vlaneseq
  %v4657 = vshrl.u32 %v4656, 7
  %v4658 = vsub.s32 %v2749, %v4657
  %v4659 = vrot.slane %v4529, %v4658
  %v4660 = vsel %vm2754, %v4659, %v4655
  %v4661 = vlaneseq
  %v4662 = vshrl.u32 %v4661, 7
  %v4663 = vsub.s32 %v2744, %v4662
  %v4664 = vrot.slane %v4532, %v4663
  %v4665 = vlaneseq
  %v4666 = vshrl.u32 %v4665, 7
  %v4667 = vsub.s32 %v2749, %v4666
  %v4668 = vrot.slane %v4535, %v4667
  %v4669 = vsel %vm2754, %v4668, %v4664
  %v4670 = vlaneseq
  %v4671 = vshrl.u32 %v4670, 7
  %v4672 = vsub.s32 %v2744, %v4671
  %v4673 = vrot.slane %v4538, %v4672
  %v4674 = vlaneseq
  %v4675 = vshrl.u32 %v4674, 7
  %v4676 = vsub.s32 %v2749, %v4675
  %v4677 = vrot.slane %v4541, %v4676
  %v4678 = vsel %vm2754, %v4677, %v4673
  %v4679 = vlaneseq
  %v4680 = vshrl.u32 %v4679, 7
  %v4681 = vsub.s32 %v2744, %v4680
  %v4682 = vrot.slane %v4544, %v4681
  %v4683 = vlaneseq
  %v4684 = vshrl.u32 %v4683, 7
  %v4685 = vsub.s32 %v2749, %v4684
  %v4686 = vrot.slane %v4547, %v4685
  %v4687 = vsel %vm2754, %v4686, %v4682
  %v4688 = vlaneseq
  %v4689 = vshrl.u32 %v4688, 7
  %v4690 = vsub.s32 %v2744, %v4689
  %v4691 = vrot.slane %v4550, %v4690
  %v4692 = vlaneseq
  %v4693 = vshrl.u32 %v4692, 7
  %v4694 = vsub.s32 %v2749, %v4693
  %v4695 = vrot.slane %v4553, %v4694
  %v4696 = vsel %vm2754, %v4695, %v4691
  %v4697 = vlaneseq
  %v4698 = vshrl.u32 %v4697, 7
  %v4699 = vsub.s32 %v2744, %v4698
  %v4700 = vrot.slane %v4556, %v4699
  %v4701 = vlaneseq
  %v4702 = vshrl.u32 %v4701, 7
  %v4703 = vsub.s32 %v2749, %v4702
  %v4704 = vrot.slane %v4559, %v4703
  %v4705 = vsel %vm2754, %v4704, %v4700
  %v4706 = vlaneseq
  %v4707 = vshrl.u32 %v4706, 7
  %v4708 = vsub.s32 %v2744, %v4707
  %v4709 = vrot.slane %v4562, %v4708
  %v4710 = vlaneseq
  %v4711 = vshrl.u32 %v4710, 7
  %v4712 = vsub.s32 %v2749, %v4711
  %v4713 = vrot.slane %v4565, %v4712
  %v4714 = vsel %vm2754, %v4713, %v4709
  %v4715 = vlaneseq
  %v4716 = vshrl.u32 %v4715, 7
  %v4717 = vsub.s32 %v2744, %v4716
  %v4718 = vrot.slane %v4568, %v4717
  %v4719 = vlaneseq
  %v4720 = vshrl.u32 %v4719, 7
  %v4721 = vsub.s32 %v2749, %v4720
  %v4722 = vrot.slane %v4571, %v4721
  %v4723 = vsel %vm2754, %v4722, %v4718
  %v4724 = vlaneseq
  %v4725 = vshrl.u32 %v4724, 7
  %v4726 = vsub.s32 %v2744, %v4725
  %v4727 = vrot.slane %v4574, %v4726
  %v4728 = vlaneseq
  %v4729 = vshrl.u32 %v4728, 7
  %v4730 = vsub.s32 %v2749, %v4729
  %v4731 = vrot.slane %v4577, %v4730
  %v4732 = vsel %vm2754, %v4731, %v4727
  %v4733 = vlaneseq
  %v4734 = vshrl.u32 %v4733, 7
  %v4735 = vsub.s32 %v2744, %v4734
  %v4736 = vrot.slane %v4580, %v4735
  %v4737 = vlaneseq
  %v4738 = vshrl.u32 %v4737, 7
  %v4739 = vsub.s32 %v2749, %v4738
  %v4740 = vrot.slane %v4583, %v4739
  %v4741 = vsel %vm2754, %v4740, %v4736
  %v4742 = vlaneseq
  %v4743 = vshrl.u32 %v4742, 7
  %v4744 = vsub.s32 %v2744, %v4743
  %v4745 = vrot.slane %v4586, %v4744
  %v4746 = vlaneseq
  %v4747 = vshrl.u32 %v4746, 7
  %v4748 = vsub.s32 %v2749, %v4747
  %v4749 = vrot.slane %v4589, %v4748
  %v4750 = vsel %vm2754, %v4749, %v4745
  %v4751 = vlaneseq
  %v4752 = vshrl.u32 %v4751, 7
  %v4753 = vsub.s32 %v2744, %v4752
  %v4754 = vrot.slane %v4592, %v4753
  %v4755 = vlaneseq
  %v4756 = vshrl.u32 %v4755, 7
  %v4757 = vsub.s32 %v2749, %v4756
  %v4758 = vrot.slane %v4595, %v4757
  %v4759 = vsel %vm2754, %v4758, %v4754
  %v4760 = vlaneseq
  %v4761 = vshrl.u32 %v4760, 7
  %v4762 = vsub.s32 %v2744, %v4761
  %v4763 = vrot.slane %v4598, %v4762
  %v4764 = vlaneseq
  %v4765 = vshrl.u32 %v4764, 7
  %v4766 = vsub.s32 %v2749, %v4765
  %v4767 = vrot.slane %v4601, %v4766
  %v4768 = vsel %vm2754, %v4767, %v4763
  %v4769 = vlaneseq
  %v4770 = vshrl.u32 %v4769, 7
  %v4771 = vsub.s32 %v2744, %v4770
  %v4772 = vrot.slane %v4604, %v4771
  %v4773 = vlaneseq
  %v4774 = vshrl.u32 %v4773, 7
  %v4775 = vsub.s32 %v2749, %v4774
  %v4776 = vrot.slane %v4607, %v4775
  %v4777 = vsel %vm2754, %v4776, %v4772
  %v4778 = vlaneseq
  %v4779 = vshrl.u32 %v4778, 7
  %v4780 = vsub.s32 %v2744, %v4779
  %v4781 = vrot.slane %v4610, %v4780
  %v4782 = vlaneseq
  %v4783 = vshrl.u32 %v4782, 7
  %v4784 = vsub.s32 %v2749, %v4783
  %v4785 = vrot.slane %v4613, %v4784
  %v4786 = vsel %vm2754, %v4785, %v4781
  %v4787 = vlaneseq
  %v4788 = vshrl.u32 %v4787, 7
  %v4789 = vsub.s32 %v2744, %v4788
  %v4790 = vrot.slane %v4616, %v4789
  %v4791 = vlaneseq
  %v4792 = vshrl.u32 %v4791, 7
  %v4793 = vsub.s32 %v2749, %v4792
  %v4794 = vrot.slane %v4619, %v4793
  %v4795 = vsel %vm2754, %v4794, %v4790
  %v4796 = vsel %vm2891, %v4669, %v4660
  %v4797 = vsel %vm2893, %v4678, %v4796
  %v4798 = vsel %vm2895, %v4687, %v4797
  %v4799 = vsel %vm2897, %v4696, %v4798
  %v4800 = vsel %vm2899, %v4705, %v4799
  %v4801 = vsel %vm2901, %v4714, %v4800
  %v4802 = vsel %vm2903, %v4723, %v4801
  %v4803 = vsel %vm2891, %v4741, %v4732
  %v4804 = vsel %vm2893, %v4750, %v4803
  %v4805 = vsel %vm2895, %v4759, %v4804
  %v4806 = vsel %vm2897, %v4768, %v4805
  %v4807 = vsel %vm2899, %v4777, %v4806
  %v4808 = vsel %vm2901, %v4786, %v4807
  %v4809 = vsel %vm2903, %v4795, %v4808
  %v4812 = vsel %vm2709, %v4802, -10000.0
  %v4813 = vsel %vm2710, %v4809, -10000.0
  %4816 = vrot.lane.b32.xlu0 %v3332, 16
  %v4817 = vpop.permute.xlu0 %4816
  %4818 = vrot.lane.b32.xlu0 %v3333, 16
  %v4819 = vpop.permute.xlu0 %4818
  %4824 = vrot.lane.b32.xlu0 %v3718, 32
  %v4825 = vpop.permute.xlu0 %4824
  %4826 = vrot.lane.b32.xlu0 %v3719, 32
  %v4827 = vpop.permute.xlu0 %4826
  %4832 = vrot.lane.b32.xlu0 %v4104, 48
  %v4833 = vpop.permute.xlu0 %4832
  %4834 = vrot.lane.b32.xlu0 %v4105, 48
  %v4835 = vpop.permute.xlu0 %4834
  %4840 = vrot.lane.b32.xlu0 %v4394, 64
  %v4841 = vpop.permute.xlu0 %4840
  %4842 = vrot.lane.b32.xlu0 %v4395, 64
  %v4843 = vpop.permute.xlu0 %4842
  %4848 = vrot.lane.b32.xlu0 %v4812, 80
  %v4849 = vpop.permute.xlu0 %4848
  %4850 = vrot.lane.b32.xlu0 %v4813, 80
  %v4851 = vpop.permute.xlu0 %4850
  %4854 = vrot.lane.b32.xlu0 %v2080, 32
  %v4855 = vpop.permute.xlu0 %4854
  %4856 = vrot.lane.b32.xlu0 %v2086, 32
  %v4857 = vpop.permute.xlu0 %4856
  %v4860 = vsel %vm645, %v2914, %v4817
  %v4861 = vsel %vm645, %v2915, %v4819
  %v4862 = vsel %vm65, %v4860, %v4825
  %v4863 = vsel %vm65, %v4861, %v4827
  %vm4864 = vcmask 392192
  %v4865 = vsel %vm4864, %v4862, %v4833
  %v4866 = vsel %vm4864, %v4863, %v4835
  %v4867 = vsel %vm1065, %v4865, %v4841
  %v4868 = vsel %vm1065, %v4866, %v4843
  %vm4869 = vcmask 654336
  %v4870 = vsel %vm4869, %v4867, %v4849
  %v4871 = vsel %vm4869, %v4868, %v4851
  %vm4872 = vcmask 785408
  %v4873 = vsel %vm4872, %v4870, %v4855
  %v4874 = vsel %vm4872, %v4871, %v4857
  %vm4875 = vcmask 818176
  %v4876 = vsel %vm4875, %v4873, 0.0
  %v4877 = vsel %vm4875, %v4874, 0.0
  %4878 = vst [vmem:[%s17] sm:$0xff] %v4876
  %4879 = vst [vmem:[%s17 + $0x8] sm:$0xff] %v4877
  // Predicated region
  $region70: #{setpred4re_sub_absa_forward.1} parent=0 // pred_check
    _
  $region71: #{setpred4re_sub_absa_forward.1} parent=0 // pred_check_branch
    %4881 = sbr.rel (0) target = $region73
  $region72: #{setpred4re_sub_absa_forward.1} parent=0 // pred_region
    _
  $region73: #{setpred4re_sub_absa_forward.1} parent=0 // pred_fallthru
    _
  // Predicated region
  $region74: #{setpred4re_sub_absa_forward.1} parent=0 // pred_check
    _
  $region75: #{setpred4re_sub_absa_forward.1} parent=0 // pred_check_branch
    %4883 = sbr.rel (0) target = $region77
  $region76: #{setpred4re_sub_absa_forward.1} parent=0 // pred_region
    _
  $region77: #{setpred4re_sub_absa_forward.1} parent=0 // pred_fallthru
    _

</llo_original>
